<compile_context>
chip_gen: v7x
topology: tpu7x:2x2x1
jax: 0.10.0
libtpu: 0.0.40
codegen_flags: <defaults>
</compile_context>

<pallas_src>
import functools
import math

import jax
import jax.numpy as jnp
from jax.experimental import pallas as pl
from jax.experimental.pallas import tpu as pltpu


def _conv_im2col_kernel(x_ref, w_ref, o_ref, *, KH, KW, Wo, TR, Cin):
    """One (image, row-tile) grid step.

    x_ref: (1, Hpad, Wpad, Cin)  padded image, resident across the row-tile axis
    w_ref: (Cout, KH*KW*Cin)     folded weight (tap-major, channel-minor)
    o_ref: (1, Cout, TR*Wo)      output tile, lane dim = spatial
    """
    rt = pl.program_id(1)
    r0 = pl.multiple_of(rt * TR, TR)          # first output row of this tile

    # In-VMEM im2col: one (TR*Wo, Cin) column group per kernel tap, concatenated
    # along lanes into the folded patch matrix (TR*Wo, KH*KW*Cin).
    cols = []
    for kh in range(KH):
        rows = x_ref[0, pl.ds(r0 + kh, TR), :, :]          # (TR, Wpad, Cin)
        for kw in range(KW):
            win = rows[:, kw:kw + Wo, :]                   # (TR, Wo, Cin)
            cols.append(win.reshape(TR * Wo, Cin))
    patches = jnp.concatenate(cols, axis=-1)               # (TR*Wo, KH*KW*Cin)

    # Single MXU matmul with f32 accumulation; result is produced directly in
    # (Cout, spatial) orientation so the store is lane-dense (no masked vst).
    # (Cast patches / w_ref to bf16 here if accuracy allows -> ~2x MXU on v6e/v7x.)
    acc = jax.lax.dot_general(
        w_ref[...], patches,
        dimension_numbers=(((1,), (1,)), ((), ())),
        preferred_element_type=jnp.float32)                # (Cout, TR*Wo)
    o_ref[0] = acc.astype(o_ref.dtype)


def _pick_row_tile(Ho, Wo, max_positions=2048):
    """Largest row tile TR dividing Ho with TR*Wo a 128-multiple and <= max_positions."""
    best = None
    for tr in range(1, Ho + 1):
        if Ho % tr == 0 and (tr * Wo) % 128 == 0 and tr * Wo <= max_positions:
            best = tr
    # Full-image fallback: a block equal to the full array dim is always legal.
    return best if best is not None else Ho


def _conv2d_nchw_pallas(x_nchw, w_oihw, padding, row_tile=None):
    """stride=1, dilation=1, groups=1, bias=False conv2d via a Pallas TPU kernel."""
    N, Cin, H, W = x_nchw.shape
    Cout, _, KH, KW = w_oihw.shape
    Ho = H + 2 * padding - KH + 1
    Wo = W + 2 * padding - KW + 1
    Hpad, Wpad = H + 2 * padding, W + 2 * padding

    # The only activation copy made in HBM: padded NHWC input (no K*K im2col).
    x_nhwc = jnp.transpose(x_nchw, (0, 2, 3, 1))
    x_pad = jnp.pad(x_nhwc, ((0, 0), (padding, padding), (padding, padding), (0, 0)))

    # Folded weight (Cout, KH*KW*Cin), tap-major / channel-minor, matching the
    # in-kernel patch concat order: w_fold[co, (kh*KW+kw)*Cin + ci] = w[co, ci, kh, kw].
    w_fold = jnp.transpose(w_oihw, (0, 2, 3, 1)).reshape(Cout, KH * KW * Cin)

    TR = row_tile if row_tile is not None else _pick_row_tile(Ho, Wo)
    assert Ho % TR == 0, (Ho, TR)
    n_row_tiles = Ho // TR

    kernel = functools.partial(_conv_im2col_kernel,
                               KH=KH, KW=KW, Wo=Wo, TR=TR, Cin=Cin)

    out = pl.pallas_call(
        kernel,
        out_shape=jax.ShapeDtypeStruct((N, Cout, Ho * Wo), x_nchw.dtype),
        grid=(N, n_row_tiles),
        in_specs=[
            # Whole padded image per batch element; constant block index along the
            # row-tile axis keeps it VMEM-resident (no re-DMA between row tiles).
            pl.BlockSpec((1, Hpad, Wpad, Cin), lambda n, rt: (n, 0, 0, 0)),
            # Folded weights, resident across the whole grid.
            pl.BlockSpec((Cout, KH * KW * Cin), lambda n, rt: (0, 0)),
        ],
        out_specs=pl.BlockSpec((1, Cout, TR * Wo), lambda n, rt: (n, 0, rt)),
        compiler_params=pltpu.CompilerParams(
            dimension_semantics=("parallel", "parallel"),
            vmem_limit_bytes=32 * 1024 * 1024,
        ),
    )(x_pad, w_fold)

    # (N, Cout, Ho*Wo) -> NCHW is a pure reshape (the final transpose is absorbed
    # into the kernel's output tile layout).
    return out.reshape(N, Cout, Ho, Wo)


def make_rd_weight(w3, theta):
    """Build the 5x5 'radial difference' weight exactly as the PyTorch forward does.

    w3: (Cout, Cin, 3, 3)  ->  (Cout, Cin, 5, 5)
    """
    Cout, Cin = w3.shape[0], w3.shape[1]
    w_flat = w3.reshape(Cout, Cin, 9)
    w_rd = jnp.zeros((Cout, Cin, 25), w3.dtype)
    idx_pos = jnp.array([0, 2, 4, 10, 14, 20, 22, 24])
    idx_neg = jnp.array([6, 7, 8, 11, 13, 16, 17, 18])
    w_rd = w_rd.at[:, :, idx_pos].set(w_flat[:, :, 1:])
    w_rd = w_rd.at[:, :, idx_neg].set(-w_flat[:, :, 1:] * theta)
    w_rd = w_rd.at[:, :, 12].set(w_flat[:, :, 0] * (1.0 - theta))
    return w_rd.reshape(Cout, Cin, 5, 5)


def conv2d_rd_forward(x_nchw, w3, theta=1.0, padding=2, row_tile=None):
    """Forward of Conv2d_rd (kernel_size=3, stride=1, padding=2, dilation=1,
    groups=1, bias=False).  `theta` must be a static Python float, exactly as in
    the PyTorch module (constructor argument), since the branch is Python-level."""
    if math.fabs(theta - 0.0) < 1e-8:
        # PyTorch fallback path: plain 3x3 conv with the module's padding
        # (output spatial size H+2, W+2 for padding=2), i.e. self.conv(x).
        return _conv2d_nchw_pallas(x_nchw, w3, padding, row_tile=row_tile)
    w_rd = make_rd_weight(w3, theta)                 # (Cout, Cin, 5, 5)
    return _conv2d_nchw_pallas(x_nchw, w_rd, padding, row_tile=row_tile)


if __name__ == "__main__":
    key = jax.random.PRNGKey(0)
    kx, kw = jax.random.split(key)

    N, Cin, Cout, H, W = 2, 4, 8, 16, 16
    theta = 1.0

    x = jax.random.normal(kx, (N, Cin, H, W), jnp.float32)
    # Deterministic kaiming-like init for the underlying 3x3 conv weight.
    fan_in = Cin * 3 * 3
    w3 = jax.random.normal(kw, (Cout, Cin, 3, 3), jnp.float32) / math.sqrt(fan_in)

    # Default (auto) row tile: whole image per grid step -> grid (N, 1).
    out = conv2d_rd_forward(x, w3, theta)
    out = jax.block_until_ready(out)
    assert out.shape == (N, Cout, H, W), out.shape

    # Explicit spatial tiling: 8 output rows per tile -> grid (N, 2).
    out_tiled = conv2d_rd_forward(x, w3, theta, row_tile=8)
    out_tiled = jax.block_until_ready(out_tiled)
    assert out_tiled.shape == (N, Cout, H, W), out_tiled.shape

    # Cross-check against XLA's conv with the same rearranged 5x5 weight.
    w_rd = make_rd_weight(w3, theta)
    ref = jax.lax.conv_general_dilated(
        x, w_rd, window_strides=(1, 1), padding=((2, 2), (2, 2)),
        dimension_numbers=("NCHW", "OIHW", "NCHW"))
    err = float(jnp.max(jnp.abs(out - ref)))
    assert jnp.allclose(out, ref, atol=1e-4, rtol=1e-4), err
    err_t = float(jnp.max(jnp.abs(out_tiled - ref)))
    assert jnp.allclose(out_tiled, ref, atol=1e-4, rtol=1e-4), err_t

    print("KERNEL_OK")
</pallas_src>

<mosaic_0001>
module attributes {stable_mosaic.version = 11 : i64} {
  func.func @_conv_im2col_kernel(%arg0: i32, %arg1: i32, %arg2: memref<1x20x20x4xf32, #tpu.memory_space<vmem>>, %arg3: memref<8x100xf32, #tpu.memory_space<vmem>>, %arg4: memref<1x8x256xf32, #tpu.memory_space<vmem>>) attributes {dimension_semantics = [#tpu.dimension_semantics<parallel>, #tpu.dimension_semantics<parallel>], iteration_bounds = array<i64: 2, 1>, scalar_prefetch = 0 : i64, scratch_operands = 0 : i64, tpu.core_type = #tpu.core_type<tc>, window_params = [{transform_indices = @transform_0, window_bounds = array<i64: 1, 20, 20, 4>}, {pipeline_mode = #tpu.pipeline_mode<synchronous>, transform_indices = @transform_1, window_bounds = array<i64: 8, 100>}, {transform_indices = @transform_2, window_bounds = array<i64: 1, 8, 256>}]} {
    %c16_i32 = arith.constant 16 : i32
    %0 = arith.muli %arg1, %c16_i32 : i32
    %1 = tpu.assume_multiple %0, 16 : i32
    %c0_i32 = arith.constant 0 : i32
    %2 = arith.addi %1, %c0_i32 : i32
    %c0 = arith.constant 0 : index
    %3 = arith.index_cast %2 : i32 to index
    %c0_0 = arith.constant 0 : index
    %c0_1 = arith.constant 0 : index
    %4 = vector.load %arg2[%c0, %3, %c0_0, %c0_1] : memref<1x20x20x4xf32, #tpu.memory_space<vmem>>, vector<1x16x20x4xf32>
    %5 = vector.shape_cast %4 : vector<1x16x20x4xf32> to vector<16x20x4xf32>
    %6 = vector.extract_strided_slice %5 {offsets = [0, 0, 0], sizes = [16, 16, 4], strides = [1, 1, 1]} : vector<16x20x4xf32> to vector<16x16x4xf32>
    %7 = vector.shape_cast %6 : vector<16x16x4xf32> to vector<256x4xf32>
    %8 = vector.extract_strided_slice %5 {offsets = [0, 1, 0], sizes = [16, 16, 4], strides = [1, 1, 1]} : vector<16x20x4xf32> to vector<16x16x4xf32>
    %9 = vector.shape_cast %8 : vector<16x16x4xf32> to vector<256x4xf32>
    %10 = vector.extract_strided_slice %5 {offsets = [0, 2, 0], sizes = [16, 16, 4], strides = [1, 1, 1]} : vector<16x20x4xf32> to vector<16x16x4xf32>
    %11 = vector.shape_cast %10 : vector<16x16x4xf32> to vector<256x4xf32>
    %12 = vector.extract_strided_slice %5 {offsets = [0, 3, 0], sizes = [16, 16, 4], strides = [1, 1, 1]} : vector<16x20x4xf32> to vector<16x16x4xf32>
    %13 = vector.shape_cast %12 : vector<16x16x4xf32> to vector<256x4xf32>
    %14 = vector.extract_strided_slice %5 {offsets = [0, 4, 0], sizes = [16, 16, 4], strides = [1, 1, 1]} : vector<16x20x4xf32> to vector<16x16x4xf32>
    %15 = vector.shape_cast %14 : vector<16x16x4xf32> to vector<256x4xf32>
    %c1_i32 = arith.constant 1 : i32
    %16 = arith.addi %1, %c1_i32 : i32
    %c0_2 = arith.constant 0 : index
    %17 = arith.index_cast %16 : i32 to index
    %c0_3 = arith.constant 0 : index
    %c0_4 = arith.constant 0 : index
    %18 = vector.load %arg2[%c0_2, %17, %c0_3, %c0_4] : memref<1x20x20x4xf32, #tpu.memory_space<vmem>>, vector<1x16x20x4xf32>
    %19 = vector.shape_cast %18 : vector<1x16x20x4xf32> to vector<16x20x4xf32>
    %20 = vector.extract_strided_slice %19 {offsets = [0, 0, 0], sizes = [16, 16, 4], strides = [1, 1, 1]} : vector<16x20x4xf32> to vector<16x16x4xf32>
    %21 = vector.shape_cast %20 : vector<16x16x4xf32> to vector<256x4xf32>
    %22 = vector.extract_strided_slice %19 {offsets = [0, 1, 0], sizes = [16, 16, 4], strides = [1, 1, 1]} : vector<16x20x4xf32> to vector<16x16x4xf32>
    %23 = vector.shape_cast %22 : vector<16x16x4xf32> to vector<256x4xf32>
    %24 = vector.extract_strided_slice %19 {offsets = [0, 2, 0], sizes = [16, 16, 4], strides = [1, 1, 1]} : vector<16x20x4xf32> to vector<16x16x4xf32>
    %25 = vector.shape_cast %24 : vector<16x16x4xf32> to vector<256x4xf32>
    %26 = vector.extract_strided_slice %19 {offsets = [0, 3, 0], sizes = [16, 16, 4], strides = [1, 1, 1]} : vector<16x20x4xf32> to vector<16x16x4xf32>
    %27 = vector.shape_cast %26 : vector<16x16x4xf32> to vector<256x4xf32>
    %28 = vector.extract_strided_slice %19 {offsets = [0, 4, 0], sizes = [16, 16, 4], strides = [1, 1, 1]} : vector<16x20x4xf32> to vector<16x16x4xf32>
    %29 = vector.shape_cast %28 : vector<16x16x4xf32> to vector<256x4xf32>
    %c2_i32 = arith.constant 2 : i32
    %30 = arith.addi %1, %c2_i32 : i32
    %c0_5 = arith.constant 0 : index
    %31 = arith.index_cast %30 : i32 to index
    %c0_6 = arith.constant 0 : index
    %c0_7 = arith.constant 0 : index
    %32 = vector.load %arg2[%c0_5, %31, %c0_6, %c0_7] : memref<1x20x20x4xf32, #tpu.memory_space<vmem>>, vector<1x16x20x4xf32>
    %33 = vector.shape_cast %32 : vector<1x16x20x4xf32> to vector<16x20x4xf32>
    %34 = vector.extract_strided_slice %33 {offsets = [0, 0, 0], sizes = [16, 16, 4], strides = [1, 1, 1]} : vector<16x20x4xf32> to vector<16x16x4xf32>
    %35 = vector.shape_cast %34 : vector<16x16x4xf32> to vector<256x4xf32>
    %36 = vector.extract_strided_slice %33 {offsets = [0, 1, 0], sizes = [16, 16, 4], strides = [1, 1, 1]} : vector<16x20x4xf32> to vector<16x16x4xf32>
    %37 = vector.shape_cast %36 : vector<16x16x4xf32> to vector<256x4xf32>
    %38 = vector.extract_strided_slice %33 {offsets = [0, 2, 0], sizes = [16, 16, 4], strides = [1, 1, 1]} : vector<16x20x4xf32> to vector<16x16x4xf32>
    %39 = vector.shape_cast %38 : vector<16x16x4xf32> to vector<256x4xf32>
    %40 = vector.extract_strided_slice %33 {offsets = [0, 3, 0], sizes = [16, 16, 4], strides = [1, 1, 1]} : vector<16x20x4xf32> to vector<16x16x4xf32>
    %41 = vector.shape_cast %40 : vector<16x16x4xf32> to vector<256x4xf32>
    %42 = vector.extract_strided_slice %33 {offsets = [0, 4, 0], sizes = [16, 16, 4], strides = [1, 1, 1]} : vector<16x20x4xf32> to vector<16x16x4xf32>
    %43 = vector.shape_cast %42 : vector<16x16x4xf32> to vector<256x4xf32>
    %c3_i32 = arith.constant 3 : i32
    %44 = arith.addi %1, %c3_i32 : i32
    %c0_8 = arith.constant 0 : index
    %45 = arith.index_cast %44 : i32 to index
    %c0_9 = arith.constant 0 : index
    %c0_10 = arith.constant 0 : index
    %46 = vector.load %arg2[%c0_8, %45, %c0_9, %c0_10] : memref<1x20x20x4xf32, #tpu.memory_space<vmem>>, vector<1x16x20x4xf32>
    %47 = vector.shape_cast %46 : vector<1x16x20x4xf32> to vector<16x20x4xf32>
    %48 = vector.extract_strided_slice %47 {offsets = [0, 0, 0], sizes = [16, 16, 4], strides = [1, 1, 1]} : vector<16x20x4xf32> to vector<16x16x4xf32>
    %49 = vector.shape_cast %48 : vector<16x16x4xf32> to vector<256x4xf32>
    %50 = vector.extract_strided_slice %47 {offsets = [0, 1, 0], sizes = [16, 16, 4], strides = [1, 1, 1]} : vector<16x20x4xf32> to vector<16x16x4xf32>
    %51 = vector.shape_cast %50 : vector<16x16x4xf32> to vector<256x4xf32>
    %52 = vector.extract_strided_slice %47 {offsets = [0, 2, 0], sizes = [16, 16, 4], strides = [1, 1, 1]} : vector<16x20x4xf32> to vector<16x16x4xf32>
    %53 = vector.shape_cast %52 : vector<16x16x4xf32> to vector<256x4xf32>
    %54 = vector.extract_strided_slice %47 {offsets = [0, 3, 0], sizes = [16, 16, 4], strides = [1, 1, 1]} : vector<16x20x4xf32> to vector<16x16x4xf32>
    %55 = vector.shape_cast %54 : vector<16x16x4xf32> to vector<256x4xf32>
    %56 = vector.extract_strided_slice %47 {offsets = [0, 4, 0], sizes = [16, 16, 4], strides = [1, 1, 1]} : vector<16x20x4xf32> to vector<16x16x4xf32>
    %57 = vector.shape_cast %56 : vector<16x16x4xf32> to vector<256x4xf32>
    %c4_i32 = arith.constant 4 : i32
    %58 = arith.addi %1, %c4_i32 : i32
    %c0_11 = arith.constant 0 : index
    %59 = arith.index_cast %58 : i32 to index
    %c0_12 = arith.constant 0 : index
    %c0_13 = arith.constant 0 : index
    %60 = vector.load %arg2[%c0_11, %59, %c0_12, %c0_13] : memref<1x20x20x4xf32, #tpu.memory_space<vmem>>, vector<1x16x20x4xf32>
    %61 = vector.shape_cast %60 : vector<1x16x20x4xf32> to vector<16x20x4xf32>
    %62 = vector.extract_strided_slice %61 {offsets = [0, 0, 0], sizes = [16, 16, 4], strides = [1, 1, 1]} : vector<16x20x4xf32> to vector<16x16x4xf32>
    %63 = vector.shape_cast %62 : vector<16x16x4xf32> to vector<256x4xf32>
    %64 = vector.extract_strided_slice %61 {offsets = [0, 1, 0], sizes = [16, 16, 4], strides = [1, 1, 1]} : vector<16x20x4xf32> to vector<16x16x4xf32>
    %65 = vector.shape_cast %64 : vector<16x16x4xf32> to vector<256x4xf32>
    %66 = vector.extract_strided_slice %61 {offsets = [0, 2, 0], sizes = [16, 16, 4], strides = [1, 1, 1]} : vector<16x20x4xf32> to vector<16x16x4xf32>
    %67 = vector.shape_cast %66 : vector<16x16x4xf32> to vector<256x4xf32>
    %68 = vector.extract_strided_slice %61 {offsets = [0, 3, 0], sizes = [16, 16, 4], strides = [1, 1, 1]} : vector<16x20x4xf32> to vector<16x16x4xf32>
    %69 = vector.shape_cast %68 : vector<16x16x4xf32> to vector<256x4xf32>
    %70 = vector.extract_strided_slice %61 {offsets = [0, 4, 0], sizes = [16, 16, 4], strides = [1, 1, 1]} : vector<16x20x4xf32> to vector<16x16x4xf32>
    %71 = vector.shape_cast %70 : vector<16x16x4xf32> to vector<256x4xf32>
    %72 = tpu.concatenate %7, %9, %11, %13, %15, %21, %23, %25, %27, %29, %35, %37, %39, %41, %43, %49 in 1 : vector<256x4xf32>, vector<256x4xf32>, vector<256x4xf32>, vector<256x4xf32>, vector<256x4xf32>, vector<256x4xf32>, vector<256x4xf32>, vector<256x4xf32>, vector<256x4xf32>, vector<256x4xf32>, vector<256x4xf32>, vector<256x4xf32>, vector<256x4xf32>, vector<256x4xf32>, vector<256x4xf32>, vector<256x4xf32> -> vector<256x64xf32>
    %73 = tpu.concatenate %51, %53, %55, %57, %63, %65, %67, %69, %71 in 1 : vector<256x4xf32>, vector<256x4xf32>, vector<256x4xf32>, vector<256x4xf32>, vector<256x4xf32>, vector<256x4xf32>, vector<256x4xf32>, vector<256x4xf32>, vector<256x4xf32> -> vector<256x36xf32>
    %74 = tpu.concatenate %72, %73 in 1 : vector<256x64xf32>, vector<256x36xf32> -> vector<256x100xf32>
    %c0_14 = arith.constant 0 : index
    %c0_15 = arith.constant 0 : index
    %75 = vector.load %arg3[%c0_14, %c0_15] : memref<8x100xf32, #tpu.memory_space<vmem>>, vector<8x100xf32>
    %cst = arith.constant dense<0.000000e+00> : vector<8x256xf32>
    %76 = tpu.matmul %75, %74, %cst {dimension_numbers = #tpu.dot_dimension_numbers<[1], [1], [0], [0], [0, 0, 1, 0], [], []>} : vector<8x100xf32>, vector<256x100xf32>, vector<8x256xf32> -> vector<8x256xf32>
    %c0_16 = arith.constant 0 : index
    %c0_17 = arith.constant 0 : index
    %c0_18 = arith.constant 0 : index
    %77 = vector.load %arg4[%c0_16, %c0_17, %c0_18] : memref<1x8x256xf32, #tpu.memory_space<vmem>>, vector<1x8x256xf32>
    %78 = vector.shape_cast %77 : vector<1x8x256xf32> to vector<8x256xf32>
    %79 = vector.shape_cast %76 : vector<8x256xf32> to vector<1x8x256xf32>
    tpu.vector_store %arg4[%c0_16, %c0_17, %c0_18], %79 {strides = array<i32>} : memref<1x8x256xf32, #tpu.memory_space<vmem>>, vector<1x8x256xf32>,
    return
  }
  func.func @transform_0(%arg0: i32, %arg1: i32) -> (i32, i32, i32, i32) {
    %c0_i32 = arith.constant 0 : i32
    %c0_i32_0 = arith.constant 0 : i32
    %c0_i32_1 = arith.constant 0 : i32
    %c0_i32_2 = arith.constant 0 : i32
    return %arg0, %c0_i32, %c0_i32_0, %c0_i32_1 : i32, i32, i32, i32
  }
  func.func @transform_1(%arg0: i32, %arg1: i32) -> (i32, i32) {
    %c0_i32 = arith.constant 0 : i32
    %c0_i32_0 = arith.constant 0 : i32
    %c0_i32_1 = arith.constant 0 : i32
    return %c0_i32, %c0_i32_0 : i32, i32
  }
  func.func @transform_2(%arg0: i32, %arg1: i32) -> (i32, i32, i32) {
    %c0_i32 = arith.constant 0 : i32
    %c0_i32_0 = arith.constant 0 : i32
    return %arg0, %c0_i32, %arg1 : i32, i32, i32
  }
}

</mosaic_0001>

<llo_original>
// kernel: tpu_custom_call.1
$region0: #{tpu_custom_call.1}
  #allocation0 [shape = 'u32[]', space=smem, size = 0x4, offset = 0x4, fixed_abs, tag = 'smem constant byte address 0x4 - core index']
  #allocation1 [shape = 'u32[144,128]{1,0:T(1,128)}', space=vmem, size = 0x12000, scoped, tag = 'internal scratch']
  %s0 = inlined_call_operand.vmem [shape: f32[2,20,20,4], index: 0, kind: input, shape index: {}]
  %s1 = inlined_call_operand.vmem [shape: f32[8,100], index: 1, kind: input, shape index: {}]
  %s2 = inlined_call_operand.hbm [shape: f32[2,8,256], index: 2, kind: output, shape index: {}]
  %s3 = sld [smem:[#allocation0]]
  $region41: #{tpu_custom_call.1} parent=0
    _
  %s5 = ssub.s32 1, %s3
  %s6 = scalar_select 0, %s5, %s3
  $region1: #{tpu_custom_call.1} parent=0
    #allocation2 [shape = 'u8[16384]{0}', space=vmem, size = 0x4000, scoped, tag = 'output window, operand 0']
    #allocation3 [shape = 's32[2]{0}', space=sflag, size = 0x8, scoped, tag = 'scoped memory for tpu_custom_call.1']
    %7 = vsyncpa [#allocation3], 0
    %s8 = scalar_lea.sflag [#allocation3], 1
    %9 = vsyncpa %s8, 0
    loop: start=0, step=1, limit=4
    $region2: #{tpu_custom_call.1} parent=1 // loop_pre_header
      _
    $region3: #{tpu_custom_call.1} parent=1 // loop_header
      %s11 = sphi 0, %s15
      %p12 = scmp.ge.s32.totalorder %s11, 4
      %s18 = sphi 0, %s30
      %s19 = sphi 0, %s26
      %s20 = sphi 0, %s18
      %s21 = sphi 0, %s19
      %s22 = sphi 0, %s20
      %s23 = sphi 0, %s21
      %s33 = sphi 0, %s35
      %s36 = sphi 0, %s33
      %s37 = sphi 0, %s36
      %s53 = sphi 0, %s37
      %s57 = sphi 0, %s57
      %s59 = sphi 0, %s57
      %s60 = sphi 0, %s59
      %s74 = sphi 0, %s60
      %s82 = sphi 0, %s84
      %s85 = sphi 0, %s82
      %s86 = sphi 0, %s85
      %s102 = sphi 0, %s86
    $region4: #{tpu_custom_call.1} parent=1 // loop_header_branch
      %14 = sbr.rel (%p12) target = $region8
    $region5: #{tpu_custom_call.1} parent=1 // loop_body
      %s16 = ssub.s32 %s11, 1
      %s17 = ssub.s32 %s11, 2
      %s24 = sadd.s32 1, %s19
      %p25 = scmp.ge.s32.totalorder %s24, 1
      %s26 = scalar_select %p25, 0, %s24
      %s27 = sadd.s32 1, %s18
      %s28 = scalar_select %p25, %s27, %s18
      %p29 = scmp.ge.s32.totalorder %s28, 2
      %s30 = scalar_select %p29, 0, %s28
      %s31 = ssub.s32 %s18, %s30
      %p32 = scmp.eq.s32.totalorder %s31, 0
      %s34 = sadd.s32 %s33, 1
      %s35 = scalar_select %p32, %s33, %s34
      %p38 = pneg %p32
      %p39 = scmp.eq.s32.totalorder %s11, 1
      %p40 = por %p38, %p39
      %p41 = scmp.ne.s32.totalorder %s33, %s36
      %p42 = scmp.eq.s32.totalorder %s11, 0
      %p43 = por %p41, %p42
      %p44 = scmp.ne.s32.totalorder %s33, %s36
      %p45 = scmp.eq.s32.totalorder %s16, 1
      %p46 = por %p44, %p45
      %p47 = scmp.ne.s32.totalorder %s36, %s37
      %p48 = scmp.eq.s32.totalorder %s16, 0
      %p49 = por %p47, %p48
      %p50 = scmp.ne.s32.totalorder %s36, %s37
      %p51 = scmp.eq.s32.totalorder %s17, 1
      %p52 = por %p50, %p51
      %p54 = scmp.ne.s32.totalorder %s37, %s53
      %p55 = scmp.eq.s32.totalorder %s17, 0
      %p56 = por %p54, %p55
      %s58 = sadd.s32 %s57, 1
      %p61 = scmp.eq.s32.totalorder %s11, 1
      %p62 = scmp.ne.s32.totalorder %s57, %s59
      %p63 = scmp.eq.s32.totalorder %s11, 0
      %p64 = por %p62, %p63
      %p65 = scmp.ne.s32.totalorder %s57, %s59
      %p66 = scmp.eq.s32.totalorder %s16, 1
      %p67 = por %p65, %p66
      %p68 = scmp.ne.s32.totalorder %s59, %s60
      %p69 = scmp.eq.s32.totalorder %s16, 0
      %p70 = por %p68, %p69
      %p71 = scmp.ne.s32.totalorder %s59, %s60
      %p72 = scmp.eq.s32.totalorder %s17, 1
      %p73 = por %p71, %p72
      %p75 = scmp.ne.s32.totalorder %s60, %s74
      %p76 = scmp.eq.s32.totalorder %s17, 0
      %p77 = por %p75, %p76
      %s78 = ssub.s32 %s18, %s30
      %s79 = ssub.s32 %s19, %s26
      %s80 = sor.u32 %s78, %s79
      %p81 = scmp.eq.s32.totalorder %s80, 0
      %s83 = sadd.s32 %s82, 1
      %s84 = scalar_select %p81, %s82, %s83
      %p87 = pneg %p81
      %p88 = scmp.eq.s32.totalorder %s11, 1
      %p89 = por %p87, %p88
      %p90 = scmp.ne.s32.totalorder %s82, %s85
      %p91 = scmp.eq.s32.totalorder %s11, 0
      %p92 = por %p90, %p91
      %p93 = scmp.ne.s32.totalorder %s82, %s85
      %p94 = scmp.eq.s32.totalorder %s16, 1
      %p95 = por %p93, %p94
      %p96 = scmp.ne.s32.totalorder %s85, %s86
      %p97 = scmp.eq.s32.totalorder %s16, 0
      %p98 = por %p96, %p97
      %p99 = scmp.ne.s32.totalorder %s85, %s86
      %p100 = scmp.eq.s32.totalorder %s17, 1
      %p101 = por %p99, %p100
      %p103 = scmp.ne.s32.totalorder %s86, %s102
      %p104 = scmp.eq.s32.totalorder %s17, 0
      %p105 = por %p103, %p104
      %p106 = scmp.le.s32.totalorder 1, %s11
      %p107 = scmp.lt.s32.totalorder %s11, 3
      %p108 = pnand %p106, %p107
      %p109 = pneg %p108
      // Predicated region
      $region9: #{tpu_custom_call.1} parent=5 // pred_check
        _
      $region10: #{tpu_custom_call.1} parent=5 // pred_check_branch
        %111 = sbr.rel (%p108) target = $region12
      $region11: #{tpu_custom_call.1} parent=5 // pred_region
        %s112 = ssub.s32 %s11, 1
        // Predicated region
        $region13: #{tpu_custom_call.1} parent=11 // pred_check
          %p113 = pneg %p70
        $region14: #{tpu_custom_call.1} parent=11 // pred_check_branch
          %115 = sbr.rel (%p113) target = $region16
        $region15: #{tpu_custom_call.1} parent=11 // pred_region
          _
        $region16: #{tpu_custom_call.1} parent=11 // pred_fallthru
          _
      $region12: #{tpu_custom_call.1} parent=5 // pred_fallthru
        _
      %p116 = scmp.lt.s32.totalorder %s11, 2
      // Predicated region
      $region17: #{tpu_custom_call.1} parent=5 // pred_check
        %p117 = pneg %p116
      $region18: #{tpu_custom_call.1} parent=5 // pred_check_branch
        %119 = sbr.rel (%p117) target = $region20
      $region19: #{tpu_custom_call.1} parent=5 // pred_region
        // Predicated region
        $region21: #{tpu_custom_call.1} parent=19 // pred_check
          %p120 = pneg %p43
        $region22: #{tpu_custom_call.1} parent=19 // pred_check_branch
          %122 = sbr.rel (%p120) target = $region24
        $region23: #{tpu_custom_call.1} parent=19 // pred_region
          %p123 = scmp.lt.s32.totalorder %s18, 1
          %s124 = scalar_select %p123, %s18, 1
          %s125 = smul.addr %s124, 60
          %s126 = smul.addr %s125, 8
          %s127 = scalar_lea.vmem %s0, %s126
        $region24: #{tpu_custom_call.1} parent=19 // pred_fallthru
          _
      $region20: #{tpu_custom_call.1} parent=5 // pred_fallthru
        _
      %p128 = scmp.le.s32.totalorder 1, %s11
      %p129 = scmp.lt.s32.totalorder %s11, 3
      %p130 = pnand %p128, %p129
      %p131 = pneg %p130
      // Predicated region
      $region25: #{tpu_custom_call.1} parent=5 // pred_check
        _
      $region26: #{tpu_custom_call.1} parent=5 // pred_check_branch
        %133 = sbr.rel (%p130) target = $region28
      $region27: #{tpu_custom_call.1} parent=5 // pred_region
        %s134 = ssub.s32 %s11, 1
        %p135 = scmp.lt.s32.totalorder %s20, 1
        %s136 = scalar_select %p135, %s20, 1
        %s137 = smul.addr %s136, 60
        %s138 = smul.addr %s137, 8
        %s139 = scalar_lea.vmem %s0, %s138
        %p140 = pneg %p49
        %p141 = pneg %p46
        %p142 = pneg %p70
        %p143 = pneg %p67
        %p144 = pneg %p98
        %p145 = pneg %p95
        %s146 = sand.u32 %s85, 1
        %s147 = scalar_lea.sflag [#allocation3], %s146
        %s148 = sand.u32 %s85, 1
        %s149 = smul.addr %s148, 16
        %s150 = scalar_lea.vmem [#allocation2], %s149
        %p151 = scmp.lt.s32.totalorder %s20, 1
        %s152 = scalar_select %p151, %s20, 1
        %s153 = smul.addr %s152, 60
        %s154 = smul.addr %s153, 8
        %s155 = scalar_lea.vmem %s0, %s154
        %s156 = smul.u32 2, %s21
        %s157 = smul.u32 %s21, 16
        %s158 = smul.u32 %s157, 24
        %s159 = scalar_lea.vmem %s155, %s158
        %v160 = vld [vmem:[%s159] sm:$0xff]
        %v161 = vld [vmem:[%s159 + $0x8] sm:$0xff]
        %v162 = vld [vmem:[%s159 + $0x10] sm:$0xf]
        %v163 = vld [vmem:[%s159 + $0x18] sm:$0xff]
        %v164 = vld [vmem:[%s159 + $0x20] sm:$0xff]
        %v165 = vld [vmem:[%s159 + $0x28] sm:$0xf]
        %v166 = vld [vmem:[%s159 + $0x30] sm:$0xff]
        %v167 = vld [vmem:[%s159 + $0x38] sm:$0xff]
        %v168 = vld [vmem:[%s159 + $0x40] sm:$0xf]
        %v169 = vld [vmem:[%s159 + $0x48] sm:$0xff]
        %v170 = vld [vmem:[%s159 + $0x50] sm:$0xff]
        %v171 = vld [vmem:[%s159 + $0x58] sm:$0xf]
        %v172 = vld [vmem:[%s159 + $0x60] sm:$0xff]
        %v173 = vld [vmem:[%s159 + $0x68] sm:$0xff]
        %v174 = vld [vmem:[%s159 + $0x70] sm:$0xf]
        %v175 = vld [vmem:[%s159 + $0x78] sm:$0xff]
        %v176 = vld [vmem:[%s159 + $0x80] sm:$0xff]
        %v177 = vld [vmem:[%s159 + $0x88] sm:$0xf]
        %v178 = vld [vmem:[%s159 + $0x90] sm:$0xff]
        %v179 = vld [vmem:[%s159 + $0x98] sm:$0xff]
        %v180 = vld [vmem:[%s159 + $0xa0] sm:$0xf]
        %v181 = vld [vmem:[%s159 + $0xa8] sm:$0xff]
        %v182 = vld [vmem:[%s159 + $0xb0] sm:$0xff]
        %v183 = vld [vmem:[%s159 + $0xb8] sm:$0xf]
        %v184 = vld [vmem:[%s159 + $0xc0] sm:$0xff]
        %v185 = vld [vmem:[%s159 + $0xc8] sm:$0xff]
        %v186 = vld [vmem:[%s159 + $0xd0] sm:$0xf]
        %v187 = vld [vmem:[%s159 + $0xd8] sm:$0xff]
        %v188 = vld [vmem:[%s159 + $0xe0] sm:$0xff]
        %v189 = vld [vmem:[%s159 + $0xe8] sm:$0xf]
        %v190 = vld [vmem:[%s159 + $0xf0] sm:$0xff]
        %v191 = vld [vmem:[%s159 + $0xf8] sm:$0xff]
        %v192 = vld [vmem:[%s159 + $0x100] sm:$0xf]
        %v193 = vld [vmem:[%s159 + $0x108] sm:$0xff]
        %v194 = vld [vmem:[%s159 + $0x110] sm:$0xff]
        %v195 = vld [vmem:[%s159 + $0x118] sm:$0xf]
        %v196 = vld [vmem:[%s159 + $0x120] sm:$0xff]
        %v197 = vld [vmem:[%s159 + $0x128] sm:$0xff]
        %v198 = vld [vmem:[%s159 + $0x130] sm:$0xf]
        %v199 = vld [vmem:[%s159 + $0x138] sm:$0xff]
        %v200 = vld [vmem:[%s159 + $0x140] sm:$0xff]
        %v201 = vld [vmem:[%s159 + $0x148] sm:$0xf]
        %v202 = vld [vmem:[%s159 + $0x150] sm:$0xff]
        %v203 = vld [vmem:[%s159 + $0x158] sm:$0xff]
        %v204 = vld [vmem:[%s159 + $0x160] sm:$0xf]
        %v205 = vld [vmem:[%s159 + $0x168] sm:$0xff]
        %v206 = vld [vmem:[%s159 + $0x170] sm:$0xff]
        %v207 = vld [vmem:[%s159 + $0x178] sm:$0xf]
        %vm256 = vcmask 1046528
        %v257 = vrot.slane %v160, 1
        %v258 = vrot.slane %v161, 1
        %v259 = vsel %vm256, %v257, %v258
        %v260 = vrot.slane %v162, 1
        %v261 = vsel %vm256, %v258, %v260
        %v262 = vrot.slane %v163, 1
        %v263 = vrot.slane %v164, 1
        %v264 = vsel %vm256, %v262, %v263
        %v265 = vrot.slane %v165, 1
        %v266 = vsel %vm256, %v263, %v265
        %v267 = vrot.slane %v166, 1
        %v268 = vrot.slane %v167, 1
        %v269 = vsel %vm256, %v267, %v268
        %v270 = vrot.slane %v168, 1
        %v271 = vsel %vm256, %v268, %v270
        %v272 = vrot.slane %v169, 1
        %v273 = vrot.slane %v170, 1
        %v274 = vsel %vm256, %v272, %v273
        %v275 = vrot.slane %v171, 1
        %v276 = vsel %vm256, %v273, %v275
        %v277 = vrot.slane %v172, 1
        %v278 = vrot.slane %v173, 1
        %v279 = vsel %vm256, %v277, %v278
        %v280 = vrot.slane %v174, 1
        %v281 = vsel %vm256, %v278, %v280
        %v282 = vrot.slane %v175, 1
        %v283 = vrot.slane %v176, 1
        %v284 = vsel %vm256, %v282, %v283
        %v285 = vrot.slane %v177, 1
        %v286 = vsel %vm256, %v283, %v285
        %v287 = vrot.slane %v178, 1
        %v288 = vrot.slane %v179, 1
        %v289 = vsel %vm256, %v287, %v288
        %v290 = vrot.slane %v180, 1
        %v291 = vsel %vm256, %v288, %v290
        %v292 = vrot.slane %v181, 1
        %v293 = vrot.slane %v182, 1
        %v294 = vsel %vm256, %v292, %v293
        %v295 = vrot.slane %v183, 1
        %v296 = vsel %vm256, %v293, %v295
        %v297 = vrot.slane %v184, 1
        %v298 = vrot.slane %v185, 1
        %v299 = vsel %vm256, %v297, %v298
        %v300 = vrot.slane %v186, 1
        %v301 = vsel %vm256, %v298, %v300
        %v302 = vrot.slane %v187, 1
        %v303 = vrot.slane %v188, 1
        %v304 = vsel %vm256, %v302, %v303
        %v305 = vrot.slane %v189, 1
        %v306 = vsel %vm256, %v303, %v305
        %v307 = vrot.slane %v190, 1
        %v308 = vrot.slane %v191, 1
        %v309 = vsel %vm256, %v307, %v308
        %v310 = vrot.slane %v192, 1
        %v311 = vsel %vm256, %v308, %v310
        %v312 = vrot.slane %v193, 1
        %v313 = vrot.slane %v194, 1
        %v314 = vsel %vm256, %v312, %v313
        %v315 = vrot.slane %v195, 1
        %v316 = vsel %vm256, %v313, %v315
        %v317 = vrot.slane %v196, 1
        %v318 = vrot.slane %v197, 1
        %v319 = vsel %vm256, %v317, %v318
        %v320 = vrot.slane %v198, 1
        %v321 = vsel %vm256, %v318, %v320
        %v322 = vrot.slane %v199, 1
        %v323 = vrot.slane %v200, 1
        %v324 = vsel %vm256, %v322, %v323
        %v325 = vrot.slane %v201, 1
        %v326 = vsel %vm256, %v323, %v325
        %v327 = vrot.slane %v202, 1
        %v328 = vrot.slane %v203, 1
        %v329 = vsel %vm256, %v327, %v328
        %v330 = vrot.slane %v204, 1
        %v331 = vsel %vm256, %v328, %v330
        %v332 = vrot.slane %v205, 1
        %v333 = vrot.slane %v206, 1
        %v334 = vsel %vm256, %v332, %v333
        %v335 = vrot.slane %v207, 1
        %v336 = vsel %vm256, %v333, %v335
        %vm337 = vcmask 1045504
        %v338 = vrot.slane %v160, 2
        %v339 = vrot.slane %v161, 2
        %v340 = vsel %vm337, %v338, %v339
        %v341 = vrot.slane %v162, 2
        %v342 = vsel %vm337, %v339, %v341
        %v343 = vrot.slane %v163, 2
        %v344 = vrot.slane %v164, 2
        %v345 = vsel %vm337, %v343, %v344
        %v346 = vrot.slane %v165, 2
        %v347 = vsel %vm337, %v344, %v346
        %v348 = vrot.slane %v166, 2
        %v349 = vrot.slane %v167, 2
        %v350 = vsel %vm337, %v348, %v349
        %v351 = vrot.slane %v168, 2
        %v352 = vsel %vm337, %v349, %v351
        %v353 = vrot.slane %v169, 2
        %v354 = vrot.slane %v170, 2
        %v355 = vsel %vm337, %v353, %v354
        %v356 = vrot.slane %v171, 2
        %v357 = vsel %vm337, %v354, %v356
        %v358 = vrot.slane %v172, 2
        %v359 = vrot.slane %v173, 2
        %v360 = vsel %vm337, %v358, %v359
        %v361 = vrot.slane %v174, 2
        %v362 = vsel %vm337, %v359, %v361
        %v363 = vrot.slane %v175, 2
        %v364 = vrot.slane %v176, 2
        %v365 = vsel %vm337, %v363, %v364
        %v366 = vrot.slane %v177, 2
        %v367 = vsel %vm337, %v364, %v366
        %v368 = vrot.slane %v178, 2
        %v369 = vrot.slane %v179, 2
        %v370 = vsel %vm337, %v368, %v369
        %v371 = vrot.slane %v180, 2
        %v372 = vsel %vm337, %v369, %v371
        %v373 = vrot.slane %v181, 2
        %v374 = vrot.slane %v182, 2
        %v375 = vsel %vm337, %v373, %v374
        %v376 = vrot.slane %v183, 2
        %v377 = vsel %vm337, %v374, %v376
        %v378 = vrot.slane %v184, 2
        %v379 = vrot.slane %v185, 2
        %v380 = vsel %vm337, %v378, %v379
        %v381 = vrot.slane %v186, 2
        %v382 = vsel %vm337, %v379, %v381
        %v383 = vrot.slane %v187, 2
        %v384 = vrot.slane %v188, 2
        %v385 = vsel %vm337, %v383, %v384
        %v386 = vrot.slane %v189, 2
        %v387 = vsel %vm337, %v384, %v386
        %v388 = vrot.slane %v190, 2
        %v389 = vrot.slane %v191, 2
        %v390 = vsel %vm337, %v388, %v389
        %v391 = vrot.slane %v192, 2
        %v392 = vsel %vm337, %v389, %v391
        %v393 = vrot.slane %v193, 2
        %v394 = vrot.slane %v194, 2
        %v395 = vsel %vm337, %v393, %v394
        %v396 = vrot.slane %v195, 2
        %v397 = vsel %vm337, %v394, %v396
        %v398 = vrot.slane %v196, 2
        %v399 = vrot.slane %v197, 2
        %v400 = vsel %vm337, %v398, %v399
        %v401 = vrot.slane %v198, 2
        %v402 = vsel %vm337, %v399, %v401
        %v403 = vrot.slane %v199, 2
        %v404 = vrot.slane %v200, 2
        %v405 = vsel %vm337, %v403, %v404
        %v406 = vrot.slane %v201, 2
        %v407 = vsel %vm337, %v404, %v406
        %v408 = vrot.slane %v202, 2
        %v409 = vrot.slane %v203, 2
        %v410 = vsel %vm337, %v408, %v409
        %v411 = vrot.slane %v204, 2
        %v412 = vsel %vm337, %v409, %v411
        %v413 = vrot.slane %v205, 2
        %v414 = vrot.slane %v206, 2
        %v415 = vsel %vm337, %v413, %v414
        %v416 = vrot.slane %v207, 2
        %v417 = vsel %vm337, %v414, %v416
        %vm418 = vcmask 1044480
        %v419 = vrot.slane %v160, 3
        %v420 = vrot.slane %v161, 3
        %v421 = vsel %vm418, %v419, %v420
        %v422 = vrot.slane %v162, 3
        %v423 = vsel %vm418, %v420, %v422
        %v424 = vrot.slane %v163, 3
        %v425 = vrot.slane %v164, 3
        %v426 = vsel %vm418, %v424, %v425
        %v427 = vrot.slane %v165, 3
        %v428 = vsel %vm418, %v425, %v427
        %v429 = vrot.slane %v166, 3
        %v430 = vrot.slane %v167, 3
        %v431 = vsel %vm418, %v429, %v430
        %v432 = vrot.slane %v168, 3
        %v433 = vsel %vm418, %v430, %v432
        %v434 = vrot.slane %v169, 3
        %v435 = vrot.slane %v170, 3
        %v436 = vsel %vm418, %v434, %v435
        %v437 = vrot.slane %v171, 3
        %v438 = vsel %vm418, %v435, %v437
        %v439 = vrot.slane %v172, 3
        %v440 = vrot.slane %v173, 3
        %v441 = vsel %vm418, %v439, %v440
        %v442 = vrot.slane %v174, 3
        %v443 = vsel %vm418, %v440, %v442
        %v444 = vrot.slane %v175, 3
        %v445 = vrot.slane %v176, 3
        %v446 = vsel %vm418, %v444, %v445
        %v447 = vrot.slane %v177, 3
        %v448 = vsel %vm418, %v445, %v447
        %v449 = vrot.slane %v178, 3
        %v450 = vrot.slane %v179, 3
        %v451 = vsel %vm418, %v449, %v450
        %v452 = vrot.slane %v180, 3
        %v453 = vsel %vm418, %v450, %v452
        %v454 = vrot.slane %v181, 3
        %v455 = vrot.slane %v182, 3
        %v456 = vsel %vm418, %v454, %v455
        %v457 = vrot.slane %v183, 3
        %v458 = vsel %vm418, %v455, %v457
        %v459 = vrot.slane %v184, 3
        %v460 = vrot.slane %v185, 3
        %v461 = vsel %vm418, %v459, %v460
        %v462 = vrot.slane %v186, 3
        %v463 = vsel %vm418, %v460, %v462
        %v464 = vrot.slane %v187, 3
        %v465 = vrot.slane %v188, 3
        %v466 = vsel %vm418, %v464, %v465
        %v467 = vrot.slane %v189, 3
        %v468 = vsel %vm418, %v465, %v467
        %v469 = vrot.slane %v190, 3
        %v470 = vrot.slane %v191, 3
        %v471 = vsel %vm418, %v469, %v470
        %v472 = vrot.slane %v192, 3
        %v473 = vsel %vm418, %v470, %v472
        %v474 = vrot.slane %v193, 3
        %v475 = vrot.slane %v194, 3
        %v476 = vsel %vm418, %v474, %v475
        %v477 = vrot.slane %v195, 3
        %v478 = vsel %vm418, %v475, %v477
        %v479 = vrot.slane %v196, 3
        %v480 = vrot.slane %v197, 3
        %v481 = vsel %vm418, %v479, %v480
        %v482 = vrot.slane %v198, 3
        %v483 = vsel %vm418, %v480, %v482
        %v484 = vrot.slane %v199, 3
        %v485 = vrot.slane %v200, 3
        %v486 = vsel %vm418, %v484, %v485
        %v487 = vrot.slane %v201, 3
        %v488 = vsel %vm418, %v485, %v487
        %v489 = vrot.slane %v202, 3
        %v490 = vrot.slane %v203, 3
        %v491 = vsel %vm418, %v489, %v490
        %v492 = vrot.slane %v204, 3
        %v493 = vsel %vm418, %v490, %v492
        %v494 = vrot.slane %v205, 3
        %v495 = vrot.slane %v206, 3
        %v496 = vsel %vm418, %v494, %v495
        %v497 = vrot.slane %v207, 3
        %v498 = vsel %vm418, %v495, %v497
        %vm499 = vcmask 1043456
        %v500 = vrot.slane %v160, 4
        %v501 = vrot.slane %v161, 4
        %v502 = vsel %vm499, %v500, %v501
        %v503 = vrot.slane %v162, 4
        %v504 = vsel %vm499, %v501, %v503
        %v505 = vrot.slane %v163, 4
        %v506 = vrot.slane %v164, 4
        %v507 = vsel %vm499, %v505, %v506
        %v508 = vrot.slane %v165, 4
        %v509 = vsel %vm499, %v506, %v508
        %v510 = vrot.slane %v166, 4
        %v511 = vrot.slane %v167, 4
        %v512 = vsel %vm499, %v510, %v511
        %v513 = vrot.slane %v168, 4
        %v514 = vsel %vm499, %v511, %v513
        %v515 = vrot.slane %v169, 4
        %v516 = vrot.slane %v170, 4
        %v517 = vsel %vm499, %v515, %v516
        %v518 = vrot.slane %v171, 4
        %v519 = vsel %vm499, %v516, %v518
        %v520 = vrot.slane %v172, 4
        %v521 = vrot.slane %v173, 4
        %v522 = vsel %vm499, %v520, %v521
        %v523 = vrot.slane %v174, 4
        %v524 = vsel %vm499, %v521, %v523
        %v525 = vrot.slane %v175, 4
        %v526 = vrot.slane %v176, 4
        %v527 = vsel %vm499, %v525, %v526
        %v528 = vrot.slane %v177, 4
        %v529 = vsel %vm499, %v526, %v528
        %v530 = vrot.slane %v178, 4
        %v531 = vrot.slane %v179, 4
        %v532 = vsel %vm499, %v530, %v531
        %v533 = vrot.slane %v180, 4
        %v534 = vsel %vm499, %v531, %v533
        %v535 = vrot.slane %v181, 4
        %v536 = vrot.slane %v182, 4
        %v537 = vsel %vm499, %v535, %v536
        %v538 = vrot.slane %v183, 4
        %v539 = vsel %vm499, %v536, %v538
        %v540 = vrot.slane %v184, 4
        %v541 = vrot.slane %v185, 4
        %v542 = vsel %vm499, %v540, %v541
        %v543 = vrot.slane %v186, 4
        %v544 = vsel %vm499, %v541, %v543
        %v545 = vrot.slane %v187, 4
        %v546 = vrot.slane %v188, 4
        %v547 = vsel %vm499, %v545, %v546
        %v548 = vrot.slane %v189, 4
        %v549 = vsel %vm499, %v546, %v548
        %v550 = vrot.slane %v190, 4
        %v551 = vrot.slane %v191, 4
        %v552 = vsel %vm499, %v550, %v551
        %v553 = vrot.slane %v192, 4
        %v554 = vsel %vm499, %v551, %v553
        %v555 = vrot.slane %v193, 4
        %v556 = vrot.slane %v194, 4
        %v557 = vsel %vm499, %v555, %v556
        %v558 = vrot.slane %v195, 4
        %v559 = vsel %vm499, %v556, %v558
        %v560 = vrot.slane %v196, 4
        %v561 = vrot.slane %v197, 4
        %v562 = vsel %vm499, %v560, %v561
        %v563 = vrot.slane %v198, 4
        %v564 = vsel %vm499, %v561, %v563
        %v565 = vrot.slane %v199, 4
        %v566 = vrot.slane %v200, 4
        %v567 = vsel %vm499, %v565, %v566
        %v568 = vrot.slane %v201, 4
        %v569 = vsel %vm499, %v566, %v568
        %v570 = vrot.slane %v202, 4
        %v571 = vrot.slane %v203, 4
        %v572 = vsel %vm499, %v570, %v571
        %v573 = vrot.slane %v204, 4
        %v574 = vsel %vm499, %v571, %v573
        %v575 = vrot.slane %v205, 4
        %v576 = vrot.slane %v206, 4
        %v577 = vsel %vm499, %v575, %v576
        %v578 = vrot.slane %v207, 4
        %v579 = vsel %vm499, %v576, %v578
        %s580 = sadd.s32 %s157, 1
        %s581 = smul.u32 %s580, 24
        %s582 = scalar_lea.vmem %s155, %s581
        %v583 = vld [vmem:[%s582] sm:$0xff]
        %v584 = vld [vmem:[%s582 + $0x8] sm:$0xff]
        %v585 = vld [vmem:[%s582 + $0x10] sm:$0xf]
        %v586 = vld [vmem:[%s582 + $0x18] sm:$0xff]
        %v587 = vld [vmem:[%s582 + $0x20] sm:$0xff]
        %v588 = vld [vmem:[%s582 + $0x28] sm:$0xf]
        %v589 = vld [vmem:[%s582 + $0x30] sm:$0xff]
        %v590 = vld [vmem:[%s582 + $0x38] sm:$0xff]
        %v591 = vld [vmem:[%s582 + $0x40] sm:$0xf]
        %v592 = vld [vmem:[%s582 + $0x48] sm:$0xff]
        %v593 = vld [vmem:[%s582 + $0x50] sm:$0xff]
        %v594 = vld [vmem:[%s582 + $0x58] sm:$0xf]
        %v595 = vld [vmem:[%s582 + $0x60] sm:$0xff]
        %v596 = vld [vmem:[%s582 + $0x68] sm:$0xff]
        %v597 = vld [vmem:[%s582 + $0x70] sm:$0xf]
        %v598 = vld [vmem:[%s582 + $0x78] sm:$0xff]
        %v599 = vld [vmem:[%s582 + $0x80] sm:$0xff]
        %v600 = vld [vmem:[%s582 + $0x88] sm:$0xf]
        %v601 = vld [vmem:[%s582 + $0x90] sm:$0xff]
        %v602 = vld [vmem:[%s582 + $0x98] sm:$0xff]
        %v603 = vld [vmem:[%s582 + $0xa0] sm:$0xf]
        %v604 = vld [vmem:[%s582 + $0xa8] sm:$0xff]
        %v605 = vld [vmem:[%s582 + $0xb0] sm:$0xff]
        %v606 = vld [vmem:[%s582 + $0xb8] sm:$0xf]
        %v607 = vld [vmem:[%s582 + $0xc0] sm:$0xff]
        %v608 = vld [vmem:[%s582 + $0xc8] sm:$0xff]
        %v609 = vld [vmem:[%s582 + $0xd0] sm:$0xf]
        %v610 = vld [vmem:[%s582 + $0xd8] sm:$0xff]
        %v611 = vld [vmem:[%s582 + $0xe0] sm:$0xff]
        %v612 = vld [vmem:[%s582 + $0xe8] sm:$0xf]
        %v613 = vld [vmem:[%s582 + $0xf0] sm:$0xff]
        %v614 = vld [vmem:[%s582 + $0xf8] sm:$0xff]
        %v615 = vld [vmem:[%s582 + $0x100] sm:$0xf]
        %v616 = vld [vmem:[%s582 + $0x108] sm:$0xff]
        %v617 = vld [vmem:[%s582 + $0x110] sm:$0xff]
        %v618 = vld [vmem:[%s582 + $0x118] sm:$0xf]
        %v619 = vld [vmem:[%s582 + $0x120] sm:$0xff]
        %v620 = vld [vmem:[%s582 + $0x128] sm:$0xff]
        %v621 = vld [vmem:[%s582 + $0x130] sm:$0xf]
        %v622 = vld [vmem:[%s582 + $0x138] sm:$0xff]
        %v623 = vld [vmem:[%s582 + $0x140] sm:$0xff]
        %v624 = vld [vmem:[%s582 + $0x148] sm:$0xf]
        %v625 = vld [vmem:[%s582 + $0x150] sm:$0xff]
        %v626 = vld [vmem:[%s582 + $0x158] sm:$0xff]
        %v627 = vld [vmem:[%s582 + $0x160] sm:$0xf]
        %v628 = vld [vmem:[%s582 + $0x168] sm:$0xff]
        %v629 = vld [vmem:[%s582 + $0x170] sm:$0xff]
        %v630 = vld [vmem:[%s582 + $0x178] sm:$0xf]
        %v679 = vrot.slane %v583, 1
        %v680 = vrot.slane %v584, 1
        %v681 = vsel %vm256, %v679, %v680
        %v682 = vrot.slane %v585, 1
        %v683 = vsel %vm256, %v680, %v682
        %v684 = vrot.slane %v586, 1
        %v685 = vrot.slane %v587, 1
        %v686 = vsel %vm256, %v684, %v685
        %v687 = vrot.slane %v588, 1
        %v688 = vsel %vm256, %v685, %v687
        %v689 = vrot.slane %v589, 1
        %v690 = vrot.slane %v590, 1
        %v691 = vsel %vm256, %v689, %v690
        %v692 = vrot.slane %v591, 1
        %v693 = vsel %vm256, %v690, %v692
        %v694 = vrot.slane %v592, 1
        %v695 = vrot.slane %v593, 1
        %v696 = vsel %vm256, %v694, %v695
        %v697 = vrot.slane %v594, 1
        %v698 = vsel %vm256, %v695, %v697
        %v699 = vrot.slane %v595, 1
        %v700 = vrot.slane %v596, 1
        %v701 = vsel %vm256, %v699, %v700
        %v702 = vrot.slane %v597, 1
        %v703 = vsel %vm256, %v700, %v702
        %v704 = vrot.slane %v598, 1
        %v705 = vrot.slane %v599, 1
        %v706 = vsel %vm256, %v704, %v705
        %v707 = vrot.slane %v600, 1
        %v708 = vsel %vm256, %v705, %v707
        %v709 = vrot.slane %v601, 1
        %v710 = vrot.slane %v602, 1
        %v711 = vsel %vm256, %v709, %v710
        %v712 = vrot.slane %v603, 1
        %v713 = vsel %vm256, %v710, %v712
        %v714 = vrot.slane %v604, 1
        %v715 = vrot.slane %v605, 1
        %v716 = vsel %vm256, %v714, %v715
        %v717 = vrot.slane %v606, 1
        %v718 = vsel %vm256, %v715, %v717
        %v719 = vrot.slane %v607, 1
        %v720 = vrot.slane %v608, 1
        %v721 = vsel %vm256, %v719, %v720
        %v722 = vrot.slane %v609, 1
        %v723 = vsel %vm256, %v720, %v722
        %v724 = vrot.slane %v610, 1
        %v725 = vrot.slane %v611, 1
        %v726 = vsel %vm256, %v724, %v725
        %v727 = vrot.slane %v612, 1
        %v728 = vsel %vm256, %v725, %v727
        %v729 = vrot.slane %v613, 1
        %v730 = vrot.slane %v614, 1
        %v731 = vsel %vm256, %v729, %v730
        %v732 = vrot.slane %v615, 1
        %v733 = vsel %vm256, %v730, %v732
        %v734 = vrot.slane %v616, 1
        %v735 = vrot.slane %v617, 1
        %v736 = vsel %vm256, %v734, %v735
        %v737 = vrot.slane %v618, 1
        %v738 = vsel %vm256, %v735, %v737
        %v739 = vrot.slane %v619, 1
        %v740 = vrot.slane %v620, 1
        %v741 = vsel %vm256, %v739, %v740
        %v742 = vrot.slane %v621, 1
        %v743 = vsel %vm256, %v740, %v742
        %v744 = vrot.slane %v622, 1
        %v745 = vrot.slane %v623, 1
        %v746 = vsel %vm256, %v744, %v745
        %v747 = vrot.slane %v624, 1
        %v748 = vsel %vm256, %v745, %v747
        %v749 = vrot.slane %v625, 1
        %v750 = vrot.slane %v626, 1
        %v751 = vsel %vm256, %v749, %v750
        %v752 = vrot.slane %v627, 1
        %v753 = vsel %vm256, %v750, %v752
        %v754 = vrot.slane %v628, 1
        %v755 = vrot.slane %v629, 1
        %v756 = vsel %vm256, %v754, %v755
        %v757 = vrot.slane %v630, 1
        %v758 = vsel %vm256, %v755, %v757
        %v759 = vrot.slane %v583, 2
        %v760 = vrot.slane %v584, 2
        %v761 = vsel %vm337, %v759, %v760
        %v762 = vrot.slane %v585, 2
        %v763 = vsel %vm337, %v760, %v762
        %v764 = vrot.slane %v586, 2
        %v765 = vrot.slane %v587, 2
        %v766 = vsel %vm337, %v764, %v765
        %v767 = vrot.slane %v588, 2
        %v768 = vsel %vm337, %v765, %v767
        %v769 = vrot.slane %v589, 2
        %v770 = vrot.slane %v590, 2
        %v771 = vsel %vm337, %v769, %v770
        %v772 = vrot.slane %v591, 2
        %v773 = vsel %vm337, %v770, %v772
        %v774 = vrot.slane %v592, 2
        %v775 = vrot.slane %v593, 2
        %v776 = vsel %vm337, %v774, %v775
        %v777 = vrot.slane %v594, 2
        %v778 = vsel %vm337, %v775, %v777
        %v779 = vrot.slane %v595, 2
        %v780 = vrot.slane %v596, 2
        %v781 = vsel %vm337, %v779, %v780
        %v782 = vrot.slane %v597, 2
        %v783 = vsel %vm337, %v780, %v782
        %v784 = vrot.slane %v598, 2
        %v785 = vrot.slane %v599, 2
        %v786 = vsel %vm337, %v784, %v785
        %v787 = vrot.slane %v600, 2
        %v788 = vsel %vm337, %v785, %v787
        %v789 = vrot.slane %v601, 2
        %v790 = vrot.slane %v602, 2
        %v791 = vsel %vm337, %v789, %v790
        %v792 = vrot.slane %v603, 2
        %v793 = vsel %vm337, %v790, %v792
        %v794 = vrot.slane %v604, 2
        %v795 = vrot.slane %v605, 2
        %v796 = vsel %vm337, %v794, %v795
        %v797 = vrot.slane %v606, 2
        %v798 = vsel %vm337, %v795, %v797
        %v799 = vrot.slane %v607, 2
        %v800 = vrot.slane %v608, 2
        %v801 = vsel %vm337, %v799, %v800
        %v802 = vrot.slane %v609, 2
        %v803 = vsel %vm337, %v800, %v802
        %v804 = vrot.slane %v610, 2
        %v805 = vrot.slane %v611, 2
        %v806 = vsel %vm337, %v804, %v805
        %v807 = vrot.slane %v612, 2
        %v808 = vsel %vm337, %v805, %v807
        %v809 = vrot.slane %v613, 2
        %v810 = vrot.slane %v614, 2
        %v811 = vsel %vm337, %v809, %v810
        %v812 = vrot.slane %v615, 2
        %v813 = vsel %vm337, %v810, %v812
        %v814 = vrot.slane %v616, 2
        %v815 = vrot.slane %v617, 2
        %v816 = vsel %vm337, %v814, %v815
        %v817 = vrot.slane %v618, 2
        %v818 = vsel %vm337, %v815, %v817
        %v819 = vrot.slane %v619, 2
        %v820 = vrot.slane %v620, 2
        %v821 = vsel %vm337, %v819, %v820
        %v822 = vrot.slane %v621, 2
        %v823 = vsel %vm337, %v820, %v822
        %v824 = vrot.slane %v622, 2
        %v825 = vrot.slane %v623, 2
        %v826 = vsel %vm337, %v824, %v825
        %v827 = vrot.slane %v624, 2
        %v828 = vsel %vm337, %v825, %v827
        %v829 = vrot.slane %v625, 2
        %v830 = vrot.slane %v626, 2
        %v831 = vsel %vm337, %v829, %v830
        %v832 = vrot.slane %v627, 2
        %v833 = vsel %vm337, %v830, %v832
        %v834 = vrot.slane %v628, 2
        %v835 = vrot.slane %v629, 2
        %v836 = vsel %vm337, %v834, %v835
        %v837 = vrot.slane %v630, 2
        %v838 = vsel %vm337, %v835, %v837
        %v839 = vrot.slane %v583, 3
        %v840 = vrot.slane %v584, 3
        %v841 = vsel %vm418, %v839, %v840
        %v842 = vrot.slane %v585, 3
        %v843 = vsel %vm418, %v840, %v842
        %v844 = vrot.slane %v586, 3
        %v845 = vrot.slane %v587, 3
        %v846 = vsel %vm418, %v844, %v845
        %v847 = vrot.slane %v588, 3
        %v848 = vsel %vm418, %v845, %v847
        %v849 = vrot.slane %v589, 3
        %v850 = vrot.slane %v590, 3
        %v851 = vsel %vm418, %v849, %v850
        %v852 = vrot.slane %v591, 3
        %v853 = vsel %vm418, %v850, %v852
        %v854 = vrot.slane %v592, 3
        %v855 = vrot.slane %v593, 3
        %v856 = vsel %vm418, %v854, %v855
        %v857 = vrot.slane %v594, 3
        %v858 = vsel %vm418, %v855, %v857
        %v859 = vrot.slane %v595, 3
        %v860 = vrot.slane %v596, 3
        %v861 = vsel %vm418, %v859, %v860
        %v862 = vrot.slane %v597, 3
        %v863 = vsel %vm418, %v860, %v862
        %v864 = vrot.slane %v598, 3
        %v865 = vrot.slane %v599, 3
        %v866 = vsel %vm418, %v864, %v865
        %v867 = vrot.slane %v600, 3
        %v868 = vsel %vm418, %v865, %v867
        %v869 = vrot.slane %v601, 3
        %v870 = vrot.slane %v602, 3
        %v871 = vsel %vm418, %v869, %v870
        %v872 = vrot.slane %v603, 3
        %v873 = vsel %vm418, %v870, %v872
        %v874 = vrot.slane %v604, 3
        %v875 = vrot.slane %v605, 3
        %v876 = vsel %vm418, %v874, %v875
        %v877 = vrot.slane %v606, 3
        %v878 = vsel %vm418, %v875, %v877
        %v879 = vrot.slane %v607, 3
        %v880 = vrot.slane %v608, 3
        %v881 = vsel %vm418, %v879, %v880
        %v882 = vrot.slane %v609, 3
        %v883 = vsel %vm418, %v880, %v882
        %v884 = vrot.slane %v610, 3
        %v885 = vrot.slane %v611, 3
        %v886 = vsel %vm418, %v884, %v885
        %v887 = vrot.slane %v612, 3
        %v888 = vsel %vm418, %v885, %v887
        %v889 = vrot.slane %v613, 3
        %v890 = vrot.slane %v614, 3
        %v891 = vsel %vm418, %v889, %v890
        %v892 = vrot.slane %v615, 3
        %v893 = vsel %vm418, %v890, %v892
        %v894 = vrot.slane %v616, 3
        %v895 = vrot.slane %v617, 3
        %v896 = vsel %vm418, %v894, %v895
        %v897 = vrot.slane %v618, 3
        %v898 = vsel %vm418, %v895, %v897
        %v899 = vrot.slane %v619, 3
        %v900 = vrot.slane %v620, 3
        %v901 = vsel %vm418, %v899, %v900
        %v902 = vrot.slane %v621, 3
        %v903 = vsel %vm418, %v900, %v902
        %v904 = vrot.slane %v622, 3
        %v905 = vrot.slane %v623, 3
        %v906 = vsel %vm418, %v904, %v905
        %v907 = vrot.slane %v624, 3
        %v908 = vsel %vm418, %v905, %v907
        %v909 = vrot.slane %v625, 3
        %v910 = vrot.slane %v626, 3
        %v911 = vsel %vm418, %v909, %v910
        %v912 = vrot.slane %v627, 3
        %v913 = vsel %vm418, %v910, %v912
        %v914 = vrot.slane %v628, 3
        %v915 = vrot.slane %v629, 3
        %v916 = vsel %vm418, %v914, %v915
        %v917 = vrot.slane %v630, 3
        %v918 = vsel %vm418, %v915, %v917
        %v919 = vrot.slane %v583, 4
        %v920 = vrot.slane %v584, 4
        %v921 = vsel %vm499, %v919, %v920
        %v922 = vrot.slane %v585, 4
        %v923 = vsel %vm499, %v920, %v922
        %v924 = vrot.slane %v586, 4
        %v925 = vrot.slane %v587, 4
        %v926 = vsel %vm499, %v924, %v925
        %v927 = vrot.slane %v588, 4
        %v928 = vsel %vm499, %v925, %v927
        %v929 = vrot.slane %v589, 4
        %v930 = vrot.slane %v590, 4
        %v931 = vsel %vm499, %v929, %v930
        %v932 = vrot.slane %v591, 4
        %v933 = vsel %vm499, %v930, %v932
        %v934 = vrot.slane %v592, 4
        %v935 = vrot.slane %v593, 4
        %v936 = vsel %vm499, %v934, %v935
        %v937 = vrot.slane %v594, 4
        %v938 = vsel %vm499, %v935, %v937
        %v939 = vrot.slane %v595, 4
        %v940 = vrot.slane %v596, 4
        %v941 = vsel %vm499, %v939, %v940
        %v942 = vrot.slane %v597, 4
        %v943 = vsel %vm499, %v940, %v942
        %v944 = vrot.slane %v598, 4
        %v945 = vrot.slane %v599, 4
        %v946 = vsel %vm499, %v944, %v945
        %v947 = vrot.slane %v600, 4
        %v948 = vsel %vm499, %v945, %v947
        %v949 = vrot.slane %v601, 4
        %v950 = vrot.slane %v602, 4
        %v951 = vsel %vm499, %v949, %v950
        %v952 = vrot.slane %v603, 4
        %v953 = vsel %vm499, %v950, %v952
        %v954 = vrot.slane %v604, 4
        %v955 = vrot.slane %v605, 4
        %v956 = vsel %vm499, %v954, %v955
        %v957 = vrot.slane %v606, 4
        %v958 = vsel %vm499, %v955, %v957
        %v959 = vrot.slane %v607, 4
        %v960 = vrot.slane %v608, 4
        %v961 = vsel %vm499, %v959, %v960
        %v962 = vrot.slane %v609, 4
        %v963 = vsel %vm499, %v960, %v962
        %v964 = vrot.slane %v610, 4
        %v965 = vrot.slane %v611, 4
        %v966 = vsel %vm499, %v964, %v965
        %v967 = vrot.slane %v612, 4
        %v968 = vsel %vm499, %v965, %v967
        %v969 = vrot.slane %v613, 4
        %v970 = vrot.slane %v614, 4
        %v971 = vsel %vm499, %v969, %v970
        %v972 = vrot.slane %v615, 4
        %v973 = vsel %vm499, %v970, %v972
        %v974 = vrot.slane %v616, 4
        %v975 = vrot.slane %v617, 4
        %v976 = vsel %vm499, %v974, %v975
        %v977 = vrot.slane %v618, 4
        %v978 = vsel %vm499, %v975, %v977
        %v979 = vrot.slane %v619, 4
        %v980 = vrot.slane %v620, 4
        %v981 = vsel %vm499, %v979, %v980
        %v982 = vrot.slane %v621, 4
        %v983 = vsel %vm499, %v980, %v982
        %v984 = vrot.slane %v622, 4
        %v985 = vrot.slane %v623, 4
        %v986 = vsel %vm499, %v984, %v985
        %v987 = vrot.slane %v624, 4
        %v988 = vsel %vm499, %v985, %v987
        %v989 = vrot.slane %v625, 4
        %v990 = vrot.slane %v626, 4
        %v991 = vsel %vm499, %v989, %v990
        %v992 = vrot.slane %v627, 4
        %v993 = vsel %vm499, %v990, %v992
        %v994 = vrot.slane %v628, 4
        %v995 = vrot.slane %v629, 4
        %v996 = vsel %vm499, %v994, %v995
        %v997 = vrot.slane %v630, 4
        %v998 = vsel %vm499, %v995, %v997
        %s999 = sadd.s32 %s157, 2
        %s1000 = smul.u32 %s999, 24
        %s1001 = scalar_lea.vmem %s155, %s1000
        %v1002 = vld [vmem:[%s1001] sm:$0xff]
        %v1003 = vld [vmem:[%s1001 + $0x8] sm:$0xff]
        %v1004 = vld [vmem:[%s1001 + $0x10] sm:$0xf]
        %v1005 = vld [vmem:[%s1001 + $0x18] sm:$0xff]
        %v1006 = vld [vmem:[%s1001 + $0x20] sm:$0xff]
        %v1007 = vld [vmem:[%s1001 + $0x28] sm:$0xf]
        %v1008 = vld [vmem:[%s1001 + $0x30] sm:$0xff]
        %v1009 = vld [vmem:[%s1001 + $0x38] sm:$0xff]
        %v1010 = vld [vmem:[%s1001 + $0x40] sm:$0xf]
        %v1011 = vld [vmem:[%s1001 + $0x48] sm:$0xff]
        %v1012 = vld [vmem:[%s1001 + $0x50] sm:$0xff]
        %v1013 = vld [vmem:[%s1001 + $0x58] sm:$0xf]
        %v1014 = vld [vmem:[%s1001 + $0x60] sm:$0xff]
        %v1015 = vld [vmem:[%s1001 + $0x68] sm:$0xff]
        %v1016 = vld [vmem:[%s1001 + $0x70] sm:$0xf]
        %v1017 = vld [vmem:[%s1001 + $0x78] sm:$0xff]
        %v1018 = vld [vmem:[%s1001 + $0x80] sm:$0xff]
        %v1019 = vld [vmem:[%s1001 + $0x88] sm:$0xf]
        %v1020 = vld [vmem:[%s1001 + $0x90] sm:$0xff]
        %v1021 = vld [vmem:[%s1001 + $0x98] sm:$0xff]
        %v1022 = vld [vmem:[%s1001 + $0xa0] sm:$0xf]
        %v1023 = vld [vmem:[%s1001 + $0xa8] sm:$0xff]
        %v1024 = vld [vmem:[%s1001 + $0xb0] sm:$0xff]
        %v1025 = vld [vmem:[%s1001 + $0xb8] sm:$0xf]
        %v1026 = vld [vmem:[%s1001 + $0xc0] sm:$0xff]
        %v1027 = vld [vmem:[%s1001 + $0xc8] sm:$0xff]
        %v1028 = vld [vmem:[%s1001 + $0xd0] sm:$0xf]
        %v1029 = vld [vmem:[%s1001 + $0xd8] sm:$0xff]
        %v1030 = vld [vmem:[%s1001 + $0xe0] sm:$0xff]
        %v1031 = vld [vmem:[%s1001 + $0xe8] sm:$0xf]
        %v1032 = vld [vmem:[%s1001 + $0xf0] sm:$0xff]
        %v1033 = vld [vmem:[%s1001 + $0xf8] sm:$0xff]
        %v1034 = vld [vmem:[%s1001 + $0x100] sm:$0xf]
        %v1035 = vld [vmem:[%s1001 + $0x108] sm:$0xff]
        %v1036 = vld [vmem:[%s1001 + $0x110] sm:$0xff]
        %v1037 = vld [vmem:[%s1001 + $0x118] sm:$0xf]
        %v1038 = vld [vmem:[%s1001 + $0x120] sm:$0xff]
        %v1039 = vld [vmem:[%s1001 + $0x128] sm:$0xff]
        %v1040 = vld [vmem:[%s1001 + $0x130] sm:$0xf]
        %v1041 = vld [vmem:[%s1001 + $0x138] sm:$0xff]
        %v1042 = vld [vmem:[%s1001 + $0x140] sm:$0xff]
        %v1043 = vld [vmem:[%s1001 + $0x148] sm:$0xf]
        %v1044 = vld [vmem:[%s1001 + $0x150] sm:$0xff]
        %v1045 = vld [vmem:[%s1001 + $0x158] sm:$0xff]
        %v1046 = vld [vmem:[%s1001 + $0x160] sm:$0xf]
        %v1047 = vld [vmem:[%s1001 + $0x168] sm:$0xff]
        %v1048 = vld [vmem:[%s1001 + $0x170] sm:$0xff]
        %v1049 = vld [vmem:[%s1001 + $0x178] sm:$0xf]
        %v1098 = vrot.slane %v1002, 1
        %v1099 = vrot.slane %v1003, 1
        %v1100 = vsel %vm256, %v1098, %v1099
        %v1101 = vrot.slane %v1004, 1
        %v1102 = vsel %vm256, %v1099, %v1101
        %v1103 = vrot.slane %v1005, 1
        %v1104 = vrot.slane %v1006, 1
        %v1105 = vsel %vm256, %v1103, %v1104
        %v1106 = vrot.slane %v1007, 1
        %v1107 = vsel %vm256, %v1104, %v1106
        %v1108 = vrot.slane %v1008, 1
        %v1109 = vrot.slane %v1009, 1
        %v1110 = vsel %vm256, %v1108, %v1109
        %v1111 = vrot.slane %v1010, 1
        %v1112 = vsel %vm256, %v1109, %v1111
        %v1113 = vrot.slane %v1011, 1
        %v1114 = vrot.slane %v1012, 1
        %v1115 = vsel %vm256, %v1113, %v1114
        %v1116 = vrot.slane %v1013, 1
        %v1117 = vsel %vm256, %v1114, %v1116
        %v1118 = vrot.slane %v1014, 1
        %v1119 = vrot.slane %v1015, 1
        %v1120 = vsel %vm256, %v1118, %v1119
        %v1121 = vrot.slane %v1016, 1
        %v1122 = vsel %vm256, %v1119, %v1121
        %v1123 = vrot.slane %v1017, 1
        %v1124 = vrot.slane %v1018, 1
        %v1125 = vsel %vm256, %v1123, %v1124
        %v1126 = vrot.slane %v1019, 1
        %v1127 = vsel %vm256, %v1124, %v1126
        %v1128 = vrot.slane %v1020, 1
        %v1129 = vrot.slane %v1021, 1
        %v1130 = vsel %vm256, %v1128, %v1129
        %v1131 = vrot.slane %v1022, 1
        %v1132 = vsel %vm256, %v1129, %v1131
        %v1133 = vrot.slane %v1023, 1
        %v1134 = vrot.slane %v1024, 1
        %v1135 = vsel %vm256, %v1133, %v1134
        %v1136 = vrot.slane %v1025, 1
        %v1137 = vsel %vm256, %v1134, %v1136
        %v1138 = vrot.slane %v1026, 1
        %v1139 = vrot.slane %v1027, 1
        %v1140 = vsel %vm256, %v1138, %v1139
        %v1141 = vrot.slane %v1028, 1
        %v1142 = vsel %vm256, %v1139, %v1141
        %v1143 = vrot.slane %v1029, 1
        %v1144 = vrot.slane %v1030, 1
        %v1145 = vsel %vm256, %v1143, %v1144
        %v1146 = vrot.slane %v1031, 1
        %v1147 = vsel %vm256, %v1144, %v1146
        %v1148 = vrot.slane %v1032, 1
        %v1149 = vrot.slane %v1033, 1
        %v1150 = vsel %vm256, %v1148, %v1149
        %v1151 = vrot.slane %v1034, 1
        %v1152 = vsel %vm256, %v1149, %v1151
        %v1153 = vrot.slane %v1035, 1
        %v1154 = vrot.slane %v1036, 1
        %v1155 = vsel %vm256, %v1153, %v1154
        %v1156 = vrot.slane %v1037, 1
        %v1157 = vsel %vm256, %v1154, %v1156
        %v1158 = vrot.slane %v1038, 1
        %v1159 = vrot.slane %v1039, 1
        %v1160 = vsel %vm256, %v1158, %v1159
        %v1161 = vrot.slane %v1040, 1
        %v1162 = vsel %vm256, %v1159, %v1161
        %v1163 = vrot.slane %v1041, 1
        %v1164 = vrot.slane %v1042, 1
        %v1165 = vsel %vm256, %v1163, %v1164
        %v1166 = vrot.slane %v1043, 1
        %v1167 = vsel %vm256, %v1164, %v1166
        %v1168 = vrot.slane %v1044, 1
        %v1169 = vrot.slane %v1045, 1
        %v1170 = vsel %vm256, %v1168, %v1169
        %v1171 = vrot.slane %v1046, 1
        %v1172 = vsel %vm256, %v1169, %v1171
        %v1173 = vrot.slane %v1047, 1
        %v1174 = vrot.slane %v1048, 1
        %v1175 = vsel %vm256, %v1173, %v1174
        %v1176 = vrot.slane %v1049, 1
        %v1177 = vsel %vm256, %v1174, %v1176
        %v1178 = vrot.slane %v1002, 2
        %v1179 = vrot.slane %v1003, 2
        %v1180 = vsel %vm337, %v1178, %v1179
        %v1181 = vrot.slane %v1004, 2
        %v1182 = vsel %vm337, %v1179, %v1181
        %v1183 = vrot.slane %v1005, 2
        %v1184 = vrot.slane %v1006, 2
        %v1185 = vsel %vm337, %v1183, %v1184
        %v1186 = vrot.slane %v1007, 2
        %v1187 = vsel %vm337, %v1184, %v1186
        %v1188 = vrot.slane %v1008, 2
        %v1189 = vrot.slane %v1009, 2
        %v1190 = vsel %vm337, %v1188, %v1189
        %v1191 = vrot.slane %v1010, 2
        %v1192 = vsel %vm337, %v1189, %v1191
        %v1193 = vrot.slane %v1011, 2
        %v1194 = vrot.slane %v1012, 2
        %v1195 = vsel %vm337, %v1193, %v1194
        %v1196 = vrot.slane %v1013, 2
        %v1197 = vsel %vm337, %v1194, %v1196
        %v1198 = vrot.slane %v1014, 2
        %v1199 = vrot.slane %v1015, 2
        %v1200 = vsel %vm337, %v1198, %v1199
        %v1201 = vrot.slane %v1016, 2
        %v1202 = vsel %vm337, %v1199, %v1201
        %v1203 = vrot.slane %v1017, 2
        %v1204 = vrot.slane %v1018, 2
        %v1205 = vsel %vm337, %v1203, %v1204
        %v1206 = vrot.slane %v1019, 2
        %v1207 = vsel %vm337, %v1204, %v1206
        %v1208 = vrot.slane %v1020, 2
        %v1209 = vrot.slane %v1021, 2
        %v1210 = vsel %vm337, %v1208, %v1209
        %v1211 = vrot.slane %v1022, 2
        %v1212 = vsel %vm337, %v1209, %v1211
        %v1213 = vrot.slane %v1023, 2
        %v1214 = vrot.slane %v1024, 2
        %v1215 = vsel %vm337, %v1213, %v1214
        %v1216 = vrot.slane %v1025, 2
        %v1217 = vsel %vm337, %v1214, %v1216
        %v1218 = vrot.slane %v1026, 2
        %v1219 = vrot.slane %v1027, 2
        %v1220 = vsel %vm337, %v1218, %v1219
        %v1221 = vrot.slane %v1028, 2
        %v1222 = vsel %vm337, %v1219, %v1221
        %v1223 = vrot.slane %v1029, 2
        %v1224 = vrot.slane %v1030, 2
        %v1225 = vsel %vm337, %v1223, %v1224
        %v1226 = vrot.slane %v1031, 2
        %v1227 = vsel %vm337, %v1224, %v1226
        %v1228 = vrot.slane %v1032, 2
        %v1229 = vrot.slane %v1033, 2
        %v1230 = vsel %vm337, %v1228, %v1229
        %v1231 = vrot.slane %v1034, 2
        %v1232 = vsel %vm337, %v1229, %v1231
        %v1233 = vrot.slane %v1035, 2
        %v1234 = vrot.slane %v1036, 2
        %v1235 = vsel %vm337, %v1233, %v1234
        %v1236 = vrot.slane %v1037, 2
        %v1237 = vsel %vm337, %v1234, %v1236
        %v1238 = vrot.slane %v1038, 2
        %v1239 = vrot.slane %v1039, 2
        %v1240 = vsel %vm337, %v1238, %v1239
        %v1241 = vrot.slane %v1040, 2
        %v1242 = vsel %vm337, %v1239, %v1241
        %v1243 = vrot.slane %v1041, 2
        %v1244 = vrot.slane %v1042, 2
        %v1245 = vsel %vm337, %v1243, %v1244
        %v1246 = vrot.slane %v1043, 2
        %v1247 = vsel %vm337, %v1244, %v1246
        %v1248 = vrot.slane %v1044, 2
        %v1249 = vrot.slane %v1045, 2
        %v1250 = vsel %vm337, %v1248, %v1249
        %v1251 = vrot.slane %v1046, 2
        %v1252 = vsel %vm337, %v1249, %v1251
        %v1253 = vrot.slane %v1047, 2
        %v1254 = vrot.slane %v1048, 2
        %v1255 = vsel %vm337, %v1253, %v1254
        %v1256 = vrot.slane %v1049, 2
        %v1257 = vsel %vm337, %v1254, %v1256
        %v1258 = vrot.slane %v1002, 3
        %v1259 = vrot.slane %v1003, 3
        %v1260 = vsel %vm418, %v1258, %v1259
        %v1261 = vrot.slane %v1004, 3
        %v1262 = vsel %vm418, %v1259, %v1261
        %v1263 = vrot.slane %v1005, 3
        %v1264 = vrot.slane %v1006, 3
        %v1265 = vsel %vm418, %v1263, %v1264
        %v1266 = vrot.slane %v1007, 3
        %v1267 = vsel %vm418, %v1264, %v1266
        %v1268 = vrot.slane %v1008, 3
        %v1269 = vrot.slane %v1009, 3
        %v1270 = vsel %vm418, %v1268, %v1269
        %v1271 = vrot.slane %v1010, 3
        %v1272 = vsel %vm418, %v1269, %v1271
        %v1273 = vrot.slane %v1011, 3
        %v1274 = vrot.slane %v1012, 3
        %v1275 = vsel %vm418, %v1273, %v1274
        %v1276 = vrot.slane %v1013, 3
        %v1277 = vsel %vm418, %v1274, %v1276
        %v1278 = vrot.slane %v1014, 3
        %v1279 = vrot.slane %v1015, 3
        %v1280 = vsel %vm418, %v1278, %v1279
        %v1281 = vrot.slane %v1016, 3
        %v1282 = vsel %vm418, %v1279, %v1281
        %v1283 = vrot.slane %v1017, 3
        %v1284 = vrot.slane %v1018, 3
        %v1285 = vsel %vm418, %v1283, %v1284
        %v1286 = vrot.slane %v1019, 3
        %v1287 = vsel %vm418, %v1284, %v1286
        %v1288 = vrot.slane %v1020, 3
        %v1289 = vrot.slane %v1021, 3
        %v1290 = vsel %vm418, %v1288, %v1289
        %v1291 = vrot.slane %v1022, 3
        %v1292 = vsel %vm418, %v1289, %v1291
        %v1293 = vrot.slane %v1023, 3
        %v1294 = vrot.slane %v1024, 3
        %v1295 = vsel %vm418, %v1293, %v1294
        %v1296 = vrot.slane %v1025, 3
        %v1297 = vsel %vm418, %v1294, %v1296
        %v1298 = vrot.slane %v1026, 3
        %v1299 = vrot.slane %v1027, 3
        %v1300 = vsel %vm418, %v1298, %v1299
        %v1301 = vrot.slane %v1028, 3
        %v1302 = vsel %vm418, %v1299, %v1301
        %v1303 = vrot.slane %v1029, 3
        %v1304 = vrot.slane %v1030, 3
        %v1305 = vsel %vm418, %v1303, %v1304
        %v1306 = vrot.slane %v1031, 3
        %v1307 = vsel %vm418, %v1304, %v1306
        %v1308 = vrot.slane %v1032, 3
        %v1309 = vrot.slane %v1033, 3
        %v1310 = vsel %vm418, %v1308, %v1309
        %v1311 = vrot.slane %v1034, 3
        %v1312 = vsel %vm418, %v1309, %v1311
        %v1313 = vrot.slane %v1035, 3
        %v1314 = vrot.slane %v1036, 3
        %v1315 = vsel %vm418, %v1313, %v1314
        %v1316 = vrot.slane %v1037, 3
        %v1317 = vsel %vm418, %v1314, %v1316
        %v1318 = vrot.slane %v1038, 3
        %v1319 = vrot.slane %v1039, 3
        %v1320 = vsel %vm418, %v1318, %v1319
        %v1321 = vrot.slane %v1040, 3
        %v1322 = vsel %vm418, %v1319, %v1321
        %v1323 = vrot.slane %v1041, 3
        %v1324 = vrot.slane %v1042, 3
        %v1325 = vsel %vm418, %v1323, %v1324
        %v1326 = vrot.slane %v1043, 3
        %v1327 = vsel %vm418, %v1324, %v1326
        %v1328 = vrot.slane %v1044, 3
        %v1329 = vrot.slane %v1045, 3
        %v1330 = vsel %vm418, %v1328, %v1329
        %v1331 = vrot.slane %v1046, 3
        %v1332 = vsel %vm418, %v1329, %v1331
        %v1333 = vrot.slane %v1047, 3
        %v1334 = vrot.slane %v1048, 3
        %v1335 = vsel %vm418, %v1333, %v1334
        %v1336 = vrot.slane %v1049, 3
        %v1337 = vsel %vm418, %v1334, %v1336
        %v1338 = vrot.slane %v1002, 4
        %v1339 = vrot.slane %v1003, 4
        %v1340 = vsel %vm499, %v1338, %v1339
        %v1341 = vrot.slane %v1004, 4
        %v1342 = vsel %vm499, %v1339, %v1341
        %v1343 = vrot.slane %v1005, 4
        %v1344 = vrot.slane %v1006, 4
        %v1345 = vsel %vm499, %v1343, %v1344
        %v1346 = vrot.slane %v1007, 4
        %v1347 = vsel %vm499, %v1344, %v1346
        %v1348 = vrot.slane %v1008, 4
        %v1349 = vrot.slane %v1009, 4
        %v1350 = vsel %vm499, %v1348, %v1349
        %v1351 = vrot.slane %v1010, 4
        %v1352 = vsel %vm499, %v1349, %v1351
        %v1353 = vrot.slane %v1011, 4
        %v1354 = vrot.slane %v1012, 4
        %v1355 = vsel %vm499, %v1353, %v1354
        %v1356 = vrot.slane %v1013, 4
        %v1357 = vsel %vm499, %v1354, %v1356
        %v1358 = vrot.slane %v1014, 4
        %v1359 = vrot.slane %v1015, 4
        %v1360 = vsel %vm499, %v1358, %v1359
        %v1361 = vrot.slane %v1016, 4
        %v1362 = vsel %vm499, %v1359, %v1361
        %v1363 = vrot.slane %v1017, 4
        %v1364 = vrot.slane %v1018, 4
        %v1365 = vsel %vm499, %v1363, %v1364
        %v1366 = vrot.slane %v1019, 4
        %v1367 = vsel %vm499, %v1364, %v1366
        %v1368 = vrot.slane %v1020, 4
        %v1369 = vrot.slane %v1021, 4
        %v1370 = vsel %vm499, %v1368, %v1369
        %v1371 = vrot.slane %v1022, 4
        %v1372 = vsel %vm499, %v1369, %v1371
        %v1373 = vrot.slane %v1023, 4
        %v1374 = vrot.slane %v1024, 4
        %v1375 = vsel %vm499, %v1373, %v1374
        %v1376 = vrot.slane %v1025, 4
        %v1377 = vsel %vm499, %v1374, %v1376
        %v1378 = vrot.slane %v1026, 4
        %v1379 = vrot.slane %v1027, 4
        %v1380 = vsel %vm499, %v1378, %v1379
        %v1381 = vrot.slane %v1028, 4
        %v1382 = vsel %vm499, %v1379, %v1381
        %v1383 = vrot.slane %v1029, 4
        %v1384 = vrot.slane %v1030, 4
        %v1385 = vsel %vm499, %v1383, %v1384
        %v1386 = vrot.slane %v1031, 4
        %v1387 = vsel %vm499, %v1384, %v1386
        %v1388 = vrot.slane %v1032, 4
        %v1389 = vrot.slane %v1033, 4
        %v1390 = vsel %vm499, %v1388, %v1389
        %v1391 = vrot.slane %v1034, 4
        %v1392 = vsel %vm499, %v1389, %v1391
        %v1393 = vrot.slane %v1035, 4
        %v1394 = vrot.slane %v1036, 4
        %v1395 = vsel %vm499, %v1393, %v1394
        %v1396 = vrot.slane %v1037, 4
        %v1397 = vsel %vm499, %v1394, %v1396
        %v1398 = vrot.slane %v1038, 4
        %v1399 = vrot.slane %v1039, 4
        %v1400 = vsel %vm499, %v1398, %v1399
        %v1401 = vrot.slane %v1040, 4
        %v1402 = vsel %vm499, %v1399, %v1401
        %v1403 = vrot.slane %v1041, 4
        %v1404 = vrot.slane %v1042, 4
        %v1405 = vsel %vm499, %v1403, %v1404
        %v1406 = vrot.slane %v1043, 4
        %v1407 = vsel %vm499, %v1404, %v1406
        %v1408 = vrot.slane %v1044, 4
        %v1409 = vrot.slane %v1045, 4
        %v1410 = vsel %vm499, %v1408, %v1409
        %v1411 = vrot.slane %v1046, 4
        %v1412 = vsel %vm499, %v1409, %v1411
        %v1413 = vrot.slane %v1047, 4
        %v1414 = vrot.slane %v1048, 4
        %v1415 = vsel %vm499, %v1413, %v1414
        %v1416 = vrot.slane %v1049, 4
        %v1417 = vsel %vm499, %v1414, %v1416
        %s1418 = sadd.s32 %s157, 3
        %s1419 = smul.u32 %s1418, 24
        %s1420 = scalar_lea.vmem %s155, %s1419
        %v1421 = vld [vmem:[%s1420] sm:$0xff]
        %v1422 = vld [vmem:[%s1420 + $0x8] sm:$0xff]
        %v1423 = vld [vmem:[%s1420 + $0x10] sm:$0xf]
        %v1424 = vld [vmem:[%s1420 + $0x18] sm:$0xff]
        %v1425 = vld [vmem:[%s1420 + $0x20] sm:$0xff]
        %v1426 = vld [vmem:[%s1420 + $0x28] sm:$0xf]
        %v1427 = vld [vmem:[%s1420 + $0x30] sm:$0xff]
        %v1428 = vld [vmem:[%s1420 + $0x38] sm:$0xff]
        %v1429 = vld [vmem:[%s1420 + $0x40] sm:$0xf]
        %v1430 = vld [vmem:[%s1420 + $0x48] sm:$0xff]
        %v1431 = vld [vmem:[%s1420 + $0x50] sm:$0xff]
        %v1432 = vld [vmem:[%s1420 + $0x58] sm:$0xf]
        %v1433 = vld [vmem:[%s1420 + $0x60] sm:$0xff]
        %v1434 = vld [vmem:[%s1420 + $0x68] sm:$0xff]
        %v1435 = vld [vmem:[%s1420 + $0x70] sm:$0xf]
        %v1436 = vld [vmem:[%s1420 + $0x78] sm:$0xff]
        %v1437 = vld [vmem:[%s1420 + $0x80] sm:$0xff]
        %v1438 = vld [vmem:[%s1420 + $0x88] sm:$0xf]
        %v1439 = vld [vmem:[%s1420 + $0x90] sm:$0xff]
        %v1440 = vld [vmem:[%s1420 + $0x98] sm:$0xff]
        %v1441 = vld [vmem:[%s1420 + $0xa0] sm:$0xf]
        %v1442 = vld [vmem:[%s1420 + $0xa8] sm:$0xff]
        %v1443 = vld [vmem:[%s1420 + $0xb0] sm:$0xff]
        %v1444 = vld [vmem:[%s1420 + $0xb8] sm:$0xf]
        %v1445 = vld [vmem:[%s1420 + $0xc0] sm:$0xff]
        %v1446 = vld [vmem:[%s1420 + $0xc8] sm:$0xff]
        %v1447 = vld [vmem:[%s1420 + $0xd0] sm:$0xf]
        %v1448 = vld [vmem:[%s1420 + $0xd8] sm:$0xff]
        %v1449 = vld [vmem:[%s1420 + $0xe0] sm:$0xff]
        %v1450 = vld [vmem:[%s1420 + $0xe8] sm:$0xf]
        %v1451 = vld [vmem:[%s1420 + $0xf0] sm:$0xff]
        %v1452 = vld [vmem:[%s1420 + $0xf8] sm:$0xff]
        %v1453 = vld [vmem:[%s1420 + $0x100] sm:$0xf]
        %v1454 = vld [vmem:[%s1420 + $0x108] sm:$0xff]
        %v1455 = vld [vmem:[%s1420 + $0x110] sm:$0xff]
        %v1456 = vld [vmem:[%s1420 + $0x118] sm:$0xf]
        %v1457 = vld [vmem:[%s1420 + $0x120] sm:$0xff]
        %v1458 = vld [vmem:[%s1420 + $0x128] sm:$0xff]
        %v1459 = vld [vmem:[%s1420 + $0x130] sm:$0xf]
        %v1460 = vld [vmem:[%s1420 + $0x138] sm:$0xff]
        %v1461 = vld [vmem:[%s1420 + $0x140] sm:$0xff]
        %v1462 = vld [vmem:[%s1420 + $0x148] sm:$0xf]
        %v1463 = vld [vmem:[%s1420 + $0x150] sm:$0xff]
        %v1464 = vld [vmem:[%s1420 + $0x158] sm:$0xff]
        %v1465 = vld [vmem:[%s1420 + $0x160] sm:$0xf]
        %v1466 = vld [vmem:[%s1420 + $0x168] sm:$0xff]
        %v1467 = vld [vmem:[%s1420 + $0x170] sm:$0xff]
        %v1468 = vld [vmem:[%s1420 + $0x178] sm:$0xf]
        %v1517 = vrot.slane %v1421, 1
        %v1518 = vrot.slane %v1422, 1
        %v1519 = vsel %vm256, %v1517, %v1518
        %v1520 = vrot.slane %v1423, 1
        %v1521 = vsel %vm256, %v1518, %v1520
        %v1522 = vrot.slane %v1424, 1
        %v1523 = vrot.slane %v1425, 1
        %v1524 = vsel %vm256, %v1522, %v1523
        %v1525 = vrot.slane %v1426, 1
        %v1526 = vsel %vm256, %v1523, %v1525
        %v1527 = vrot.slane %v1427, 1
        %v1528 = vrot.slane %v1428, 1
        %v1529 = vsel %vm256, %v1527, %v1528
        %v1530 = vrot.slane %v1429, 1
        %v1531 = vsel %vm256, %v1528, %v1530
        %v1532 = vrot.slane %v1430, 1
        %v1533 = vrot.slane %v1431, 1
        %v1534 = vsel %vm256, %v1532, %v1533
        %v1535 = vrot.slane %v1432, 1
        %v1536 = vsel %vm256, %v1533, %v1535
        %v1537 = vrot.slane %v1433, 1
        %v1538 = vrot.slane %v1434, 1
        %v1539 = vsel %vm256, %v1537, %v1538
        %v1540 = vrot.slane %v1435, 1
        %v1541 = vsel %vm256, %v1538, %v1540
        %v1542 = vrot.slane %v1436, 1
        %v1543 = vrot.slane %v1437, 1
        %v1544 = vsel %vm256, %v1542, %v1543
        %v1545 = vrot.slane %v1438, 1
        %v1546 = vsel %vm256, %v1543, %v1545
        %v1547 = vrot.slane %v1439, 1
        %v1548 = vrot.slane %v1440, 1
        %v1549 = vsel %vm256, %v1547, %v1548
        %v1550 = vrot.slane %v1441, 1
        %v1551 = vsel %vm256, %v1548, %v1550
        %v1552 = vrot.slane %v1442, 1
        %v1553 = vrot.slane %v1443, 1
        %v1554 = vsel %vm256, %v1552, %v1553
        %v1555 = vrot.slane %v1444, 1
        %v1556 = vsel %vm256, %v1553, %v1555
        %v1557 = vrot.slane %v1445, 1
        %v1558 = vrot.slane %v1446, 1
        %v1559 = vsel %vm256, %v1557, %v1558
        %v1560 = vrot.slane %v1447, 1
        %v1561 = vsel %vm256, %v1558, %v1560
        %v1562 = vrot.slane %v1448, 1
        %v1563 = vrot.slane %v1449, 1
        %v1564 = vsel %vm256, %v1562, %v1563
        %v1565 = vrot.slane %v1450, 1
        %v1566 = vsel %vm256, %v1563, %v1565
        %v1567 = vrot.slane %v1451, 1
        %v1568 = vrot.slane %v1452, 1
        %v1569 = vsel %vm256, %v1567, %v1568
        %v1570 = vrot.slane %v1453, 1
        %v1571 = vsel %vm256, %v1568, %v1570
        %v1572 = vrot.slane %v1454, 1
        %v1573 = vrot.slane %v1455, 1
        %v1574 = vsel %vm256, %v1572, %v1573
        %v1575 = vrot.slane %v1456, 1
        %v1576 = vsel %vm256, %v1573, %v1575
        %v1577 = vrot.slane %v1457, 1
        %v1578 = vrot.slane %v1458, 1
        %v1579 = vsel %vm256, %v1577, %v1578
        %v1580 = vrot.slane %v1459, 1
        %v1581 = vsel %vm256, %v1578, %v1580
        %v1582 = vrot.slane %v1460, 1
        %v1583 = vrot.slane %v1461, 1
        %v1584 = vsel %vm256, %v1582, %v1583
        %v1585 = vrot.slane %v1462, 1
        %v1586 = vsel %vm256, %v1583, %v1585
        %v1587 = vrot.slane %v1463, 1
        %v1588 = vrot.slane %v1464, 1
        %v1589 = vsel %vm256, %v1587, %v1588
        %v1590 = vrot.slane %v1465, 1
        %v1591 = vsel %vm256, %v1588, %v1590
        %v1592 = vrot.slane %v1466, 1
        %v1593 = vrot.slane %v1467, 1
        %v1594 = vsel %vm256, %v1592, %v1593
        %v1595 = vrot.slane %v1468, 1
        %v1596 = vsel %vm256, %v1593, %v1595
        %v1629 = vrot.slane %v1421, 2
        %v1630 = vrot.slane %v1422, 2
        %v1631 = vsel %vm337, %v1629, %v1630
        %v1632 = vrot.slane %v1423, 2
        %v1633 = vsel %vm337, %v1630, %v1632
        %v1634 = vrot.slane %v1424, 2
        %v1635 = vrot.slane %v1425, 2
        %v1636 = vsel %vm337, %v1634, %v1635
        %v1637 = vrot.slane %v1426, 2
        %v1638 = vsel %vm337, %v1635, %v1637
        %v1639 = vrot.slane %v1427, 2
        %v1640 = vrot.slane %v1428, 2
        %v1641 = vsel %vm337, %v1639, %v1640
        %v1642 = vrot.slane %v1429, 2
        %v1643 = vsel %vm337, %v1640, %v1642
        %v1644 = vrot.slane %v1430, 2
        %v1645 = vrot.slane %v1431, 2
        %v1646 = vsel %vm337, %v1644, %v1645
        %v1647 = vrot.slane %v1432, 2
        %v1648 = vsel %vm337, %v1645, %v1647
        %v1649 = vrot.slane %v1433, 2
        %v1650 = vrot.slane %v1434, 2
        %v1651 = vsel %vm337, %v1649, %v1650
        %v1652 = vrot.slane %v1435, 2
        %v1653 = vsel %vm337, %v1650, %v1652
        %v1654 = vrot.slane %v1436, 2
        %v1655 = vrot.slane %v1437, 2
        %v1656 = vsel %vm337, %v1654, %v1655
        %v1657 = vrot.slane %v1438, 2
        %v1658 = vsel %vm337, %v1655, %v1657
        %v1659 = vrot.slane %v1439, 2
        %v1660 = vrot.slane %v1440, 2
        %v1661 = vsel %vm337, %v1659, %v1660
        %v1662 = vrot.slane %v1441, 2
        %v1663 = vsel %vm337, %v1660, %v1662
        %v1664 = vrot.slane %v1442, 2
        %v1665 = vrot.slane %v1443, 2
        %v1666 = vsel %vm337, %v1664, %v1665
        %v1667 = vrot.slane %v1444, 2
        %v1668 = vsel %vm337, %v1665, %v1667
        %v1669 = vrot.slane %v1445, 2
        %v1670 = vrot.slane %v1446, 2
        %v1671 = vsel %vm337, %v1669, %v1670
        %v1672 = vrot.slane %v1447, 2
        %v1673 = vsel %vm337, %v1670, %v1672
        %v1674 = vrot.slane %v1448, 2
        %v1675 = vrot.slane %v1449, 2
        %v1676 = vsel %vm337, %v1674, %v1675
        %v1677 = vrot.slane %v1450, 2
        %v1678 = vsel %vm337, %v1675, %v1677
        %v1679 = vrot.slane %v1451, 2
        %v1680 = vrot.slane %v1452, 2
        %v1681 = vsel %vm337, %v1679, %v1680
        %v1682 = vrot.slane %v1453, 2
        %v1683 = vsel %vm337, %v1680, %v1682
        %v1684 = vrot.slane %v1454, 2
        %v1685 = vrot.slane %v1455, 2
        %v1686 = vsel %vm337, %v1684, %v1685
        %v1687 = vrot.slane %v1456, 2
        %v1688 = vsel %vm337, %v1685, %v1687
        %v1689 = vrot.slane %v1457, 2
        %v1690 = vrot.slane %v1458, 2
        %v1691 = vsel %vm337, %v1689, %v1690
        %v1692 = vrot.slane %v1459, 2
        %v1693 = vsel %vm337, %v1690, %v1692
        %v1694 = vrot.slane %v1460, 2
        %v1695 = vrot.slane %v1461, 2
        %v1696 = vsel %vm337, %v1694, %v1695
        %v1697 = vrot.slane %v1462, 2
        %v1698 = vsel %vm337, %v1695, %v1697
        %v1699 = vrot.slane %v1463, 2
        %v1700 = vrot.slane %v1464, 2
        %v1701 = vsel %vm337, %v1699, %v1700
        %v1702 = vrot.slane %v1465, 2
        %v1703 = vsel %vm337, %v1700, %v1702
        %v1704 = vrot.slane %v1466, 2
        %v1705 = vrot.slane %v1467, 2
        %v1706 = vsel %vm337, %v1704, %v1705
        %v1707 = vrot.slane %v1468, 2
        %v1708 = vsel %vm337, %v1705, %v1707
        %v1709 = vrot.slane %v1421, 3
        %v1710 = vrot.slane %v1422, 3
        %v1711 = vsel %vm418, %v1709, %v1710
        %v1712 = vrot.slane %v1423, 3
        %v1713 = vsel %vm418, %v1710, %v1712
        %v1714 = vrot.slane %v1424, 3
        %v1715 = vrot.slane %v1425, 3
        %v1716 = vsel %vm418, %v1714, %v1715
        %v1717 = vrot.slane %v1426, 3
        %v1718 = vsel %vm418, %v1715, %v1717
        %v1719 = vrot.slane %v1427, 3
        %v1720 = vrot.slane %v1428, 3
        %v1721 = vsel %vm418, %v1719, %v1720
        %v1722 = vrot.slane %v1429, 3
        %v1723 = vsel %vm418, %v1720, %v1722
        %v1724 = vrot.slane %v1430, 3
        %v1725 = vrot.slane %v1431, 3
        %v1726 = vsel %vm418, %v1724, %v1725
        %v1727 = vrot.slane %v1432, 3
        %v1728 = vsel %vm418, %v1725, %v1727
        %v1729 = vrot.slane %v1433, 3
        %v1730 = vrot.slane %v1434, 3
        %v1731 = vsel %vm418, %v1729, %v1730
        %v1732 = vrot.slane %v1435, 3
        %v1733 = vsel %vm418, %v1730, %v1732
        %v1734 = vrot.slane %v1436, 3
        %v1735 = vrot.slane %v1437, 3
        %v1736 = vsel %vm418, %v1734, %v1735
        %v1737 = vrot.slane %v1438, 3
        %v1738 = vsel %vm418, %v1735, %v1737
        %v1739 = vrot.slane %v1439, 3
        %v1740 = vrot.slane %v1440, 3
        %v1741 = vsel %vm418, %v1739, %v1740
        %v1742 = vrot.slane %v1441, 3
        %v1743 = vsel %vm418, %v1740, %v1742
        %v1744 = vrot.slane %v1442, 3
        %v1745 = vrot.slane %v1443, 3
        %v1746 = vsel %vm418, %v1744, %v1745
        %v1747 = vrot.slane %v1444, 3
        %v1748 = vsel %vm418, %v1745, %v1747
        %v1749 = vrot.slane %v1445, 3
        %v1750 = vrot.slane %v1446, 3
        %v1751 = vsel %vm418, %v1749, %v1750
        %v1752 = vrot.slane %v1447, 3
        %v1753 = vsel %vm418, %v1750, %v1752
        %v1754 = vrot.slane %v1448, 3
        %v1755 = vrot.slane %v1449, 3
        %v1756 = vsel %vm418, %v1754, %v1755
        %v1757 = vrot.slane %v1450, 3
        %v1758 = vsel %vm418, %v1755, %v1757
        %v1759 = vrot.slane %v1451, 3
        %v1760 = vrot.slane %v1452, 3
        %v1761 = vsel %vm418, %v1759, %v1760
        %v1762 = vrot.slane %v1453, 3
        %v1763 = vsel %vm418, %v1760, %v1762
        %v1764 = vrot.slane %v1454, 3
        %v1765 = vrot.slane %v1455, 3
        %v1766 = vsel %vm418, %v1764, %v1765
        %v1767 = vrot.slane %v1456, 3
        %v1768 = vsel %vm418, %v1765, %v1767
        %v1769 = vrot.slane %v1457, 3
        %v1770 = vrot.slane %v1458, 3
        %v1771 = vsel %vm418, %v1769, %v1770
        %v1772 = vrot.slane %v1459, 3
        %v1773 = vsel %vm418, %v1770, %v1772
        %v1774 = vrot.slane %v1460, 3
        %v1775 = vrot.slane %v1461, 3
        %v1776 = vsel %vm418, %v1774, %v1775
        %v1777 = vrot.slane %v1462, 3
        %v1778 = vsel %vm418, %v1775, %v1777
        %v1779 = vrot.slane %v1463, 3
        %v1780 = vrot.slane %v1464, 3
        %v1781 = vsel %vm418, %v1779, %v1780
        %v1782 = vrot.slane %v1465, 3
        %v1783 = vsel %vm418, %v1780, %v1782
        %v1784 = vrot.slane %v1466, 3
        %v1785 = vrot.slane %v1467, 3
        %v1786 = vsel %vm418, %v1784, %v1785
        %v1787 = vrot.slane %v1468, 3
        %v1788 = vsel %vm418, %v1785, %v1787
        %v1789 = vrot.slane %v1421, 4
        %v1790 = vrot.slane %v1422, 4
        %v1791 = vsel %vm499, %v1789, %v1790
        %v1792 = vrot.slane %v1423, 4
        %v1793 = vsel %vm499, %v1790, %v1792
        %v1794 = vrot.slane %v1424, 4
        %v1795 = vrot.slane %v1425, 4
        %v1796 = vsel %vm499, %v1794, %v1795
        %v1797 = vrot.slane %v1426, 4
        %v1798 = vsel %vm499, %v1795, %v1797
        %v1799 = vrot.slane %v1427, 4
        %v1800 = vrot.slane %v1428, 4
        %v1801 = vsel %vm499, %v1799, %v1800
        %v1802 = vrot.slane %v1429, 4
        %v1803 = vsel %vm499, %v1800, %v1802
        %v1804 = vrot.slane %v1430, 4
        %v1805 = vrot.slane %v1431, 4
        %v1806 = vsel %vm499, %v1804, %v1805
        %v1807 = vrot.slane %v1432, 4
        %v1808 = vsel %vm499, %v1805, %v1807
        %v1809 = vrot.slane %v1433, 4
        %v1810 = vrot.slane %v1434, 4
        %v1811 = vsel %vm499, %v1809, %v1810
        %v1812 = vrot.slane %v1435, 4
        %v1813 = vsel %vm499, %v1810, %v1812
        %v1814 = vrot.slane %v1436, 4
        %v1815 = vrot.slane %v1437, 4
        %v1816 = vsel %vm499, %v1814, %v1815
        %v1817 = vrot.slane %v1438, 4
        %v1818 = vsel %vm499, %v1815, %v1817
        %v1819 = vrot.slane %v1439, 4
        %v1820 = vrot.slane %v1440, 4
        %v1821 = vsel %vm499, %v1819, %v1820
        %v1822 = vrot.slane %v1441, 4
        %v1823 = vsel %vm499, %v1820, %v1822
        %v1824 = vrot.slane %v1442, 4
        %v1825 = vrot.slane %v1443, 4
        %v1826 = vsel %vm499, %v1824, %v1825
        %v1827 = vrot.slane %v1444, 4
        %v1828 = vsel %vm499, %v1825, %v1827
        %v1829 = vrot.slane %v1445, 4
        %v1830 = vrot.slane %v1446, 4
        %v1831 = vsel %vm499, %v1829, %v1830
        %v1832 = vrot.slane %v1447, 4
        %v1833 = vsel %vm499, %v1830, %v1832
        %v1834 = vrot.slane %v1448, 4
        %v1835 = vrot.slane %v1449, 4
        %v1836 = vsel %vm499, %v1834, %v1835
        %v1837 = vrot.slane %v1450, 4
        %v1838 = vsel %vm499, %v1835, %v1837
        %v1839 = vrot.slane %v1451, 4
        %v1840 = vrot.slane %v1452, 4
        %v1841 = vsel %vm499, %v1839, %v1840
        %v1842 = vrot.slane %v1453, 4
        %v1843 = vsel %vm499, %v1840, %v1842
        %v1844 = vrot.slane %v1454, 4
        %v1845 = vrot.slane %v1455, 4
        %v1846 = vsel %vm499, %v1844, %v1845
        %v1847 = vrot.slane %v1456, 4
        %v1848 = vsel %vm499, %v1845, %v1847
        %v1849 = vrot.slane %v1457, 4
        %v1850 = vrot.slane %v1458, 4
        %v1851 = vsel %vm499, %v1849, %v1850
        %v1852 = vrot.slane %v1459, 4
        %v1853 = vsel %vm499, %v1850, %v1852
        %v1854 = vrot.slane %v1460, 4
        %v1855 = vrot.slane %v1461, 4
        %v1856 = vsel %vm499, %v1854, %v1855
        %v1857 = vrot.slane %v1462, 4
        %v1858 = vsel %vm499, %v1855, %v1857
        %v1859 = vrot.slane %v1463, 4
        %v1860 = vrot.slane %v1464, 4
        %v1861 = vsel %vm499, %v1859, %v1860
        %v1862 = vrot.slane %v1465, 4
        %v1863 = vsel %vm499, %v1860, %v1862
        %v1864 = vrot.slane %v1466, 4
        %v1865 = vrot.slane %v1467, 4
        %v1866 = vsel %vm499, %v1864, %v1865
        %v1867 = vrot.slane %v1468, 4
        %v1868 = vsel %vm499, %v1865, %v1867
        %s1869 = sadd.s32 %s157, 4
        %s1870 = smul.u32 %s1869, 24
        %s1871 = scalar_lea.vmem %s155, %s1870
        %v1872 = vld [vmem:[%s1871] sm:$0xff]
        %v1873 = vld [vmem:[%s1871 + $0x8] sm:$0xff]
        %v1874 = vld [vmem:[%s1871 + $0x10] sm:$0xf]
        %v1875 = vld [vmem:[%s1871 + $0x18] sm:$0xff]
        %v1876 = vld [vmem:[%s1871 + $0x20] sm:$0xff]
        %v1877 = vld [vmem:[%s1871 + $0x28] sm:$0xf]
        %v1878 = vld [vmem:[%s1871 + $0x30] sm:$0xff]
        %v1879 = vld [vmem:[%s1871 + $0x38] sm:$0xff]
        %v1880 = vld [vmem:[%s1871 + $0x40] sm:$0xf]
        %v1881 = vld [vmem:[%s1871 + $0x48] sm:$0xff]
        %v1882 = vld [vmem:[%s1871 + $0x50] sm:$0xff]
        %v1883 = vld [vmem:[%s1871 + $0x58] sm:$0xf]
        %v1884 = vld [vmem:[%s1871 + $0x60] sm:$0xff]
        %v1885 = vld [vmem:[%s1871 + $0x68] sm:$0xff]
        %v1886 = vld [vmem:[%s1871 + $0x70] sm:$0xf]
        %v1887 = vld [vmem:[%s1871 + $0x78] sm:$0xff]
        %v1888 = vld [vmem:[%s1871 + $0x80] sm:$0xff]
        %v1889 = vld [vmem:[%s1871 + $0x88] sm:$0xf]
        %v1890 = vld [vmem:[%s1871 + $0x90] sm:$0xff]
        %v1891 = vld [vmem:[%s1871 + $0x98] sm:$0xff]
        %v1892 = vld [vmem:[%s1871 + $0xa0] sm:$0xf]
        %v1893 = vld [vmem:[%s1871 + $0xa8] sm:$0xff]
        %v1894 = vld [vmem:[%s1871 + $0xb0] sm:$0xff]
        %v1895 = vld [vmem:[%s1871 + $0xb8] sm:$0xf]
        %v1896 = vld [vmem:[%s1871 + $0xc0] sm:$0xff]
        %v1897 = vld [vmem:[%s1871 + $0xc8] sm:$0xff]
        %v1898 = vld [vmem:[%s1871 + $0xd0] sm:$0xf]
        %v1899 = vld [vmem:[%s1871 + $0xd8] sm:$0xff]
        %v1900 = vld [vmem:[%s1871 + $0xe0] sm:$0xff]
        %v1901 = vld [vmem:[%s1871 + $0xe8] sm:$0xf]
        %v1902 = vld [vmem:[%s1871 + $0xf0] sm:$0xff]
        %v1903 = vld [vmem:[%s1871 + $0xf8] sm:$0xff]
        %v1904 = vld [vmem:[%s1871 + $0x100] sm:$0xf]
        %v1905 = vld [vmem:[%s1871 + $0x108] sm:$0xff]
        %v1906 = vld [vmem:[%s1871 + $0x110] sm:$0xff]
        %v1907 = vld [vmem:[%s1871 + $0x118] sm:$0xf]
        %v1908 = vld [vmem:[%s1871 + $0x120] sm:$0xff]
        %v1909 = vld [vmem:[%s1871 + $0x128] sm:$0xff]
        %v1910 = vld [vmem:[%s1871 + $0x130] sm:$0xf]
        %v1911 = vld [vmem:[%s1871 + $0x138] sm:$0xff]
        %v1912 = vld [vmem:[%s1871 + $0x140] sm:$0xff]
        %v1913 = vld [vmem:[%s1871 + $0x148] sm:$0xf]
        %v1914 = vld [vmem:[%s1871 + $0x150] sm:$0xff]
        %v1915 = vld [vmem:[%s1871 + $0x158] sm:$0xff]
        %v1916 = vld [vmem:[%s1871 + $0x160] sm:$0xf]
        %v1917 = vld [vmem:[%s1871 + $0x168] sm:$0xff]
        %v1918 = vld [vmem:[%s1871 + $0x170] sm:$0xff]
        %v1919 = vld [vmem:[%s1871 + $0x178] sm:$0xf]
        %v1968 = vrot.slane %v1872, 1
        %v1969 = vrot.slane %v1873, 1
        %v1970 = vsel %vm256, %v1968, %v1969
        %v1971 = vrot.slane %v1874, 1
        %v1972 = vsel %vm256, %v1969, %v1971
        %v1973 = vrot.slane %v1875, 1
        %v1974 = vrot.slane %v1876, 1
        %v1975 = vsel %vm256, %v1973, %v1974
        %v1976 = vrot.slane %v1877, 1
        %v1977 = vsel %vm256, %v1974, %v1976
        %v1978 = vrot.slane %v1878, 1
        %v1979 = vrot.slane %v1879, 1
        %v1980 = vsel %vm256, %v1978, %v1979
        %v1981 = vrot.slane %v1880, 1
        %v1982 = vsel %vm256, %v1979, %v1981
        %v1983 = vrot.slane %v1881, 1
        %v1984 = vrot.slane %v1882, 1
        %v1985 = vsel %vm256, %v1983, %v1984
        %v1986 = vrot.slane %v1883, 1
        %v1987 = vsel %vm256, %v1984, %v1986
        %v1988 = vrot.slane %v1884, 1
        %v1989 = vrot.slane %v1885, 1
        %v1990 = vsel %vm256, %v1988, %v1989
        %v1991 = vrot.slane %v1886, 1
        %v1992 = vsel %vm256, %v1989, %v1991
        %v1993 = vrot.slane %v1887, 1
        %v1994 = vrot.slane %v1888, 1
        %v1995 = vsel %vm256, %v1993, %v1994
        %v1996 = vrot.slane %v1889, 1
        %v1997 = vsel %vm256, %v1994, %v1996
        %v1998 = vrot.slane %v1890, 1
        %v1999 = vrot.slane %v1891, 1
        %v2000 = vsel %vm256, %v1998, %v1999
        %v2001 = vrot.slane %v1892, 1
        %v2002 = vsel %vm256, %v1999, %v2001
        %v2003 = vrot.slane %v1893, 1
        %v2004 = vrot.slane %v1894, 1
        %v2005 = vsel %vm256, %v2003, %v2004
        %v2006 = vrot.slane %v1895, 1
        %v2007 = vsel %vm256, %v2004, %v2006
        %v2008 = vrot.slane %v1896, 1
        %v2009 = vrot.slane %v1897, 1
        %v2010 = vsel %vm256, %v2008, %v2009
        %v2011 = vrot.slane %v1898, 1
        %v2012 = vsel %vm256, %v2009, %v2011
        %v2013 = vrot.slane %v1899, 1
        %v2014 = vrot.slane %v1900, 1
        %v2015 = vsel %vm256, %v2013, %v2014
        %v2016 = vrot.slane %v1901, 1
        %v2017 = vsel %vm256, %v2014, %v2016
        %v2018 = vrot.slane %v1902, 1
        %v2019 = vrot.slane %v1903, 1
        %v2020 = vsel %vm256, %v2018, %v2019
        %v2021 = vrot.slane %v1904, 1
        %v2022 = vsel %vm256, %v2019, %v2021
        %v2023 = vrot.slane %v1905, 1
        %v2024 = vrot.slane %v1906, 1
        %v2025 = vsel %vm256, %v2023, %v2024
        %v2026 = vrot.slane %v1907, 1
        %v2027 = vsel %vm256, %v2024, %v2026
        %v2028 = vrot.slane %v1908, 1
        %v2029 = vrot.slane %v1909, 1
        %v2030 = vsel %vm256, %v2028, %v2029
        %v2031 = vrot.slane %v1910, 1
        %v2032 = vsel %vm256, %v2029, %v2031
        %v2033 = vrot.slane %v1911, 1
        %v2034 = vrot.slane %v1912, 1
        %v2035 = vsel %vm256, %v2033, %v2034
        %v2036 = vrot.slane %v1913, 1
        %v2037 = vsel %vm256, %v2034, %v2036
        %v2038 = vrot.slane %v1914, 1
        %v2039 = vrot.slane %v1915, 1
        %v2040 = vsel %vm256, %v2038, %v2039
        %v2041 = vrot.slane %v1916, 1
        %v2042 = vsel %vm256, %v2039, %v2041
        %v2043 = vrot.slane %v1917, 1
        %v2044 = vrot.slane %v1918, 1
        %v2045 = vsel %vm256, %v2043, %v2044
        %v2046 = vrot.slane %v1919, 1
        %v2047 = vsel %vm256, %v2044, %v2046
        %v2048 = vrot.slane %v1872, 2
        %v2049 = vrot.slane %v1873, 2
        %v2050 = vsel %vm337, %v2048, %v2049
        %v2051 = vrot.slane %v1874, 2
        %v2052 = vsel %vm337, %v2049, %v2051
        %v2053 = vrot.slane %v1875, 2
        %v2054 = vrot.slane %v1876, 2
        %v2055 = vsel %vm337, %v2053, %v2054
        %v2056 = vrot.slane %v1877, 2
        %v2057 = vsel %vm337, %v2054, %v2056
        %v2058 = vrot.slane %v1878, 2
        %v2059 = vrot.slane %v1879, 2
        %v2060 = vsel %vm337, %v2058, %v2059
        %v2061 = vrot.slane %v1880, 2
        %v2062 = vsel %vm337, %v2059, %v2061
        %v2063 = vrot.slane %v1881, 2
        %v2064 = vrot.slane %v1882, 2
        %v2065 = vsel %vm337, %v2063, %v2064
        %v2066 = vrot.slane %v1883, 2
        %v2067 = vsel %vm337, %v2064, %v2066
        %v2068 = vrot.slane %v1884, 2
        %v2069 = vrot.slane %v1885, 2
        %v2070 = vsel %vm337, %v2068, %v2069
        %v2071 = vrot.slane %v1886, 2
        %v2072 = vsel %vm337, %v2069, %v2071
        %v2073 = vrot.slane %v1887, 2
        %v2074 = vrot.slane %v1888, 2
        %v2075 = vsel %vm337, %v2073, %v2074
        %v2076 = vrot.slane %v1889, 2
        %v2077 = vsel %vm337, %v2074, %v2076
        %v2078 = vrot.slane %v1890, 2
        %v2079 = vrot.slane %v1891, 2
        %v2080 = vsel %vm337, %v2078, %v2079
        %v2081 = vrot.slane %v1892, 2
        %v2082 = vsel %vm337, %v2079, %v2081
        %v2083 = vrot.slane %v1893, 2
        %v2084 = vrot.slane %v1894, 2
        %v2085 = vsel %vm337, %v2083, %v2084
        %v2086 = vrot.slane %v1895, 2
        %v2087 = vsel %vm337, %v2084, %v2086
        %v2088 = vrot.slane %v1896, 2
        %v2089 = vrot.slane %v1897, 2
        %v2090 = vsel %vm337, %v2088, %v2089
        %v2091 = vrot.slane %v1898, 2
        %v2092 = vsel %vm337, %v2089, %v2091
        %v2093 = vrot.slane %v1899, 2
        %v2094 = vrot.slane %v1900, 2
        %v2095 = vsel %vm337, %v2093, %v2094
        %v2096 = vrot.slane %v1901, 2
        %v2097 = vsel %vm337, %v2094, %v2096
        %v2098 = vrot.slane %v1902, 2
        %v2099 = vrot.slane %v1903, 2
        %v2100 = vsel %vm337, %v2098, %v2099
        %v2101 = vrot.slane %v1904, 2
        %v2102 = vsel %vm337, %v2099, %v2101
        %v2103 = vrot.slane %v1905, 2
        %v2104 = vrot.slane %v1906, 2
        %v2105 = vsel %vm337, %v2103, %v2104
        %v2106 = vrot.slane %v1907, 2
        %v2107 = vsel %vm337, %v2104, %v2106
        %v2108 = vrot.slane %v1908, 2
        %v2109 = vrot.slane %v1909, 2
        %v2110 = vsel %vm337, %v2108, %v2109
        %v2111 = vrot.slane %v1910, 2
        %v2112 = vsel %vm337, %v2109, %v2111
        %v2113 = vrot.slane %v1911, 2
        %v2114 = vrot.slane %v1912, 2
        %v2115 = vsel %vm337, %v2113, %v2114
        %v2116 = vrot.slane %v1913, 2
        %v2117 = vsel %vm337, %v2114, %v2116
        %v2118 = vrot.slane %v1914, 2
        %v2119 = vrot.slane %v1915, 2
        %v2120 = vsel %vm337, %v2118, %v2119
        %v2121 = vrot.slane %v1916, 2
        %v2122 = vsel %vm337, %v2119, %v2121
        %v2123 = vrot.slane %v1917, 2
        %v2124 = vrot.slane %v1918, 2
        %v2125 = vsel %vm337, %v2123, %v2124
        %v2126 = vrot.slane %v1919, 2
        %v2127 = vsel %vm337, %v2124, %v2126
        %v2128 = vrot.slane %v1872, 3
        %v2129 = vrot.slane %v1873, 3
        %v2130 = vsel %vm418, %v2128, %v2129
        %v2131 = vrot.slane %v1874, 3
        %v2132 = vsel %vm418, %v2129, %v2131
        %v2133 = vrot.slane %v1875, 3
        %v2134 = vrot.slane %v1876, 3
        %v2135 = vsel %vm418, %v2133, %v2134
        %v2136 = vrot.slane %v1877, 3
        %v2137 = vsel %vm418, %v2134, %v2136
        %v2138 = vrot.slane %v1878, 3
        %v2139 = vrot.slane %v1879, 3
        %v2140 = vsel %vm418, %v2138, %v2139
        %v2141 = vrot.slane %v1880, 3
        %v2142 = vsel %vm418, %v2139, %v2141
        %v2143 = vrot.slane %v1881, 3
        %v2144 = vrot.slane %v1882, 3
        %v2145 = vsel %vm418, %v2143, %v2144
        %v2146 = vrot.slane %v1883, 3
        %v2147 = vsel %vm418, %v2144, %v2146
        %v2148 = vrot.slane %v1884, 3
        %v2149 = vrot.slane %v1885, 3
        %v2150 = vsel %vm418, %v2148, %v2149
        %v2151 = vrot.slane %v1886, 3
        %v2152 = vsel %vm418, %v2149, %v2151
        %v2153 = vrot.slane %v1887, 3
        %v2154 = vrot.slane %v1888, 3
        %v2155 = vsel %vm418, %v2153, %v2154
        %v2156 = vrot.slane %v1889, 3
        %v2157 = vsel %vm418, %v2154, %v2156
        %v2158 = vrot.slane %v1890, 3
        %v2159 = vrot.slane %v1891, 3
        %v2160 = vsel %vm418, %v2158, %v2159
        %v2161 = vrot.slane %v1892, 3
        %v2162 = vsel %vm418, %v2159, %v2161
        %v2163 = vrot.slane %v1893, 3
        %v2164 = vrot.slane %v1894, 3
        %v2165 = vsel %vm418, %v2163, %v2164
        %v2166 = vrot.slane %v1895, 3
        %v2167 = vsel %vm418, %v2164, %v2166
        %v2168 = vrot.slane %v1896, 3
        %v2169 = vrot.slane %v1897, 3
        %v2170 = vsel %vm418, %v2168, %v2169
        %v2171 = vrot.slane %v1898, 3
        %v2172 = vsel %vm418, %v2169, %v2171
        %v2173 = vrot.slane %v1899, 3
        %v2174 = vrot.slane %v1900, 3
        %v2175 = vsel %vm418, %v2173, %v2174
        %v2176 = vrot.slane %v1901, 3
        %v2177 = vsel %vm418, %v2174, %v2176
        %v2178 = vrot.slane %v1902, 3
        %v2179 = vrot.slane %v1903, 3
        %v2180 = vsel %vm418, %v2178, %v2179
        %v2181 = vrot.slane %v1904, 3
        %v2182 = vsel %vm418, %v2179, %v2181
        %v2183 = vrot.slane %v1905, 3
        %v2184 = vrot.slane %v1906, 3
        %v2185 = vsel %vm418, %v2183, %v2184
        %v2186 = vrot.slane %v1907, 3
        %v2187 = vsel %vm418, %v2184, %v2186
        %v2188 = vrot.slane %v1908, 3
        %v2189 = vrot.slane %v1909, 3
        %v2190 = vsel %vm418, %v2188, %v2189
        %v2191 = vrot.slane %v1910, 3
        %v2192 = vsel %vm418, %v2189, %v2191
        %v2193 = vrot.slane %v1911, 3
        %v2194 = vrot.slane %v1912, 3
        %v2195 = vsel %vm418, %v2193, %v2194
        %v2196 = vrot.slane %v1913, 3
        %v2197 = vsel %vm418, %v2194, %v2196
        %v2198 = vrot.slane %v1914, 3
        %v2199 = vrot.slane %v1915, 3
        %v2200 = vsel %vm418, %v2198, %v2199
        %v2201 = vrot.slane %v1916, 3
        %v2202 = vsel %vm418, %v2199, %v2201
        %v2203 = vrot.slane %v1917, 3
        %v2204 = vrot.slane %v1918, 3
        %v2205 = vsel %vm418, %v2203, %v2204
        %v2206 = vrot.slane %v1919, 3
        %v2207 = vsel %vm418, %v2204, %v2206
        %v2208 = vrot.slane %v1872, 4
        %v2209 = vrot.slane %v1873, 4
        %v2210 = vsel %vm499, %v2208, %v2209
        %v2211 = vrot.slane %v1874, 4
        %v2212 = vsel %vm499, %v2209, %v2211
        %v2213 = vrot.slane %v1875, 4
        %v2214 = vrot.slane %v1876, 4
        %v2215 = vsel %vm499, %v2213, %v2214
        %v2216 = vrot.slane %v1877, 4
        %v2217 = vsel %vm499, %v2214, %v2216
        %v2218 = vrot.slane %v1878, 4
        %v2219 = vrot.slane %v1879, 4
        %v2220 = vsel %vm499, %v2218, %v2219
        %v2221 = vrot.slane %v1880, 4
        %v2222 = vsel %vm499, %v2219, %v2221
        %v2223 = vrot.slane %v1881, 4
        %v2224 = vrot.slane %v1882, 4
        %v2225 = vsel %vm499, %v2223, %v2224
        %v2226 = vrot.slane %v1883, 4
        %v2227 = vsel %vm499, %v2224, %v2226
        %v2228 = vrot.slane %v1884, 4
        %v2229 = vrot.slane %v1885, 4
        %v2230 = vsel %vm499, %v2228, %v2229
        %v2231 = vrot.slane %v1886, 4
        %v2232 = vsel %vm499, %v2229, %v2231
        %v2233 = vrot.slane %v1887, 4
        %v2234 = vrot.slane %v1888, 4
        %v2235 = vsel %vm499, %v2233, %v2234
        %v2236 = vrot.slane %v1889, 4
        %v2237 = vsel %vm499, %v2234, %v2236
        %v2238 = vrot.slane %v1890, 4
        %v2239 = vrot.slane %v1891, 4
        %v2240 = vsel %vm499, %v2238, %v2239
        %v2241 = vrot.slane %v1892, 4
        %v2242 = vsel %vm499, %v2239, %v2241
        %v2243 = vrot.slane %v1893, 4
        %v2244 = vrot.slane %v1894, 4
        %v2245 = vsel %vm499, %v2243, %v2244
        %v2246 = vrot.slane %v1895, 4
        %v2247 = vsel %vm499, %v2244, %v2246
        %v2248 = vrot.slane %v1896, 4
        %v2249 = vrot.slane %v1897, 4
        %v2250 = vsel %vm499, %v2248, %v2249
        %v2251 = vrot.slane %v1898, 4
        %v2252 = vsel %vm499, %v2249, %v2251
        %v2253 = vrot.slane %v1899, 4
        %v2254 = vrot.slane %v1900, 4
        %v2255 = vsel %vm499, %v2253, %v2254
        %v2256 = vrot.slane %v1901, 4
        %v2257 = vsel %vm499, %v2254, %v2256
        %v2258 = vrot.slane %v1902, 4
        %v2259 = vrot.slane %v1903, 4
        %v2260 = vsel %vm499, %v2258, %v2259
        %v2261 = vrot.slane %v1904, 4
        %v2262 = vsel %vm499, %v2259, %v2261
        %v2263 = vrot.slane %v1905, 4
        %v2264 = vrot.slane %v1906, 4
        %v2265 = vsel %vm499, %v2263, %v2264
        %v2266 = vrot.slane %v1907, 4
        %v2267 = vsel %vm499, %v2264, %v2266
        %v2268 = vrot.slane %v1908, 4
        %v2269 = vrot.slane %v1909, 4
        %v2270 = vsel %vm499, %v2268, %v2269
        %v2271 = vrot.slane %v1910, 4
        %v2272 = vsel %vm499, %v2269, %v2271
        %v2273 = vrot.slane %v1911, 4
        %v2274 = vrot.slane %v1912, 4
        %v2275 = vsel %vm499, %v2273, %v2274
        %v2276 = vrot.slane %v1913, 4
        %v2277 = vsel %vm499, %v2274, %v2276
        %v2278 = vrot.slane %v1914, 4
        %v2279 = vrot.slane %v1915, 4
        %v2280 = vsel %vm499, %v2278, %v2279
        %v2281 = vrot.slane %v1916, 4
        %v2282 = vsel %vm499, %v2279, %v2281
        %v2283 = vrot.slane %v1917, 4
        %v2284 = vrot.slane %v1918, 4
        %v2285 = vsel %vm499, %v2283, %v2284
        %v2286 = vrot.slane %v1919, 4
        %v2287 = vsel %vm499, %v2284, %v2286
        %2288 = vrot.lane.b32.xlu0 %v259, 4
        %v2289 = vpop.permute.xlu0 %2288
        %2290 = vrot.lane.b32.xlu0 %v261, 4
        %v2291 = vpop.permute.xlu0 %2290
        %2292 = vrot.lane.b32.xlu0 %v264, 4
        %v2293 = vpop.permute.xlu0 %2292
        %2294 = vrot.lane.b32.xlu0 %v266, 4
        %v2295 = vpop.permute.xlu0 %2294
        %2296 = vrot.lane.b32.xlu0 %v269, 4
        %v2297 = vpop.permute.xlu0 %2296
        %2298 = vrot.lane.b32.xlu0 %v271, 4
        %v2299 = vpop.permute.xlu0 %2298
        %2300 = vrot.lane.b32.xlu0 %v274, 4
        %v2301 = vpop.permute.xlu0 %2300
        %2302 = vrot.lane.b32.xlu0 %v276, 4
        %v2303 = vpop.permute.xlu0 %2302
        %2304 = vrot.lane.b32.xlu0 %v279, 4
        %v2305 = vpop.permute.xlu0 %2304
        %2306 = vrot.lane.b32.xlu0 %v281, 4
        %v2307 = vpop.permute.xlu0 %2306
        %2308 = vrot.lane.b32.xlu0 %v284, 4
        %v2309 = vpop.permute.xlu0 %2308
        %2310 = vrot.lane.b32.xlu0 %v286, 4
        %v2311 = vpop.permute.xlu0 %2310
        %2312 = vrot.lane.b32.xlu0 %v289, 4
        %v2313 = vpop.permute.xlu0 %2312
        %2314 = vrot.lane.b32.xlu0 %v291, 4
        %v2315 = vpop.permute.xlu0 %2314
        %2316 = vrot.lane.b32.xlu0 %v294, 4
        %v2317 = vpop.permute.xlu0 %2316
        %2318 = vrot.lane.b32.xlu0 %v296, 4
        %v2319 = vpop.permute.xlu0 %2318
        %2320 = vrot.lane.b32.xlu0 %v299, 4
        %v2321 = vpop.permute.xlu0 %2320
        %2322 = vrot.lane.b32.xlu0 %v301, 4
        %v2323 = vpop.permute.xlu0 %2322
        %2324 = vrot.lane.b32.xlu0 %v304, 4
        %v2325 = vpop.permute.xlu0 %2324
        %2326 = vrot.lane.b32.xlu0 %v306, 4
        %v2327 = vpop.permute.xlu0 %2326
        %2328 = vrot.lane.b32.xlu0 %v309, 4
        %v2329 = vpop.permute.xlu0 %2328
        %2330 = vrot.lane.b32.xlu0 %v311, 4
        %v2331 = vpop.permute.xlu0 %2330
        %2332 = vrot.lane.b32.xlu0 %v314, 4
        %v2333 = vpop.permute.xlu0 %2332
        %2334 = vrot.lane.b32.xlu0 %v316, 4
        %v2335 = vpop.permute.xlu0 %2334
        %2336 = vrot.lane.b32.xlu0 %v319, 4
        %v2337 = vpop.permute.xlu0 %2336
        %2338 = vrot.lane.b32.xlu0 %v321, 4
        %v2339 = vpop.permute.xlu0 %2338
        %2340 = vrot.lane.b32.xlu0 %v324, 4
        %v2341 = vpop.permute.xlu0 %2340
        %2342 = vrot.lane.b32.xlu0 %v326, 4
        %v2343 = vpop.permute.xlu0 %2342
        %2344 = vrot.lane.b32.xlu0 %v329, 4
        %v2345 = vpop.permute.xlu0 %2344
        %2346 = vrot.lane.b32.xlu0 %v331, 4
        %v2347 = vpop.permute.xlu0 %2346
        %2348 = vrot.lane.b32.xlu0 %v334, 4
        %v2349 = vpop.permute.xlu0 %2348
        %2350 = vrot.lane.b32.xlu0 %v336, 4
        %v2351 = vpop.permute.xlu0 %2350
        %2384 = vrot.lane.b32.xlu0 %v340, 8
        %v2385 = vpop.permute.xlu0 %2384
        %2386 = vrot.lane.b32.xlu0 %v342, 8
        %v2387 = vpop.permute.xlu0 %2386
        %2388 = vrot.lane.b32.xlu0 %v345, 8
        %v2389 = vpop.permute.xlu0 %2388
        %2390 = vrot.lane.b32.xlu0 %v347, 8
        %v2391 = vpop.permute.xlu0 %2390
        %2392 = vrot.lane.b32.xlu0 %v350, 8
        %v2393 = vpop.permute.xlu0 %2392
        %2394 = vrot.lane.b32.xlu0 %v352, 8
        %v2395 = vpop.permute.xlu0 %2394
        %2396 = vrot.lane.b32.xlu0 %v355, 8
        %v2397 = vpop.permute.xlu0 %2396
        %2398 = vrot.lane.b32.xlu0 %v357, 8
        %v2399 = vpop.permute.xlu0 %2398
        %2400 = vrot.lane.b32.xlu0 %v360, 8
        %v2401 = vpop.permute.xlu0 %2400
        %2402 = vrot.lane.b32.xlu0 %v362, 8
        %v2403 = vpop.permute.xlu0 %2402
        %2404 = vrot.lane.b32.xlu0 %v365, 8
        %v2405 = vpop.permute.xlu0 %2404
        %2406 = vrot.lane.b32.xlu0 %v367, 8
        %v2407 = vpop.permute.xlu0 %2406
        %2408 = vrot.lane.b32.xlu0 %v370, 8
        %v2409 = vpop.permute.xlu0 %2408
        %2410 = vrot.lane.b32.xlu0 %v372, 8
        %v2411 = vpop.permute.xlu0 %2410
        %2412 = vrot.lane.b32.xlu0 %v375, 8
        %v2413 = vpop.permute.xlu0 %2412
        %2414 = vrot.lane.b32.xlu0 %v377, 8
        %v2415 = vpop.permute.xlu0 %2414
        %2416 = vrot.lane.b32.xlu0 %v380, 8
        %v2417 = vpop.permute.xlu0 %2416
        %2418 = vrot.lane.b32.xlu0 %v382, 8
        %v2419 = vpop.permute.xlu0 %2418
        %2420 = vrot.lane.b32.xlu0 %v385, 8
        %v2421 = vpop.permute.xlu0 %2420
        %2422 = vrot.lane.b32.xlu0 %v387, 8
        %v2423 = vpop.permute.xlu0 %2422
        %2424 = vrot.lane.b32.xlu0 %v390, 8
        %v2425 = vpop.permute.xlu0 %2424
        %2426 = vrot.lane.b32.xlu0 %v392, 8
        %v2427 = vpop.permute.xlu0 %2426
        %2428 = vrot.lane.b32.xlu0 %v395, 8
        %v2429 = vpop.permute.xlu0 %2428
        %2430 = vrot.lane.b32.xlu0 %v397, 8
        %v2431 = vpop.permute.xlu0 %2430
        %2432 = vrot.lane.b32.xlu0 %v400, 8
        %v2433 = vpop.permute.xlu0 %2432
        %2434 = vrot.lane.b32.xlu0 %v402, 8
        %v2435 = vpop.permute.xlu0 %2434
        %2436 = vrot.lane.b32.xlu0 %v405, 8
        %v2437 = vpop.permute.xlu0 %2436
        %2438 = vrot.lane.b32.xlu0 %v407, 8
        %v2439 = vpop.permute.xlu0 %2438
        %2440 = vrot.lane.b32.xlu0 %v410, 8
        %v2441 = vpop.permute.xlu0 %2440
        %2442 = vrot.lane.b32.xlu0 %v412, 8
        %v2443 = vpop.permute.xlu0 %2442
        %2444 = vrot.lane.b32.xlu0 %v415, 8
        %v2445 = vpop.permute.xlu0 %2444
        %2446 = vrot.lane.b32.xlu0 %v417, 8
        %v2447 = vpop.permute.xlu0 %2446
        %2480 = vrot.lane.b32.xlu0 %v421, 12
        %v2481 = vpop.permute.xlu0 %2480
        %2482 = vrot.lane.b32.xlu0 %v423, 12
        %v2483 = vpop.permute.xlu0 %2482
        %2484 = vrot.lane.b32.xlu0 %v426, 12
        %v2485 = vpop.permute.xlu0 %2484
        %2486 = vrot.lane.b32.xlu0 %v428, 12
        %v2487 = vpop.permute.xlu0 %2486
        %2488 = vrot.lane.b32.xlu0 %v431, 12
        %v2489 = vpop.permute.xlu0 %2488
        %2490 = vrot.lane.b32.xlu0 %v433, 12
        %v2491 = vpop.permute.xlu0 %2490
        %2492 = vrot.lane.b32.xlu0 %v436, 12
        %v2493 = vpop.permute.xlu0 %2492
        %2494 = vrot.lane.b32.xlu0 %v438, 12
        %v2495 = vpop.permute.xlu0 %2494
        %2496 = vrot.lane.b32.xlu0 %v441, 12
        %v2497 = vpop.permute.xlu0 %2496
        %2498 = vrot.lane.b32.xlu0 %v443, 12
        %v2499 = vpop.permute.xlu0 %2498
        %2500 = vrot.lane.b32.xlu0 %v446, 12
        %v2501 = vpop.permute.xlu0 %2500
        %2502 = vrot.lane.b32.xlu0 %v448, 12
        %v2503 = vpop.permute.xlu0 %2502
        %2504 = vrot.lane.b32.xlu0 %v451, 12
        %v2505 = vpop.permute.xlu0 %2504
        %2506 = vrot.lane.b32.xlu0 %v453, 12
        %v2507 = vpop.permute.xlu0 %2506
        %2508 = vrot.lane.b32.xlu0 %v456, 12
        %v2509 = vpop.permute.xlu0 %2508
        %2510 = vrot.lane.b32.xlu0 %v458, 12
        %v2511 = vpop.permute.xlu0 %2510
        %2512 = vrot.lane.b32.xlu0 %v461, 12
        %v2513 = vpop.permute.xlu0 %2512
        %2514 = vrot.lane.b32.xlu0 %v463, 12
        %v2515 = vpop.permute.xlu0 %2514
        %2516 = vrot.lane.b32.xlu0 %v466, 12
        %v2517 = vpop.permute.xlu0 %2516
        %2518 = vrot.lane.b32.xlu0 %v468, 12
        %v2519 = vpop.permute.xlu0 %2518
        %2520 = vrot.lane.b32.xlu0 %v471, 12
        %v2521 = vpop.permute.xlu0 %2520
        %2522 = vrot.lane.b32.xlu0 %v473, 12
        %v2523 = vpop.permute.xlu0 %2522
        %2524 = vrot.lane.b32.xlu0 %v476, 12
        %v2525 = vpop.permute.xlu0 %2524
        %2526 = vrot.lane.b32.xlu0 %v478, 12
        %v2527 = vpop.permute.xlu0 %2526
        %2528 = vrot.lane.b32.xlu0 %v481, 12
        %v2529 = vpop.permute.xlu0 %2528
        %2530 = vrot.lane.b32.xlu0 %v483, 12
        %v2531 = vpop.permute.xlu0 %2530
        %2532 = vrot.lane.b32.xlu0 %v486, 12
        %v2533 = vpop.permute.xlu0 %2532
        %2534 = vrot.lane.b32.xlu0 %v488, 12
        %v2535 = vpop.permute.xlu0 %2534
        %2536 = vrot.lane.b32.xlu0 %v491, 12
        %v2537 = vpop.permute.xlu0 %2536
        %2538 = vrot.lane.b32.xlu0 %v493, 12
        %v2539 = vpop.permute.xlu0 %2538
        %2540 = vrot.lane.b32.xlu0 %v496, 12
        %v2541 = vpop.permute.xlu0 %2540
        %2542 = vrot.lane.b32.xlu0 %v498, 12
        %v2543 = vpop.permute.xlu0 %2542
        %2576 = vrot.lane.b32.xlu0 %v502, 16
        %v2577 = vpop.permute.xlu0 %2576
        %2578 = vrot.lane.b32.xlu0 %v504, 16
        %v2579 = vpop.permute.xlu0 %2578
        %2580 = vrot.lane.b32.xlu0 %v507, 16
        %v2581 = vpop.permute.xlu0 %2580
        %2582 = vrot.lane.b32.xlu0 %v509, 16
        %v2583 = vpop.permute.xlu0 %2582
        %2584 = vrot.lane.b32.xlu0 %v512, 16
        %v2585 = vpop.permute.xlu0 %2584
        %2586 = vrot.lane.b32.xlu0 %v514, 16
        %v2587 = vpop.permute.xlu0 %2586
        %2588 = vrot.lane.b32.xlu0 %v517, 16
        %v2589 = vpop.permute.xlu0 %2588
        %2590 = vrot.lane.b32.xlu0 %v519, 16
        %v2591 = vpop.permute.xlu0 %2590
        %2592 = vrot.lane.b32.xlu0 %v522, 16
        %v2593 = vpop.permute.xlu0 %2592
        %2594 = vrot.lane.b32.xlu0 %v524, 16
        %v2595 = vpop.permute.xlu0 %2594
        %2596 = vrot.lane.b32.xlu0 %v527, 16
        %v2597 = vpop.permute.xlu0 %2596
        %2598 = vrot.lane.b32.xlu0 %v529, 16
        %v2599 = vpop.permute.xlu0 %2598
        %2600 = vrot.lane.b32.xlu0 %v532, 16
        %v2601 = vpop.permute.xlu0 %2600
        %2602 = vrot.lane.b32.xlu0 %v534, 16
        %v2603 = vpop.permute.xlu0 %2602
        %2604 = vrot.lane.b32.xlu0 %v537, 16
        %v2605 = vpop.permute.xlu0 %2604
        %2606 = vrot.lane.b32.xlu0 %v539, 16
        %v2607 = vpop.permute.xlu0 %2606
        %2608 = vrot.lane.b32.xlu0 %v542, 16
        %v2609 = vpop.permute.xlu0 %2608
        %2610 = vrot.lane.b32.xlu0 %v544, 16
        %v2611 = vpop.permute.xlu0 %2610
        %2612 = vrot.lane.b32.xlu0 %v547, 16
        %v2613 = vpop.permute.xlu0 %2612
        %2614 = vrot.lane.b32.xlu0 %v549, 16
        %v2615 = vpop.permute.xlu0 %2614
        %2616 = vrot.lane.b32.xlu0 %v552, 16
        %v2617 = vpop.permute.xlu0 %2616
        %2618 = vrot.lane.b32.xlu0 %v554, 16
        %v2619 = vpop.permute.xlu0 %2618
        %2620 = vrot.lane.b32.xlu0 %v557, 16
        %v2621 = vpop.permute.xlu0 %2620
        %2622 = vrot.lane.b32.xlu0 %v559, 16
        %v2623 = vpop.permute.xlu0 %2622
        %2624 = vrot.lane.b32.xlu0 %v562, 16
        %v2625 = vpop.permute.xlu0 %2624
        %2626 = vrot.lane.b32.xlu0 %v564, 16
        %v2627 = vpop.permute.xlu0 %2626
        %2628 = vrot.lane.b32.xlu0 %v567, 16
        %v2629 = vpop.permute.xlu0 %2628
        %2630 = vrot.lane.b32.xlu0 %v569, 16
        %v2631 = vpop.permute.xlu0 %2630
        %2632 = vrot.lane.b32.xlu0 %v572, 16
        %v2633 = vpop.permute.xlu0 %2632
        %2634 = vrot.lane.b32.xlu0 %v574, 16
        %v2635 = vpop.permute.xlu0 %2634
        %2636 = vrot.lane.b32.xlu0 %v577, 16
        %v2637 = vpop.permute.xlu0 %2636
        %2638 = vrot.lane.b32.xlu0 %v579, 16
        %v2639 = vpop.permute.xlu0 %2638
        %2672 = vrot.lane.b32.xlu0 %v583, 20
        %v2673 = vpop.permute.xlu0 %2672
        %2674 = vrot.lane.b32.xlu0 %v584, 20
        %v2675 = vpop.permute.xlu0 %2674
        %2676 = vrot.lane.b32.xlu0 %v586, 20
        %v2677 = vpop.permute.xlu0 %2676
        %2678 = vrot.lane.b32.xlu0 %v587, 20
        %v2679 = vpop.permute.xlu0 %2678
        %2680 = vrot.lane.b32.xlu0 %v589, 20
        %v2681 = vpop.permute.xlu0 %2680
        %2682 = vrot.lane.b32.xlu0 %v590, 20
        %v2683 = vpop.permute.xlu0 %2682
        %2684 = vrot.lane.b32.xlu0 %v592, 20
        %v2685 = vpop.permute.xlu0 %2684
        %2686 = vrot.lane.b32.xlu0 %v593, 20
        %v2687 = vpop.permute.xlu0 %2686
        %2688 = vrot.lane.b32.xlu0 %v595, 20
        %v2689 = vpop.permute.xlu0 %2688
        %2690 = vrot.lane.b32.xlu0 %v596, 20
        %v2691 = vpop.permute.xlu0 %2690
        %2692 = vrot.lane.b32.xlu0 %v598, 20
        %v2693 = vpop.permute.xlu0 %2692
        %2694 = vrot.lane.b32.xlu0 %v599, 20
        %v2695 = vpop.permute.xlu0 %2694
        %2696 = vrot.lane.b32.xlu0 %v601, 20
        %v2697 = vpop.permute.xlu0 %2696
        %2698 = vrot.lane.b32.xlu0 %v602, 20
        %v2699 = vpop.permute.xlu0 %2698
        %2700 = vrot.lane.b32.xlu0 %v604, 20
        %v2701 = vpop.permute.xlu0 %2700
        %2702 = vrot.lane.b32.xlu0 %v605, 20
        %v2703 = vpop.permute.xlu0 %2702
        %2704 = vrot.lane.b32.xlu0 %v607, 20
        %v2705 = vpop.permute.xlu0 %2704
        %2706 = vrot.lane.b32.xlu0 %v608, 20
        %v2707 = vpop.permute.xlu0 %2706
        %2708 = vrot.lane.b32.xlu0 %v610, 20
        %v2709 = vpop.permute.xlu0 %2708
        %2710 = vrot.lane.b32.xlu0 %v611, 20
        %v2711 = vpop.permute.xlu0 %2710
        %2712 = vrot.lane.b32.xlu0 %v613, 20
        %v2713 = vpop.permute.xlu0 %2712
        %2714 = vrot.lane.b32.xlu0 %v614, 20
        %v2715 = vpop.permute.xlu0 %2714
        %2716 = vrot.lane.b32.xlu0 %v616, 20
        %v2717 = vpop.permute.xlu0 %2716
        %2718 = vrot.lane.b32.xlu0 %v617, 20
        %v2719 = vpop.permute.xlu0 %2718
        %2720 = vrot.lane.b32.xlu0 %v619, 20
        %v2721 = vpop.permute.xlu0 %2720
        %2722 = vrot.lane.b32.xlu0 %v620, 20
        %v2723 = vpop.permute.xlu0 %2722
        %2724 = vrot.lane.b32.xlu0 %v622, 20
        %v2725 = vpop.permute.xlu0 %2724
        %2726 = vrot.lane.b32.xlu0 %v623, 20
        %v2727 = vpop.permute.xlu0 %2726
        %2728 = vrot.lane.b32.xlu0 %v625, 20
        %v2729 = vpop.permute.xlu0 %2728
        %2730 = vrot.lane.b32.xlu0 %v626, 20
        %v2731 = vpop.permute.xlu0 %2730
        %2732 = vrot.lane.b32.xlu0 %v628, 20
        %v2733 = vpop.permute.xlu0 %2732
        %2734 = vrot.lane.b32.xlu0 %v629, 20
        %v2735 = vpop.permute.xlu0 %2734
        %2768 = vrot.lane.b32.xlu0 %v681, 24
        %v2769 = vpop.permute.xlu0 %2768
        %2770 = vrot.lane.b32.xlu0 %v683, 24
        %v2771 = vpop.permute.xlu0 %2770
        %2772 = vrot.lane.b32.xlu0 %v686, 24
        %v2773 = vpop.permute.xlu0 %2772
        %2774 = vrot.lane.b32.xlu0 %v688, 24
        %v2775 = vpop.permute.xlu0 %2774
        %2776 = vrot.lane.b32.xlu0 %v691, 24
        %v2777 = vpop.permute.xlu0 %2776
        %2778 = vrot.lane.b32.xlu0 %v693, 24
        %v2779 = vpop.permute.xlu0 %2778
        %2780 = vrot.lane.b32.xlu0 %v696, 24
        %v2781 = vpop.permute.xlu0 %2780
        %2782 = vrot.lane.b32.xlu0 %v698, 24
        %v2783 = vpop.permute.xlu0 %2782
        %2784 = vrot.lane.b32.xlu0 %v701, 24
        %v2785 = vpop.permute.xlu0 %2784
        %2786 = vrot.lane.b32.xlu0 %v703, 24
        %v2787 = vpop.permute.xlu0 %2786
        %2788 = vrot.lane.b32.xlu0 %v706, 24
        %v2789 = vpop.permute.xlu0 %2788
        %2790 = vrot.lane.b32.xlu0 %v708, 24
        %v2791 = vpop.permute.xlu0 %2790
        %2792 = vrot.lane.b32.xlu0 %v711, 24
        %v2793 = vpop.permute.xlu0 %2792
        %2794 = vrot.lane.b32.xlu0 %v713, 24
        %v2795 = vpop.permute.xlu0 %2794
        %2796 = vrot.lane.b32.xlu0 %v716, 24
        %v2797 = vpop.permute.xlu0 %2796
        %2798 = vrot.lane.b32.xlu0 %v718, 24
        %v2799 = vpop.permute.xlu0 %2798
        %2800 = vrot.lane.b32.xlu0 %v721, 24
        %v2801 = vpop.permute.xlu0 %2800
        %2802 = vrot.lane.b32.xlu0 %v723, 24
        %v2803 = vpop.permute.xlu0 %2802
        %2804 = vrot.lane.b32.xlu0 %v726, 24
        %v2805 = vpop.permute.xlu0 %2804
        %2806 = vrot.lane.b32.xlu0 %v728, 24
        %v2807 = vpop.permute.xlu0 %2806
        %2808 = vrot.lane.b32.xlu0 %v731, 24
        %v2809 = vpop.permute.xlu0 %2808
        %2810 = vrot.lane.b32.xlu0 %v733, 24
        %v2811 = vpop.permute.xlu0 %2810
        %2812 = vrot.lane.b32.xlu0 %v736, 24
        %v2813 = vpop.permute.xlu0 %2812
        %2814 = vrot.lane.b32.xlu0 %v738, 24
        %v2815 = vpop.permute.xlu0 %2814
        %2816 = vrot.lane.b32.xlu0 %v741, 24
        %v2817 = vpop.permute.xlu0 %2816
        %2818 = vrot.lane.b32.xlu0 %v743, 24
        %v2819 = vpop.permute.xlu0 %2818
        %2820 = vrot.lane.b32.xlu0 %v746, 24
        %v2821 = vpop.permute.xlu0 %2820
        %2822 = vrot.lane.b32.xlu0 %v748, 24
        %v2823 = vpop.permute.xlu0 %2822
        %2824 = vrot.lane.b32.xlu0 %v751, 24
        %v2825 = vpop.permute.xlu0 %2824
        %2826 = vrot.lane.b32.xlu0 %v753, 24
        %v2827 = vpop.permute.xlu0 %2826
        %2828 = vrot.lane.b32.xlu0 %v756, 24
        %v2829 = vpop.permute.xlu0 %2828
        %2830 = vrot.lane.b32.xlu0 %v758, 24
        %v2831 = vpop.permute.xlu0 %2830
        %2864 = vrot.lane.b32.xlu0 %v761, 28
        %v2865 = vpop.permute.xlu0 %2864
        %2866 = vrot.lane.b32.xlu0 %v763, 28
        %v2867 = vpop.permute.xlu0 %2866
        %2868 = vrot.lane.b32.xlu0 %v766, 28
        %v2869 = vpop.permute.xlu0 %2868
        %2870 = vrot.lane.b32.xlu0 %v768, 28
        %v2871 = vpop.permute.xlu0 %2870
        %2872 = vrot.lane.b32.xlu0 %v771, 28
        %v2873 = vpop.permute.xlu0 %2872
        %2874 = vrot.lane.b32.xlu0 %v773, 28
        %v2875 = vpop.permute.xlu0 %2874
        %2876 = vrot.lane.b32.xlu0 %v776, 28
        %v2877 = vpop.permute.xlu0 %2876
        %2878 = vrot.lane.b32.xlu0 %v778, 28
        %v2879 = vpop.permute.xlu0 %2878
        %2880 = vrot.lane.b32.xlu0 %v781, 28
        %v2881 = vpop.permute.xlu0 %2880
        %2882 = vrot.lane.b32.xlu0 %v783, 28
        %v2883 = vpop.permute.xlu0 %2882
        %2884 = vrot.lane.b32.xlu0 %v786, 28
        %v2885 = vpop.permute.xlu0 %2884
        %2886 = vrot.lane.b32.xlu0 %v788, 28
        %v2887 = vpop.permute.xlu0 %2886
        %2888 = vrot.lane.b32.xlu0 %v791, 28
        %v2889 = vpop.permute.xlu0 %2888
        %2890 = vrot.lane.b32.xlu0 %v793, 28
        %v2891 = vpop.permute.xlu0 %2890
        %2892 = vrot.lane.b32.xlu0 %v796, 28
        %v2893 = vpop.permute.xlu0 %2892
        %2894 = vrot.lane.b32.xlu0 %v798, 28
        %v2895 = vpop.permute.xlu0 %2894
        %2896 = vrot.lane.b32.xlu0 %v801, 28
        %v2897 = vpop.permute.xlu0 %2896
        %2898 = vrot.lane.b32.xlu0 %v803, 28
        %v2899 = vpop.permute.xlu0 %2898
        %2900 = vrot.lane.b32.xlu0 %v806, 28
        %v2901 = vpop.permute.xlu0 %2900
        %2902 = vrot.lane.b32.xlu0 %v808, 28
        %v2903 = vpop.permute.xlu0 %2902
        %2904 = vrot.lane.b32.xlu0 %v811, 28
        %v2905 = vpop.permute.xlu0 %2904
        %2906 = vrot.lane.b32.xlu0 %v813, 28
        %v2907 = vpop.permute.xlu0 %2906
        %2908 = vrot.lane.b32.xlu0 %v816, 28
        %v2909 = vpop.permute.xlu0 %2908
        %2910 = vrot.lane.b32.xlu0 %v818, 28
        %v2911 = vpop.permute.xlu0 %2910
        %2912 = vrot.lane.b32.xlu0 %v821, 28
        %v2913 = vpop.permute.xlu0 %2912
        %2914 = vrot.lane.b32.xlu0 %v823, 28
        %v2915 = vpop.permute.xlu0 %2914
        %2916 = vrot.lane.b32.xlu0 %v826, 28
        %v2917 = vpop.permute.xlu0 %2916
        %2918 = vrot.lane.b32.xlu0 %v828, 28
        %v2919 = vpop.permute.xlu0 %2918
        %2920 = vrot.lane.b32.xlu0 %v831, 28
        %v2921 = vpop.permute.xlu0 %2920
        %2922 = vrot.lane.b32.xlu0 %v833, 28
        %v2923 = vpop.permute.xlu0 %2922
        %2924 = vrot.lane.b32.xlu0 %v836, 28
        %v2925 = vpop.permute.xlu0 %2924
        %2926 = vrot.lane.b32.xlu0 %v838, 28
        %v2927 = vpop.permute.xlu0 %2926
        %2960 = vrot.lane.b32.xlu0 %v841, 32
        %v2961 = vpop.permute.xlu0 %2960
        %2962 = vrot.lane.b32.xlu0 %v843, 32
        %v2963 = vpop.permute.xlu0 %2962
        %2964 = vrot.lane.b32.xlu0 %v846, 32
        %v2965 = vpop.permute.xlu0 %2964
        %2966 = vrot.lane.b32.xlu0 %v848, 32
        %v2967 = vpop.permute.xlu0 %2966
        %2968 = vrot.lane.b32.xlu0 %v851, 32
        %v2969 = vpop.permute.xlu0 %2968
        %2970 = vrot.lane.b32.xlu0 %v853, 32
        %v2971 = vpop.permute.xlu0 %2970
        %2972 = vrot.lane.b32.xlu0 %v856, 32
        %v2973 = vpop.permute.xlu0 %2972
        %2974 = vrot.lane.b32.xlu0 %v858, 32
        %v2975 = vpop.permute.xlu0 %2974
        %2976 = vrot.lane.b32.xlu0 %v861, 32
        %v2977 = vpop.permute.xlu0 %2976
        %2978 = vrot.lane.b32.xlu0 %v863, 32
        %v2979 = vpop.permute.xlu0 %2978
        %2980 = vrot.lane.b32.xlu0 %v866, 32
        %v2981 = vpop.permute.xlu0 %2980
        %2982 = vrot.lane.b32.xlu0 %v868, 32
        %v2983 = vpop.permute.xlu0 %2982
        %2984 = vrot.lane.b32.xlu0 %v871, 32
        %v2985 = vpop.permute.xlu0 %2984
        %2986 = vrot.lane.b32.xlu0 %v873, 32
        %v2987 = vpop.permute.xlu0 %2986
        %2988 = vrot.lane.b32.xlu0 %v876, 32
        %v2989 = vpop.permute.xlu0 %2988
        %2990 = vrot.lane.b32.xlu0 %v878, 32
        %v2991 = vpop.permute.xlu0 %2990
        %2992 = vrot.lane.b32.xlu0 %v881, 32
        %v2993 = vpop.permute.xlu0 %2992
        %2994 = vrot.lane.b32.xlu0 %v883, 32
        %v2995 = vpop.permute.xlu0 %2994
        %2996 = vrot.lane.b32.xlu0 %v886, 32
        %v2997 = vpop.permute.xlu0 %2996
        %2998 = vrot.lane.b32.xlu0 %v888, 32
        %v2999 = vpop.permute.xlu0 %2998
        %3000 = vrot.lane.b32.xlu0 %v891, 32
        %v3001 = vpop.permute.xlu0 %3000
        %3002 = vrot.lane.b32.xlu0 %v893, 32
        %v3003 = vpop.permute.xlu0 %3002
        %3004 = vrot.lane.b32.xlu0 %v896, 32
        %v3005 = vpop.permute.xlu0 %3004
        %3006 = vrot.lane.b32.xlu0 %v898, 32
        %v3007 = vpop.permute.xlu0 %3006
        %3008 = vrot.lane.b32.xlu0 %v901, 32
        %v3009 = vpop.permute.xlu0 %3008
        %3010 = vrot.lane.b32.xlu0 %v903, 32
        %v3011 = vpop.permute.xlu0 %3010
        %3012 = vrot.lane.b32.xlu0 %v906, 32
        %v3013 = vpop.permute.xlu0 %3012
        %3014 = vrot.lane.b32.xlu0 %v908, 32
        %v3015 = vpop.permute.xlu0 %3014
        %3016 = vrot.lane.b32.xlu0 %v911, 32
        %v3017 = vpop.permute.xlu0 %3016
        %3018 = vrot.lane.b32.xlu0 %v913, 32
        %v3019 = vpop.permute.xlu0 %3018
        %3020 = vrot.lane.b32.xlu0 %v916, 32
        %v3021 = vpop.permute.xlu0 %3020
        %3022 = vrot.lane.b32.xlu0 %v918, 32
        %v3023 = vpop.permute.xlu0 %3022
        %3056 = vrot.lane.b32.xlu0 %v921, 36
        %v3057 = vpop.permute.xlu0 %3056
        %3058 = vrot.lane.b32.xlu0 %v923, 36
        %v3059 = vpop.permute.xlu0 %3058
        %3060 = vrot.lane.b32.xlu0 %v926, 36
        %v3061 = vpop.permute.xlu0 %3060
        %3062 = vrot.lane.b32.xlu0 %v928, 36
        %v3063 = vpop.permute.xlu0 %3062
        %3064 = vrot.lane.b32.xlu0 %v931, 36
        %v3065 = vpop.permute.xlu0 %3064
        %3066 = vrot.lane.b32.xlu0 %v933, 36
        %v3067 = vpop.permute.xlu0 %3066
        %3068 = vrot.lane.b32.xlu0 %v936, 36
        %v3069 = vpop.permute.xlu0 %3068
        %3070 = vrot.lane.b32.xlu0 %v938, 36
        %v3071 = vpop.permute.xlu0 %3070
        %3072 = vrot.lane.b32.xlu0 %v941, 36
        %v3073 = vpop.permute.xlu0 %3072
        %3074 = vrot.lane.b32.xlu0 %v943, 36
        %v3075 = vpop.permute.xlu0 %3074
        %3076 = vrot.lane.b32.xlu0 %v946, 36
        %v3077 = vpop.permute.xlu0 %3076
        %3078 = vrot.lane.b32.xlu0 %v948, 36
        %v3079 = vpop.permute.xlu0 %3078
        %3080 = vrot.lane.b32.xlu0 %v951, 36
        %v3081 = vpop.permute.xlu0 %3080
        %3082 = vrot.lane.b32.xlu0 %v953, 36
        %v3083 = vpop.permute.xlu0 %3082
        %3084 = vrot.lane.b32.xlu0 %v956, 36
        %v3085 = vpop.permute.xlu0 %3084
        %3086 = vrot.lane.b32.xlu0 %v958, 36
        %v3087 = vpop.permute.xlu0 %3086
        %3088 = vrot.lane.b32.xlu0 %v961, 36
        %v3089 = vpop.permute.xlu0 %3088
        %3090 = vrot.lane.b32.xlu0 %v963, 36
        %v3091 = vpop.permute.xlu0 %3090
        %3092 = vrot.lane.b32.xlu0 %v966, 36
        %v3093 = vpop.permute.xlu0 %3092
        %3094 = vrot.lane.b32.xlu0 %v968, 36
        %v3095 = vpop.permute.xlu0 %3094
        %3096 = vrot.lane.b32.xlu0 %v971, 36
        %v3097 = vpop.permute.xlu0 %3096
        %3098 = vrot.lane.b32.xlu0 %v973, 36
        %v3099 = vpop.permute.xlu0 %3098
        %3100 = vrot.lane.b32.xlu0 %v976, 36
        %v3101 = vpop.permute.xlu0 %3100
        %3102 = vrot.lane.b32.xlu0 %v978, 36
        %v3103 = vpop.permute.xlu0 %3102
        %3104 = vrot.lane.b32.xlu0 %v981, 36
        %v3105 = vpop.permute.xlu0 %3104
        %3106 = vrot.lane.b32.xlu0 %v983, 36
        %v3107 = vpop.permute.xlu0 %3106
        %3108 = vrot.lane.b32.xlu0 %v986, 36
        %v3109 = vpop.permute.xlu0 %3108
        %3110 = vrot.lane.b32.xlu0 %v988, 36
        %v3111 = vpop.permute.xlu0 %3110
        %3112 = vrot.lane.b32.xlu0 %v991, 36
        %v3113 = vpop.permute.xlu0 %3112
        %3114 = vrot.lane.b32.xlu0 %v993, 36
        %v3115 = vpop.permute.xlu0 %3114
        %3116 = vrot.lane.b32.xlu0 %v996, 36
        %v3117 = vpop.permute.xlu0 %3116
        %3118 = vrot.lane.b32.xlu0 %v998, 36
        %v3119 = vpop.permute.xlu0 %3118
        %3152 = vrot.lane.b32.xlu0 %v1002, 40
        %v3153 = vpop.permute.xlu0 %3152
        %3154 = vrot.lane.b32.xlu0 %v1003, 40
        %v3155 = vpop.permute.xlu0 %3154
        %3156 = vrot.lane.b32.xlu0 %v1005, 40
        %v3157 = vpop.permute.xlu0 %3156
        %3158 = vrot.lane.b32.xlu0 %v1006, 40
        %v3159 = vpop.permute.xlu0 %3158
        %3160 = vrot.lane.b32.xlu0 %v1008, 40
        %v3161 = vpop.permute.xlu0 %3160
        %3162 = vrot.lane.b32.xlu0 %v1009, 40
        %v3163 = vpop.permute.xlu0 %3162
        %3164 = vrot.lane.b32.xlu0 %v1011, 40
        %v3165 = vpop.permute.xlu0 %3164
        %3166 = vrot.lane.b32.xlu0 %v1012, 40
        %v3167 = vpop.permute.xlu0 %3166
        %3168 = vrot.lane.b32.xlu0 %v1014, 40
        %v3169 = vpop.permute.xlu0 %3168
        %3170 = vrot.lane.b32.xlu0 %v1015, 40
        %v3171 = vpop.permute.xlu0 %3170
        %3172 = vrot.lane.b32.xlu0 %v1017, 40
        %v3173 = vpop.permute.xlu0 %3172
        %3174 = vrot.lane.b32.xlu0 %v1018, 40
        %v3175 = vpop.permute.xlu0 %3174
        %3176 = vrot.lane.b32.xlu0 %v1020, 40
        %v3177 = vpop.permute.xlu0 %3176
        %3178 = vrot.lane.b32.xlu0 %v1021, 40
        %v3179 = vpop.permute.xlu0 %3178
        %3180 = vrot.lane.b32.xlu0 %v1023, 40
        %v3181 = vpop.permute.xlu0 %3180
        %3182 = vrot.lane.b32.xlu0 %v1024, 40
        %v3183 = vpop.permute.xlu0 %3182
        %3184 = vrot.lane.b32.xlu0 %v1026, 40
        %v3185 = vpop.permute.xlu0 %3184
        %3186 = vrot.lane.b32.xlu0 %v1027, 40
        %v3187 = vpop.permute.xlu0 %3186
        %3188 = vrot.lane.b32.xlu0 %v1029, 40
        %v3189 = vpop.permute.xlu0 %3188
        %3190 = vrot.lane.b32.xlu0 %v1030, 40
        %v3191 = vpop.permute.xlu0 %3190
        %3192 = vrot.lane.b32.xlu0 %v1032, 40
        %v3193 = vpop.permute.xlu0 %3192
        %3194 = vrot.lane.b32.xlu0 %v1033, 40
        %v3195 = vpop.permute.xlu0 %3194
        %3196 = vrot.lane.b32.xlu0 %v1035, 40
        %v3197 = vpop.permute.xlu0 %3196
        %3198 = vrot.lane.b32.xlu0 %v1036, 40
        %v3199 = vpop.permute.xlu0 %3198
        %3200 = vrot.lane.b32.xlu0 %v1038, 40
        %v3201 = vpop.permute.xlu0 %3200
        %3202 = vrot.lane.b32.xlu0 %v1039, 40
        %v3203 = vpop.permute.xlu0 %3202
        %3204 = vrot.lane.b32.xlu0 %v1041, 40
        %v3205 = vpop.permute.xlu0 %3204
        %3206 = vrot.lane.b32.xlu0 %v1042, 40
        %v3207 = vpop.permute.xlu0 %3206
        %3208 = vrot.lane.b32.xlu0 %v1044, 40
        %v3209 = vpop.permute.xlu0 %3208
        %3210 = vrot.lane.b32.xlu0 %v1045, 40
        %v3211 = vpop.permute.xlu0 %3210
        %3212 = vrot.lane.b32.xlu0 %v1047, 40
        %v3213 = vpop.permute.xlu0 %3212
        %3214 = vrot.lane.b32.xlu0 %v1048, 40
        %v3215 = vpop.permute.xlu0 %3214
        %3248 = vrot.lane.b32.xlu0 %v1100, 44
        %v3249 = vpop.permute.xlu0 %3248
        %3250 = vrot.lane.b32.xlu0 %v1102, 44
        %v3251 = vpop.permute.xlu0 %3250
        %3252 = vrot.lane.b32.xlu0 %v1105, 44
        %v3253 = vpop.permute.xlu0 %3252
        %3254 = vrot.lane.b32.xlu0 %v1107, 44
        %v3255 = vpop.permute.xlu0 %3254
        %3256 = vrot.lane.b32.xlu0 %v1110, 44
        %v3257 = vpop.permute.xlu0 %3256
        %3258 = vrot.lane.b32.xlu0 %v1112, 44
        %v3259 = vpop.permute.xlu0 %3258
        %3260 = vrot.lane.b32.xlu0 %v1115, 44
        %v3261 = vpop.permute.xlu0 %3260
        %3262 = vrot.lane.b32.xlu0 %v1117, 44
        %v3263 = vpop.permute.xlu0 %3262
        %3264 = vrot.lane.b32.xlu0 %v1120, 44
        %v3265 = vpop.permute.xlu0 %3264
        %3266 = vrot.lane.b32.xlu0 %v1122, 44
        %v3267 = vpop.permute.xlu0 %3266
        %3268 = vrot.lane.b32.xlu0 %v1125, 44
        %v3269 = vpop.permute.xlu0 %3268
        %3270 = vrot.lane.b32.xlu0 %v1127, 44
        %v3271 = vpop.permute.xlu0 %3270
        %3272 = vrot.lane.b32.xlu0 %v1130, 44
        %v3273 = vpop.permute.xlu0 %3272
        %3274 = vrot.lane.b32.xlu0 %v1132, 44
        %v3275 = vpop.permute.xlu0 %3274
        %3276 = vrot.lane.b32.xlu0 %v1135, 44
        %v3277 = vpop.permute.xlu0 %3276
        %3278 = vrot.lane.b32.xlu0 %v1137, 44
        %v3279 = vpop.permute.xlu0 %3278
        %3280 = vrot.lane.b32.xlu0 %v1140, 44
        %v3281 = vpop.permute.xlu0 %3280
        %3282 = vrot.lane.b32.xlu0 %v1142, 44
        %v3283 = vpop.permute.xlu0 %3282
        %3284 = vrot.lane.b32.xlu0 %v1145, 44
        %v3285 = vpop.permute.xlu0 %3284
        %3286 = vrot.lane.b32.xlu0 %v1147, 44
        %v3287 = vpop.permute.xlu0 %3286
        %3288 = vrot.lane.b32.xlu0 %v1150, 44
        %v3289 = vpop.permute.xlu0 %3288
        %3290 = vrot.lane.b32.xlu0 %v1152, 44
        %v3291 = vpop.permute.xlu0 %3290
        %3292 = vrot.lane.b32.xlu0 %v1155, 44
        %v3293 = vpop.permute.xlu0 %3292
        %3294 = vrot.lane.b32.xlu0 %v1157, 44
        %v3295 = vpop.permute.xlu0 %3294
        %3296 = vrot.lane.b32.xlu0 %v1160, 44
        %v3297 = vpop.permute.xlu0 %3296
        %3298 = vrot.lane.b32.xlu0 %v1162, 44
        %v3299 = vpop.permute.xlu0 %3298
        %3300 = vrot.lane.b32.xlu0 %v1165, 44
        %v3301 = vpop.permute.xlu0 %3300
        %3302 = vrot.lane.b32.xlu0 %v1167, 44
        %v3303 = vpop.permute.xlu0 %3302
        %3304 = vrot.lane.b32.xlu0 %v1170, 44
        %v3305 = vpop.permute.xlu0 %3304
        %3306 = vrot.lane.b32.xlu0 %v1172, 44
        %v3307 = vpop.permute.xlu0 %3306
        %3308 = vrot.lane.b32.xlu0 %v1175, 44
        %v3309 = vpop.permute.xlu0 %3308
        %3310 = vrot.lane.b32.xlu0 %v1177, 44
        %v3311 = vpop.permute.xlu0 %3310
        %3344 = vrot.lane.b32.xlu0 %v1180, 48
        %v3345 = vpop.permute.xlu0 %3344
        %3346 = vrot.lane.b32.xlu0 %v1182, 48
        %v3347 = vpop.permute.xlu0 %3346
        %3348 = vrot.lane.b32.xlu0 %v1185, 48
        %v3349 = vpop.permute.xlu0 %3348
        %3350 = vrot.lane.b32.xlu0 %v1187, 48
        %v3351 = vpop.permute.xlu0 %3350
        %3352 = vrot.lane.b32.xlu0 %v1190, 48
        %v3353 = vpop.permute.xlu0 %3352
        %3354 = vrot.lane.b32.xlu0 %v1192, 48
        %v3355 = vpop.permute.xlu0 %3354
        %3356 = vrot.lane.b32.xlu0 %v1195, 48
        %v3357 = vpop.permute.xlu0 %3356
        %3358 = vrot.lane.b32.xlu0 %v1197, 48
        %v3359 = vpop.permute.xlu0 %3358
        %3360 = vrot.lane.b32.xlu0 %v1200, 48
        %v3361 = vpop.permute.xlu0 %3360
        %3362 = vrot.lane.b32.xlu0 %v1202, 48
        %v3363 = vpop.permute.xlu0 %3362
        %3364 = vrot.lane.b32.xlu0 %v1205, 48
        %v3365 = vpop.permute.xlu0 %3364
        %3366 = vrot.lane.b32.xlu0 %v1207, 48
        %v3367 = vpop.permute.xlu0 %3366
        %3368 = vrot.lane.b32.xlu0 %v1210, 48
        %v3369 = vpop.permute.xlu0 %3368
        %3370 = vrot.lane.b32.xlu0 %v1212, 48
        %v3371 = vpop.permute.xlu0 %3370
        %3372 = vrot.lane.b32.xlu0 %v1215, 48
        %v3373 = vpop.permute.xlu0 %3372
        %3374 = vrot.lane.b32.xlu0 %v1217, 48
        %v3375 = vpop.permute.xlu0 %3374
        %3376 = vrot.lane.b32.xlu0 %v1220, 48
        %v3377 = vpop.permute.xlu0 %3376
        %3378 = vrot.lane.b32.xlu0 %v1222, 48
        %v3379 = vpop.permute.xlu0 %3378
        %3380 = vrot.lane.b32.xlu0 %v1225, 48
        %v3381 = vpop.permute.xlu0 %3380
        %3382 = vrot.lane.b32.xlu0 %v1227, 48
        %v3383 = vpop.permute.xlu0 %3382
        %3384 = vrot.lane.b32.xlu0 %v1230, 48
        %v3385 = vpop.permute.xlu0 %3384
        %3386 = vrot.lane.b32.xlu0 %v1232, 48
        %v3387 = vpop.permute.xlu0 %3386
        %3388 = vrot.lane.b32.xlu0 %v1235, 48
        %v3389 = vpop.permute.xlu0 %3388
        %3390 = vrot.lane.b32.xlu0 %v1237, 48
        %v3391 = vpop.permute.xlu0 %3390
        %3392 = vrot.lane.b32.xlu0 %v1240, 48
        %v3393 = vpop.permute.xlu0 %3392
        %3394 = vrot.lane.b32.xlu0 %v1242, 48
        %v3395 = vpop.permute.xlu0 %3394
        %3396 = vrot.lane.b32.xlu0 %v1245, 48
        %v3397 = vpop.permute.xlu0 %3396
        %3398 = vrot.lane.b32.xlu0 %v1247, 48
        %v3399 = vpop.permute.xlu0 %3398
        %3400 = vrot.lane.b32.xlu0 %v1250, 48
        %v3401 = vpop.permute.xlu0 %3400
        %3402 = vrot.lane.b32.xlu0 %v1252, 48
        %v3403 = vpop.permute.xlu0 %3402
        %3404 = vrot.lane.b32.xlu0 %v1255, 48
        %v3405 = vpop.permute.xlu0 %3404
        %3406 = vrot.lane.b32.xlu0 %v1257, 48
        %v3407 = vpop.permute.xlu0 %3406
        %3440 = vrot.lane.b32.xlu0 %v1260, 52
        %v3441 = vpop.permute.xlu0 %3440
        %3442 = vrot.lane.b32.xlu0 %v1262, 52
        %v3443 = vpop.permute.xlu0 %3442
        %3444 = vrot.lane.b32.xlu0 %v1265, 52
        %v3445 = vpop.permute.xlu0 %3444
        %3446 = vrot.lane.b32.xlu0 %v1267, 52
        %v3447 = vpop.permute.xlu0 %3446
        %3448 = vrot.lane.b32.xlu0 %v1270, 52
        %v3449 = vpop.permute.xlu0 %3448
        %3450 = vrot.lane.b32.xlu0 %v1272, 52
        %v3451 = vpop.permute.xlu0 %3450
        %3452 = vrot.lane.b32.xlu0 %v1275, 52
        %v3453 = vpop.permute.xlu0 %3452
        %3454 = vrot.lane.b32.xlu0 %v1277, 52
        %v3455 = vpop.permute.xlu0 %3454
        %3456 = vrot.lane.b32.xlu0 %v1280, 52
        %v3457 = vpop.permute.xlu0 %3456
        %3458 = vrot.lane.b32.xlu0 %v1282, 52
        %v3459 = vpop.permute.xlu0 %3458
        %3460 = vrot.lane.b32.xlu0 %v1285, 52
        %v3461 = vpop.permute.xlu0 %3460
        %3462 = vrot.lane.b32.xlu0 %v1287, 52
        %v3463 = vpop.permute.xlu0 %3462
        %3464 = vrot.lane.b32.xlu0 %v1290, 52
        %v3465 = vpop.permute.xlu0 %3464
        %3466 = vrot.lane.b32.xlu0 %v1292, 52
        %v3467 = vpop.permute.xlu0 %3466
        %3468 = vrot.lane.b32.xlu0 %v1295, 52
        %v3469 = vpop.permute.xlu0 %3468
        %3470 = vrot.lane.b32.xlu0 %v1297, 52
        %v3471 = vpop.permute.xlu0 %3470
        %3472 = vrot.lane.b32.xlu0 %v1300, 52
        %v3473 = vpop.permute.xlu0 %3472
        %3474 = vrot.lane.b32.xlu0 %v1302, 52
        %v3475 = vpop.permute.xlu0 %3474
        %3476 = vrot.lane.b32.xlu0 %v1305, 52
        %v3477 = vpop.permute.xlu0 %3476
        %3478 = vrot.lane.b32.xlu0 %v1307, 52
        %v3479 = vpop.permute.xlu0 %3478
        %3480 = vrot.lane.b32.xlu0 %v1310, 52
        %v3481 = vpop.permute.xlu0 %3480
        %3482 = vrot.lane.b32.xlu0 %v1312, 52
        %v3483 = vpop.permute.xlu0 %3482
        %3484 = vrot.lane.b32.xlu0 %v1315, 52
        %v3485 = vpop.permute.xlu0 %3484
        %3486 = vrot.lane.b32.xlu0 %v1317, 52
        %v3487 = vpop.permute.xlu0 %3486
        %3488 = vrot.lane.b32.xlu0 %v1320, 52
        %v3489 = vpop.permute.xlu0 %3488
        %3490 = vrot.lane.b32.xlu0 %v1322, 52
        %v3491 = vpop.permute.xlu0 %3490
        %3492 = vrot.lane.b32.xlu0 %v1325, 52
        %v3493 = vpop.permute.xlu0 %3492
        %3494 = vrot.lane.b32.xlu0 %v1327, 52
        %v3495 = vpop.permute.xlu0 %3494
        %3496 = vrot.lane.b32.xlu0 %v1330, 52
        %v3497 = vpop.permute.xlu0 %3496
        %3498 = vrot.lane.b32.xlu0 %v1332, 52
        %v3499 = vpop.permute.xlu0 %3498
        %3500 = vrot.lane.b32.xlu0 %v1335, 52
        %v3501 = vpop.permute.xlu0 %3500
        %3502 = vrot.lane.b32.xlu0 %v1337, 52
        %v3503 = vpop.permute.xlu0 %3502
        %3536 = vrot.lane.b32.xlu0 %v1340, 56
        %v3537 = vpop.permute.xlu0 %3536
        %3538 = vrot.lane.b32.xlu0 %v1342, 56
        %v3539 = vpop.permute.xlu0 %3538
        %3540 = vrot.lane.b32.xlu0 %v1345, 56
        %v3541 = vpop.permute.xlu0 %3540
        %3542 = vrot.lane.b32.xlu0 %v1347, 56
        %v3543 = vpop.permute.xlu0 %3542
        %3544 = vrot.lane.b32.xlu0 %v1350, 56
        %v3545 = vpop.permute.xlu0 %3544
        %3546 = vrot.lane.b32.xlu0 %v1352, 56
        %v3547 = vpop.permute.xlu0 %3546
        %3548 = vrot.lane.b32.xlu0 %v1355, 56
        %v3549 = vpop.permute.xlu0 %3548
        %3550 = vrot.lane.b32.xlu0 %v1357, 56
        %v3551 = vpop.permute.xlu0 %3550
        %3552 = vrot.lane.b32.xlu0 %v1360, 56
        %v3553 = vpop.permute.xlu0 %3552
        %3554 = vrot.lane.b32.xlu0 %v1362, 56
        %v3555 = vpop.permute.xlu0 %3554
        %3556 = vrot.lane.b32.xlu0 %v1365, 56
        %v3557 = vpop.permute.xlu0 %3556
        %3558 = vrot.lane.b32.xlu0 %v1367, 56
        %v3559 = vpop.permute.xlu0 %3558
        %3560 = vrot.lane.b32.xlu0 %v1370, 56
        %v3561 = vpop.permute.xlu0 %3560
        %3562 = vrot.lane.b32.xlu0 %v1372, 56
        %v3563 = vpop.permute.xlu0 %3562
        %3564 = vrot.lane.b32.xlu0 %v1375, 56
        %v3565 = vpop.permute.xlu0 %3564
        %3566 = vrot.lane.b32.xlu0 %v1377, 56
        %v3567 = vpop.permute.xlu0 %3566
        %3568 = vrot.lane.b32.xlu0 %v1380, 56
        %v3569 = vpop.permute.xlu0 %3568
        %3570 = vrot.lane.b32.xlu0 %v1382, 56
        %v3571 = vpop.permute.xlu0 %3570
        %3572 = vrot.lane.b32.xlu0 %v1385, 56
        %v3573 = vpop.permute.xlu0 %3572
        %3574 = vrot.lane.b32.xlu0 %v1387, 56
        %v3575 = vpop.permute.xlu0 %3574
        %3576 = vrot.lane.b32.xlu0 %v1390, 56
        %v3577 = vpop.permute.xlu0 %3576
        %3578 = vrot.lane.b32.xlu0 %v1392, 56
        %v3579 = vpop.permute.xlu0 %3578
        %3580 = vrot.lane.b32.xlu0 %v1395, 56
        %v3581 = vpop.permute.xlu0 %3580
        %3582 = vrot.lane.b32.xlu0 %v1397, 56
        %v3583 = vpop.permute.xlu0 %3582
        %3584 = vrot.lane.b32.xlu0 %v1400, 56
        %v3585 = vpop.permute.xlu0 %3584
        %3586 = vrot.lane.b32.xlu0 %v1402, 56
        %v3587 = vpop.permute.xlu0 %3586
        %3588 = vrot.lane.b32.xlu0 %v1405, 56
        %v3589 = vpop.permute.xlu0 %3588
        %3590 = vrot.lane.b32.xlu0 %v1407, 56
        %v3591 = vpop.permute.xlu0 %3590
        %3592 = vrot.lane.b32.xlu0 %v1410, 56
        %v3593 = vpop.permute.xlu0 %3592
        %3594 = vrot.lane.b32.xlu0 %v1412, 56
        %v3595 = vpop.permute.xlu0 %3594
        %3596 = vrot.lane.b32.xlu0 %v1415, 56
        %v3597 = vpop.permute.xlu0 %3596
        %3598 = vrot.lane.b32.xlu0 %v1417, 56
        %v3599 = vpop.permute.xlu0 %3598
        %3632 = vrot.lane.b32.xlu0 %v1421, 60
        %v3633 = vpop.permute.xlu0 %3632
        %3634 = vrot.lane.b32.xlu0 %v1422, 60
        %v3635 = vpop.permute.xlu0 %3634
        %3636 = vrot.lane.b32.xlu0 %v1424, 60
        %v3637 = vpop.permute.xlu0 %3636
        %3638 = vrot.lane.b32.xlu0 %v1425, 60
        %v3639 = vpop.permute.xlu0 %3638
        %3640 = vrot.lane.b32.xlu0 %v1427, 60
        %v3641 = vpop.permute.xlu0 %3640
        %3642 = vrot.lane.b32.xlu0 %v1428, 60
        %v3643 = vpop.permute.xlu0 %3642
        %3644 = vrot.lane.b32.xlu0 %v1430, 60
        %v3645 = vpop.permute.xlu0 %3644
        %3646 = vrot.lane.b32.xlu0 %v1431, 60
        %v3647 = vpop.permute.xlu0 %3646
        %3648 = vrot.lane.b32.xlu0 %v1433, 60
        %v3649 = vpop.permute.xlu0 %3648
        %3650 = vrot.lane.b32.xlu0 %v1434, 60
        %v3651 = vpop.permute.xlu0 %3650
        %3652 = vrot.lane.b32.xlu0 %v1436, 60
        %v3653 = vpop.permute.xlu0 %3652
        %3654 = vrot.lane.b32.xlu0 %v1437, 60
        %v3655 = vpop.permute.xlu0 %3654
        %3656 = vrot.lane.b32.xlu0 %v1439, 60
        %v3657 = vpop.permute.xlu0 %3656
        %3658 = vrot.lane.b32.xlu0 %v1440, 60
        %v3659 = vpop.permute.xlu0 %3658
        %3660 = vrot.lane.b32.xlu0 %v1442, 60
        %v3661 = vpop.permute.xlu0 %3660
        %3662 = vrot.lane.b32.xlu0 %v1443, 60
        %v3663 = vpop.permute.xlu0 %3662
        %3664 = vrot.lane.b32.xlu0 %v1445, 60
        %v3665 = vpop.permute.xlu0 %3664
        %3666 = vrot.lane.b32.xlu0 %v1446, 60
        %v3667 = vpop.permute.xlu0 %3666
        %3668 = vrot.lane.b32.xlu0 %v1448, 60
        %v3669 = vpop.permute.xlu0 %3668
        %3670 = vrot.lane.b32.xlu0 %v1449, 60
        %v3671 = vpop.permute.xlu0 %3670
        %3672 = vrot.lane.b32.xlu0 %v1451, 60
        %v3673 = vpop.permute.xlu0 %3672
        %3674 = vrot.lane.b32.xlu0 %v1452, 60
        %v3675 = vpop.permute.xlu0 %3674
        %3676 = vrot.lane.b32.xlu0 %v1454, 60
        %v3677 = vpop.permute.xlu0 %3676
        %3678 = vrot.lane.b32.xlu0 %v1455, 60
        %v3679 = vpop.permute.xlu0 %3678
        %3680 = vrot.lane.b32.xlu0 %v1457, 60
        %v3681 = vpop.permute.xlu0 %3680
        %3682 = vrot.lane.b32.xlu0 %v1458, 60
        %v3683 = vpop.permute.xlu0 %3682
        %3684 = vrot.lane.b32.xlu0 %v1460, 60
        %v3685 = vpop.permute.xlu0 %3684
        %3686 = vrot.lane.b32.xlu0 %v1461, 60
        %v3687 = vpop.permute.xlu0 %3686
        %3688 = vrot.lane.b32.xlu0 %v1463, 60
        %v3689 = vpop.permute.xlu0 %3688
        %3690 = vrot.lane.b32.xlu0 %v1464, 60
        %v3691 = vpop.permute.xlu0 %3690
        %3692 = vrot.lane.b32.xlu0 %v1466, 60
        %v3693 = vpop.permute.xlu0 %3692
        %3694 = vrot.lane.b32.xlu0 %v1467, 60
        %v3695 = vpop.permute.xlu0 %3694
        %vm3728 = vcmask 31744
        %v3729 = vsel %vm3728, %v160, %v2289
        %v3730 = vsel %vm3728, %v161, %v2291
        %v3731 = vsel %vm3728, %v163, %v2293
        %v3732 = vsel %vm3728, %v164, %v2295
        %v3733 = vsel %vm3728, %v166, %v2297
        %v3734 = vsel %vm3728, %v167, %v2299
        %v3735 = vsel %vm3728, %v169, %v2301
        %v3736 = vsel %vm3728, %v170, %v2303
        %v3737 = vsel %vm3728, %v172, %v2305
        %v3738 = vsel %vm3728, %v173, %v2307
        %v3739 = vsel %vm3728, %v175, %v2309
        %v3740 = vsel %vm3728, %v176, %v2311
        %v3741 = vsel %vm3728, %v178, %v2313
        %v3742 = vsel %vm3728, %v179, %v2315
        %v3743 = vsel %vm3728, %v181, %v2317
        %v3744 = vsel %vm3728, %v182, %v2319
        %v3745 = vsel %vm3728, %v184, %v2321
        %v3746 = vsel %vm3728, %v185, %v2323
        %v3747 = vsel %vm3728, %v187, %v2325
        %v3748 = vsel %vm3728, %v188, %v2327
        %v3749 = vsel %vm3728, %v190, %v2329
        %v3750 = vsel %vm3728, %v191, %v2331
        %v3751 = vsel %vm3728, %v193, %v2333
        %v3752 = vsel %vm3728, %v194, %v2335
        %v3753 = vsel %vm3728, %v196, %v2337
        %v3754 = vsel %vm3728, %v197, %v2339
        %v3755 = vsel %vm3728, %v199, %v2341
        %v3756 = vsel %vm3728, %v200, %v2343
        %v3757 = vsel %vm3728, %v202, %v2345
        %v3758 = vsel %vm3728, %v203, %v2347
        %v3759 = vsel %vm3728, %v205, %v2349
        %v3760 = vsel %vm3728, %v206, %v2351
        %vm3761 = vcmask 64512
        %v3762 = vsel %vm3761, %v3729, %v2385
        %v3763 = vsel %vm3761, %v3730, %v2387
        %v3764 = vsel %vm3761, %v3731, %v2389
        %v3765 = vsel %vm3761, %v3732, %v2391
        %v3766 = vsel %vm3761, %v3733, %v2393
        %v3767 = vsel %vm3761, %v3734, %v2395
        %v3768 = vsel %vm3761, %v3735, %v2397
        %v3769 = vsel %vm3761, %v3736, %v2399
        %v3770 = vsel %vm3761, %v3737, %v2401
        %v3771 = vsel %vm3761, %v3738, %v2403
        %v3772 = vsel %vm3761, %v3739, %v2405
        %v3773 = vsel %vm3761, %v3740, %v2407
        %v3774 = vsel %vm3761, %v3741, %v2409
        %v3775 = vsel %vm3761, %v3742, %v2411
        %v3776 = vsel %vm3761, %v3743, %v2413
        %v3777 = vsel %vm3761, %v3744, %v2415
        %v3778 = vsel %vm3761, %v3745, %v2417
        %v3779 = vsel %vm3761, %v3746, %v2419
        %v3780 = vsel %vm3761, %v3747, %v2421
        %v3781 = vsel %vm3761, %v3748, %v2423
        %v3782 = vsel %vm3761, %v3749, %v2425
        %v3783 = vsel %vm3761, %v3750, %v2427
        %v3784 = vsel %vm3761, %v3751, %v2429
        %v3785 = vsel %vm3761, %v3752, %v2431
        %v3786 = vsel %vm3761, %v3753, %v2433
        %v3787 = vsel %vm3761, %v3754, %v2435
        %v3788 = vsel %vm3761, %v3755, %v2437
        %v3789 = vsel %vm3761, %v3756, %v2439
        %v3790 = vsel %vm3761, %v3757, %v2441
        %v3791 = vsel %vm3761, %v3758, %v2443
        %v3792 = vsel %vm3761, %v3759, %v2445
        %v3793 = vsel %vm3761, %v3760, %v2447
        %vm3794 = vcmask 97280
        %v3795 = vsel %vm3794, %v3762, %v2481
        %v3796 = vsel %vm3794, %v3763, %v2483
        %v3797 = vsel %vm3794, %v3764, %v2485
        %v3798 = vsel %vm3794, %v3765, %v2487
        %v3799 = vsel %vm3794, %v3766, %v2489
        %v3800 = vsel %vm3794, %v3767, %v2491
        %v3801 = vsel %vm3794, %v3768, %v2493
        %v3802 = vsel %vm3794, %v3769, %v2495
        %v3803 = vsel %vm3794, %v3770, %v2497
        %v3804 = vsel %vm3794, %v3771, %v2499
        %v3805 = vsel %vm3794, %v3772, %v2501
        %v3806 = vsel %vm3794, %v3773, %v2503
        %v3807 = vsel %vm3794, %v3774, %v2505
        %v3808 = vsel %vm3794, %v3775, %v2507
        %v3809 = vsel %vm3794, %v3776, %v2509
        %v3810 = vsel %vm3794, %v3777, %v2511
        %v3811 = vsel %vm3794, %v3778, %v2513
        %v3812 = vsel %vm3794, %v3779, %v2515
        %v3813 = vsel %vm3794, %v3780, %v2517
        %v3814 = vsel %vm3794, %v3781, %v2519
        %v3815 = vsel %vm3794, %v3782, %v2521
        %v3816 = vsel %vm3794, %v3783, %v2523
        %v3817 = vsel %vm3794, %v3784, %v2525
        %v3818 = vsel %vm3794, %v3785, %v2527
        %v3819 = vsel %vm3794, %v3786, %v2529
        %v3820 = vsel %vm3794, %v3787, %v2531
        %v3821 = vsel %vm3794, %v3788, %v2533
        %v3822 = vsel %vm3794, %v3789, %v2535
        %v3823 = vsel %vm3794, %v3790, %v2537
        %v3824 = vsel %vm3794, %v3791, %v2539
        %v3825 = vsel %vm3794, %v3792, %v2541
        %v3826 = vsel %vm3794, %v3793, %v2543
        %vm3827 = vcmask 130048
        %v3828 = vsel %vm3827, %v3795, %v2577
        %v3829 = vsel %vm3827, %v3796, %v2579
        %v3830 = vsel %vm3827, %v3797, %v2581
        %v3831 = vsel %vm3827, %v3798, %v2583
        %v3832 = vsel %vm3827, %v3799, %v2585
        %v3833 = vsel %vm3827, %v3800, %v2587
        %v3834 = vsel %vm3827, %v3801, %v2589
        %v3835 = vsel %vm3827, %v3802, %v2591
        %v3836 = vsel %vm3827, %v3803, %v2593
        %v3837 = vsel %vm3827, %v3804, %v2595
        %v3838 = vsel %vm3827, %v3805, %v2597
        %v3839 = vsel %vm3827, %v3806, %v2599
        %v3840 = vsel %vm3827, %v3807, %v2601
        %v3841 = vsel %vm3827, %v3808, %v2603
        %v3842 = vsel %vm3827, %v3809, %v2605
        %v3843 = vsel %vm3827, %v3810, %v2607
        %v3844 = vsel %vm3827, %v3811, %v2609
        %v3845 = vsel %vm3827, %v3812, %v2611
        %v3846 = vsel %vm3827, %v3813, %v2613
        %v3847 = vsel %vm3827, %v3814, %v2615
        %v3848 = vsel %vm3827, %v3815, %v2617
        %v3849 = vsel %vm3827, %v3816, %v2619
        %v3850 = vsel %vm3827, %v3817, %v2621
        %v3851 = vsel %vm3827, %v3818, %v2623
        %v3852 = vsel %vm3827, %v3819, %v2625
        %v3853 = vsel %vm3827, %v3820, %v2627
        %v3854 = vsel %vm3827, %v3821, %v2629
        %v3855 = vsel %vm3827, %v3822, %v2631
        %v3856 = vsel %vm3827, %v3823, %v2633
        %v3857 = vsel %vm3827, %v3824, %v2635
        %v3858 = vsel %vm3827, %v3825, %v2637
        %v3859 = vsel %vm3827, %v3826, %v2639
        %vm3860 = vcmask 162816
        %v3861 = vsel %vm3860, %v3828, %v2673
        %v3862 = vsel %vm3860, %v3829, %v2675
        %v3863 = vsel %vm3860, %v3830, %v2677
        %v3864 = vsel %vm3860, %v3831, %v2679
        %v3865 = vsel %vm3860, %v3832, %v2681
        %v3866 = vsel %vm3860, %v3833, %v2683
        %v3867 = vsel %vm3860, %v3834, %v2685
        %v3868 = vsel %vm3860, %v3835, %v2687
        %v3869 = vsel %vm3860, %v3836, %v2689
        %v3870 = vsel %vm3860, %v3837, %v2691
        %v3871 = vsel %vm3860, %v3838, %v2693
        %v3872 = vsel %vm3860, %v3839, %v2695
        %v3873 = vsel %vm3860, %v3840, %v2697
        %v3874 = vsel %vm3860, %v3841, %v2699
        %v3875 = vsel %vm3860, %v3842, %v2701
        %v3876 = vsel %vm3860, %v3843, %v2703
        %v3877 = vsel %vm3860, %v3844, %v2705
        %v3878 = vsel %vm3860, %v3845, %v2707
        %v3879 = vsel %vm3860, %v3846, %v2709
        %v3880 = vsel %vm3860, %v3847, %v2711
        %v3881 = vsel %vm3860, %v3848, %v2713
        %v3882 = vsel %vm3860, %v3849, %v2715
        %v3883 = vsel %vm3860, %v3850, %v2717
        %v3884 = vsel %vm3860, %v3851, %v2719
        %v3885 = vsel %vm3860, %v3852, %v2721
        %v3886 = vsel %vm3860, %v3853, %v2723
        %v3887 = vsel %vm3860, %v3854, %v2725
        %v3888 = vsel %vm3860, %v3855, %v2727
        %v3889 = vsel %vm3860, %v3856, %v2729
        %v3890 = vsel %vm3860, %v3857, %v2731
        %v3891 = vsel %vm3860, %v3858, %v2733
        %v3892 = vsel %vm3860, %v3859, %v2735
        %vm3893 = vcmask 195584
        %v3894 = vsel %vm3893, %v3861, %v2769
        %v3895 = vsel %vm3893, %v3862, %v2771
        %v3896 = vsel %vm3893, %v3863, %v2773
        %v3897 = vsel %vm3893, %v3864, %v2775
        %v3898 = vsel %vm3893, %v3865, %v2777
        %v3899 = vsel %vm3893, %v3866, %v2779
        %v3900 = vsel %vm3893, %v3867, %v2781
        %v3901 = vsel %vm3893, %v3868, %v2783
        %v3902 = vsel %vm3893, %v3869, %v2785
        %v3903 = vsel %vm3893, %v3870, %v2787
        %v3904 = vsel %vm3893, %v3871, %v2789
        %v3905 = vsel %vm3893, %v3872, %v2791
        %v3906 = vsel %vm3893, %v3873, %v2793
        %v3907 = vsel %vm3893, %v3874, %v2795
        %v3908 = vsel %vm3893, %v3875, %v2797
        %v3909 = vsel %vm3893, %v3876, %v2799
        %v3910 = vsel %vm3893, %v3877, %v2801
        %v3911 = vsel %vm3893, %v3878, %v2803
        %v3912 = vsel %vm3893, %v3879, %v2805
        %v3913 = vsel %vm3893, %v3880, %v2807
        %v3914 = vsel %vm3893, %v3881, %v2809
        %v3915 = vsel %vm3893, %v3882, %v2811
        %v3916 = vsel %vm3893, %v3883, %v2813
        %v3917 = vsel %vm3893, %v3884, %v2815
        %v3918 = vsel %vm3893, %v3885, %v2817
        %v3919 = vsel %vm3893, %v3886, %v2819
        %v3920 = vsel %vm3893, %v3887, %v2821
        %v3921 = vsel %vm3893, %v3888, %v2823
        %v3922 = vsel %vm3893, %v3889, %v2825
        %v3923 = vsel %vm3893, %v3890, %v2827
        %v3924 = vsel %vm3893, %v3891, %v2829
        %v3925 = vsel %vm3893, %v3892, %v2831
        %vm3926 = vcmask 228352
        %v3927 = vsel %vm3926, %v3894, %v2865
        %v3928 = vsel %vm3926, %v3895, %v2867
        %v3929 = vsel %vm3926, %v3896, %v2869
        %v3930 = vsel %vm3926, %v3897, %v2871
        %v3931 = vsel %vm3926, %v3898, %v2873
        %v3932 = vsel %vm3926, %v3899, %v2875
        %v3933 = vsel %vm3926, %v3900, %v2877
        %v3934 = vsel %vm3926, %v3901, %v2879
        %v3935 = vsel %vm3926, %v3902, %v2881
        %v3936 = vsel %vm3926, %v3903, %v2883
        %v3937 = vsel %vm3926, %v3904, %v2885
        %v3938 = vsel %vm3926, %v3905, %v2887
        %v3939 = vsel %vm3926, %v3906, %v2889
        %v3940 = vsel %vm3926, %v3907, %v2891
        %v3941 = vsel %vm3926, %v3908, %v2893
        %v3942 = vsel %vm3926, %v3909, %v2895
        %v3943 = vsel %vm3926, %v3910, %v2897
        %v3944 = vsel %vm3926, %v3911, %v2899
        %v3945 = vsel %vm3926, %v3912, %v2901
        %v3946 = vsel %vm3926, %v3913, %v2903
        %v3947 = vsel %vm3926, %v3914, %v2905
        %v3948 = vsel %vm3926, %v3915, %v2907
        %v3949 = vsel %vm3926, %v3916, %v2909
        %v3950 = vsel %vm3926, %v3917, %v2911
        %v3951 = vsel %vm3926, %v3918, %v2913
        %v3952 = vsel %vm3926, %v3919, %v2915
        %v3953 = vsel %vm3926, %v3920, %v2917
        %v3954 = vsel %vm3926, %v3921, %v2919
        %v3955 = vsel %vm3926, %v3922, %v2921
        %v3956 = vsel %vm3926, %v3923, %v2923
        %v3957 = vsel %vm3926, %v3924, %v2925
        %v3958 = vsel %vm3926, %v3925, %v2927
        %vm3959 = vcmask 261120
        %v3960 = vsel %vm3959, %v3927, %v2961
        %v3961 = vsel %vm3959, %v3928, %v2963
        %v3962 = vsel %vm3959, %v3929, %v2965
        %v3963 = vsel %vm3959, %v3930, %v2967
        %v3964 = vsel %vm3959, %v3931, %v2969
        %v3965 = vsel %vm3959, %v3932, %v2971
        %v3966 = vsel %vm3959, %v3933, %v2973
        %v3967 = vsel %vm3959, %v3934, %v2975
        %v3968 = vsel %vm3959, %v3935, %v2977
        %v3969 = vsel %vm3959, %v3936, %v2979
        %v3970 = vsel %vm3959, %v3937, %v2981
        %v3971 = vsel %vm3959, %v3938, %v2983
        %v3972 = vsel %vm3959, %v3939, %v2985
        %v3973 = vsel %vm3959, %v3940, %v2987
        %v3974 = vsel %vm3959, %v3941, %v2989
        %v3975 = vsel %vm3959, %v3942, %v2991
        %v3976 = vsel %vm3959, %v3943, %v2993
        %v3977 = vsel %vm3959, %v3944, %v2995
        %v3978 = vsel %vm3959, %v3945, %v2997
        %v3979 = vsel %vm3959, %v3946, %v2999
        %v3980 = vsel %vm3959, %v3947, %v3001
        %v3981 = vsel %vm3959, %v3948, %v3003
        %v3982 = vsel %vm3959, %v3949, %v3005
        %v3983 = vsel %vm3959, %v3950, %v3007
        %v3984 = vsel %vm3959, %v3951, %v3009
        %v3985 = vsel %vm3959, %v3952, %v3011
        %v3986 = vsel %vm3959, %v3953, %v3013
        %v3987 = vsel %vm3959, %v3954, %v3015
        %v3988 = vsel %vm3959, %v3955, %v3017
        %v3989 = vsel %vm3959, %v3956, %v3019
        %v3990 = vsel %vm3959, %v3957, %v3021
        %v3991 = vsel %vm3959, %v3958, %v3023
        %vm3992 = vcmask 293888
        %v3993 = vsel %vm3992, %v3960, %v3057
        %v3994 = vsel %vm3992, %v3961, %v3059
        %v3995 = vsel %vm3992, %v3962, %v3061
        %v3996 = vsel %vm3992, %v3963, %v3063
        %v3997 = vsel %vm3992, %v3964, %v3065
        %v3998 = vsel %vm3992, %v3965, %v3067
        %v3999 = vsel %vm3992, %v3966, %v3069
        %v4000 = vsel %vm3992, %v3967, %v3071
        %v4001 = vsel %vm3992, %v3968, %v3073
        %v4002 = vsel %vm3992, %v3969, %v3075
        %v4003 = vsel %vm3992, %v3970, %v3077
        %v4004 = vsel %vm3992, %v3971, %v3079
        %v4005 = vsel %vm3992, %v3972, %v3081
        %v4006 = vsel %vm3992, %v3973, %v3083
        %v4007 = vsel %vm3992, %v3974, %v3085
        %v4008 = vsel %vm3992, %v3975, %v3087
        %v4009 = vsel %vm3992, %v3976, %v3089
        %v4010 = vsel %vm3992, %v3977, %v3091
        %v4011 = vsel %vm3992, %v3978, %v3093
        %v4012 = vsel %vm3992, %v3979, %v3095
        %v4013 = vsel %vm3992, %v3980, %v3097
        %v4014 = vsel %vm3992, %v3981, %v3099
        %v4015 = vsel %vm3992, %v3982, %v3101
        %v4016 = vsel %vm3992, %v3983, %v3103
        %v4017 = vsel %vm3992, %v3984, %v3105
        %v4018 = vsel %vm3992, %v3985, %v3107
        %v4019 = vsel %vm3992, %v3986, %v3109
        %v4020 = vsel %vm3992, %v3987, %v3111
        %v4021 = vsel %vm3992, %v3988, %v3113
        %v4022 = vsel %vm3992, %v3989, %v3115
        %v4023 = vsel %vm3992, %v3990, %v3117
        %v4024 = vsel %vm3992, %v3991, %v3119
        %vm4025 = vcmask 326656
        %v4026 = vsel %vm4025, %v3993, %v3153
        %v4027 = vsel %vm4025, %v3994, %v3155
        %v4028 = vsel %vm4025, %v3995, %v3157
        %v4029 = vsel %vm4025, %v3996, %v3159
        %v4030 = vsel %vm4025, %v3997, %v3161
        %v4031 = vsel %vm4025, %v3998, %v3163
        %v4032 = vsel %vm4025, %v3999, %v3165
        %v4033 = vsel %vm4025, %v4000, %v3167
        %v4034 = vsel %vm4025, %v4001, %v3169
        %v4035 = vsel %vm4025, %v4002, %v3171
        %v4036 = vsel %vm4025, %v4003, %v3173
        %v4037 = vsel %vm4025, %v4004, %v3175
        %v4038 = vsel %vm4025, %v4005, %v3177
        %v4039 = vsel %vm4025, %v4006, %v3179
        %v4040 = vsel %vm4025, %v4007, %v3181
        %v4041 = vsel %vm4025, %v4008, %v3183
        %v4042 = vsel %vm4025, %v4009, %v3185
        %v4043 = vsel %vm4025, %v4010, %v3187
        %v4044 = vsel %vm4025, %v4011, %v3189
        %v4045 = vsel %vm4025, %v4012, %v3191
        %v4046 = vsel %vm4025, %v4013, %v3193
        %v4047 = vsel %vm4025, %v4014, %v3195
        %v4048 = vsel %vm4025, %v4015, %v3197
        %v4049 = vsel %vm4025, %v4016, %v3199
        %v4050 = vsel %vm4025, %v4017, %v3201
        %v4051 = vsel %vm4025, %v4018, %v3203
        %v4052 = vsel %vm4025, %v4019, %v3205
        %v4053 = vsel %vm4025, %v4020, %v3207
        %v4054 = vsel %vm4025, %v4021, %v3209
        %v4055 = vsel %vm4025, %v4022, %v3211
        %v4056 = vsel %vm4025, %v4023, %v3213
        %v4057 = vsel %vm4025, %v4024, %v3215
        %vm4058 = vcmask 359424
        %v4059 = vsel %vm4058, %v4026, %v3249
        %v4060 = vsel %vm4058, %v4027, %v3251
        %v4061 = vsel %vm4058, %v4028, %v3253
        %v4062 = vsel %vm4058, %v4029, %v3255
        %v4063 = vsel %vm4058, %v4030, %v3257
        %v4064 = vsel %vm4058, %v4031, %v3259
        %v4065 = vsel %vm4058, %v4032, %v3261
        %v4066 = vsel %vm4058, %v4033, %v3263
        %v4067 = vsel %vm4058, %v4034, %v3265
        %v4068 = vsel %vm4058, %v4035, %v3267
        %v4069 = vsel %vm4058, %v4036, %v3269
        %v4070 = vsel %vm4058, %v4037, %v3271
        %v4071 = vsel %vm4058, %v4038, %v3273
        %v4072 = vsel %vm4058, %v4039, %v3275
        %v4073 = vsel %vm4058, %v4040, %v3277
        %v4074 = vsel %vm4058, %v4041, %v3279
        %v4075 = vsel %vm4058, %v4042, %v3281
        %v4076 = vsel %vm4058, %v4043, %v3283
        %v4077 = vsel %vm4058, %v4044, %v3285
        %v4078 = vsel %vm4058, %v4045, %v3287
        %v4079 = vsel %vm4058, %v4046, %v3289
        %v4080 = vsel %vm4058, %v4047, %v3291
        %v4081 = vsel %vm4058, %v4048, %v3293
        %v4082 = vsel %vm4058, %v4049, %v3295
        %v4083 = vsel %vm4058, %v4050, %v3297
        %v4084 = vsel %vm4058, %v4051, %v3299
        %v4085 = vsel %vm4058, %v4052, %v3301
        %v4086 = vsel %vm4058, %v4053, %v3303
        %v4087 = vsel %vm4058, %v4054, %v3305
        %v4088 = vsel %vm4058, %v4055, %v3307
        %v4089 = vsel %vm4058, %v4056, %v3309
        %v4090 = vsel %vm4058, %v4057, %v3311
        %vm4091 = vcmask 392192
        %v4092 = vsel %vm4091, %v4059, %v3345
        %v4093 = vsel %vm4091, %v4060, %v3347
        %v4094 = vsel %vm4091, %v4061, %v3349
        %v4095 = vsel %vm4091, %v4062, %v3351
        %v4096 = vsel %vm4091, %v4063, %v3353
        %v4097 = vsel %vm4091, %v4064, %v3355
        %v4098 = vsel %vm4091, %v4065, %v3357
        %v4099 = vsel %vm4091, %v4066, %v3359
        %v4100 = vsel %vm4091, %v4067, %v3361
        %v4101 = vsel %vm4091, %v4068, %v3363
        %v4102 = vsel %vm4091, %v4069, %v3365
        %v4103 = vsel %vm4091, %v4070, %v3367
        %v4104 = vsel %vm4091, %v4071, %v3369
        %v4105 = vsel %vm4091, %v4072, %v3371
        %v4106 = vsel %vm4091, %v4073, %v3373
        %v4107 = vsel %vm4091, %v4074, %v3375
        %v4108 = vsel %vm4091, %v4075, %v3377
        %v4109 = vsel %vm4091, %v4076, %v3379
        %v4110 = vsel %vm4091, %v4077, %v3381
        %v4111 = vsel %vm4091, %v4078, %v3383
        %v4112 = vsel %vm4091, %v4079, %v3385
        %v4113 = vsel %vm4091, %v4080, %v3387
        %v4114 = vsel %vm4091, %v4081, %v3389
        %v4115 = vsel %vm4091, %v4082, %v3391
        %v4116 = vsel %vm4091, %v4083, %v3393
        %v4117 = vsel %vm4091, %v4084, %v3395
        %v4118 = vsel %vm4091, %v4085, %v3397
        %v4119 = vsel %vm4091, %v4086, %v3399
        %v4120 = vsel %vm4091, %v4087, %v3401
        %v4121 = vsel %vm4091, %v4088, %v3403
        %v4122 = vsel %vm4091, %v4089, %v3405
        %v4123 = vsel %vm4091, %v4090, %v3407
        %vm4124 = vcmask 424960
        %v4125 = vsel %vm4124, %v4092, %v3441
        %v4126 = vsel %vm4124, %v4093, %v3443
        %v4127 = vsel %vm4124, %v4094, %v3445
        %v4128 = vsel %vm4124, %v4095, %v3447
        %v4129 = vsel %vm4124, %v4096, %v3449
        %v4130 = vsel %vm4124, %v4097, %v3451
        %v4131 = vsel %vm4124, %v4098, %v3453
        %v4132 = vsel %vm4124, %v4099, %v3455
        %v4133 = vsel %vm4124, %v4100, %v3457
        %v4134 = vsel %vm4124, %v4101, %v3459
        %v4135 = vsel %vm4124, %v4102, %v3461
        %v4136 = vsel %vm4124, %v4103, %v3463
        %v4137 = vsel %vm4124, %v4104, %v3465
        %v4138 = vsel %vm4124, %v4105, %v3467
        %v4139 = vsel %vm4124, %v4106, %v3469
        %v4140 = vsel %vm4124, %v4107, %v3471
        %v4141 = vsel %vm4124, %v4108, %v3473
        %v4142 = vsel %vm4124, %v4109, %v3475
        %v4143 = vsel %vm4124, %v4110, %v3477
        %v4144 = vsel %vm4124, %v4111, %v3479
        %v4145 = vsel %vm4124, %v4112, %v3481
        %v4146 = vsel %vm4124, %v4113, %v3483
        %v4147 = vsel %vm4124, %v4114, %v3485
        %v4148 = vsel %vm4124, %v4115, %v3487
        %v4149 = vsel %vm4124, %v4116, %v3489
        %v4150 = vsel %vm4124, %v4117, %v3491
        %v4151 = vsel %vm4124, %v4118, %v3493
        %v4152 = vsel %vm4124, %v4119, %v3495
        %v4153 = vsel %vm4124, %v4120, %v3497
        %v4154 = vsel %vm4124, %v4121, %v3499
        %v4155 = vsel %vm4124, %v4122, %v3501
        %v4156 = vsel %vm4124, %v4123, %v3503
        %vm4157 = vcmask 457728
        %v4158 = vsel %vm4157, %v4125, %v3537
        %v4159 = vsel %vm4157, %v4126, %v3539
        %v4160 = vsel %vm4157, %v4127, %v3541
        %v4161 = vsel %vm4157, %v4128, %v3543
        %v4162 = vsel %vm4157, %v4129, %v3545
        %v4163 = vsel %vm4157, %v4130, %v3547
        %v4164 = vsel %vm4157, %v4131, %v3549
        %v4165 = vsel %vm4157, %v4132, %v3551
        %v4166 = vsel %vm4157, %v4133, %v3553
        %v4167 = vsel %vm4157, %v4134, %v3555
        %v4168 = vsel %vm4157, %v4135, %v3557
        %v4169 = vsel %vm4157, %v4136, %v3559
        %v4170 = vsel %vm4157, %v4137, %v3561
        %v4171 = vsel %vm4157, %v4138, %v3563
        %v4172 = vsel %vm4157, %v4139, %v3565
        %v4173 = vsel %vm4157, %v4140, %v3567
        %v4174 = vsel %vm4157, %v4141, %v3569
        %v4175 = vsel %vm4157, %v4142, %v3571
        %v4176 = vsel %vm4157, %v4143, %v3573
        %v4177 = vsel %vm4157, %v4144, %v3575
        %v4178 = vsel %vm4157, %v4145, %v3577
        %v4179 = vsel %vm4157, %v4146, %v3579
        %v4180 = vsel %vm4157, %v4147, %v3581
        %v4181 = vsel %vm4157, %v4148, %v3583
        %v4182 = vsel %vm4157, %v4149, %v3585
        %v4183 = vsel %vm4157, %v4150, %v3587
        %v4184 = vsel %vm4157, %v4151, %v3589
        %v4185 = vsel %vm4157, %v4152, %v3591
        %v4186 = vsel %vm4157, %v4153, %v3593
        %v4187 = vsel %vm4157, %v4154, %v3595
        %v4188 = vsel %vm4157, %v4155, %v3597
        %v4189 = vsel %vm4157, %v4156, %v3599
        %vm4190 = vcmask 490496
        %v4191 = vsel %vm4190, %v4158, %v3633
        %v4192 = vsel %vm4190, %v4159, %v3635
        %v4193 = vsel %vm4190, %v4160, %v3637
        %v4194 = vsel %vm4190, %v4161, %v3639
        %v4195 = vsel %vm4190, %v4162, %v3641
        %v4196 = vsel %vm4190, %v4163, %v3643
        %v4197 = vsel %vm4190, %v4164, %v3645
        %v4198 = vsel %vm4190, %v4165, %v3647
        %v4199 = vsel %vm4190, %v4166, %v3649
        %v4200 = vsel %vm4190, %v4167, %v3651
        %v4201 = vsel %vm4190, %v4168, %v3653
        %v4202 = vsel %vm4190, %v4169, %v3655
        %v4203 = vsel %vm4190, %v4170, %v3657
        %v4204 = vsel %vm4190, %v4171, %v3659
        %v4205 = vsel %vm4190, %v4172, %v3661
        %v4206 = vsel %vm4190, %v4173, %v3663
        %v4207 = vsel %vm4190, %v4174, %v3665
        %v4208 = vsel %vm4190, %v4175, %v3667
        %v4209 = vsel %vm4190, %v4176, %v3669
        %v4210 = vsel %vm4190, %v4177, %v3671
        %v4211 = vsel %vm4190, %v4178, %v3673
        %v4212 = vsel %vm4190, %v4179, %v3675
        %v4213 = vsel %vm4190, %v4180, %v3677
        %v4214 = vsel %vm4190, %v4181, %v3679
        %v4215 = vsel %vm4190, %v4182, %v3681
        %v4216 = vsel %vm4190, %v4183, %v3683
        %v4217 = vsel %vm4190, %v4184, %v3685
        %v4218 = vsel %vm4190, %v4185, %v3687
        %v4219 = vsel %vm4190, %v4186, %v3689
        %v4220 = vsel %vm4190, %v4187, %v3691
        %v4221 = vsel %vm4190, %v4188, %v3693
        %v4222 = vsel %vm4190, %v4189, %v3695
        %4223 = vrot.lane.b32.xlu0 %v1631, 4
        %v4224 = vpop.permute.xlu0 %4223
        %4225 = vrot.lane.b32.xlu0 %v1633, 4
        %v4226 = vpop.permute.xlu0 %4225
        %4227 = vrot.lane.b32.xlu0 %v1636, 4
        %v4228 = vpop.permute.xlu0 %4227
        %4229 = vrot.lane.b32.xlu0 %v1638, 4
        %v4230 = vpop.permute.xlu0 %4229
        %4231 = vrot.lane.b32.xlu0 %v1641, 4
        %v4232 = vpop.permute.xlu0 %4231
        %4233 = vrot.lane.b32.xlu0 %v1643, 4
        %v4234 = vpop.permute.xlu0 %4233
        %4235 = vrot.lane.b32.xlu0 %v1646, 4
        %v4236 = vpop.permute.xlu0 %4235
        %4237 = vrot.lane.b32.xlu0 %v1648, 4
        %v4238 = vpop.permute.xlu0 %4237
        %4239 = vrot.lane.b32.xlu0 %v1651, 4
        %v4240 = vpop.permute.xlu0 %4239
        %4241 = vrot.lane.b32.xlu0 %v1653, 4
        %v4242 = vpop.permute.xlu0 %4241
        %4243 = vrot.lane.b32.xlu0 %v1656, 4
        %v4244 = vpop.permute.xlu0 %4243
        %4245 = vrot.lane.b32.xlu0 %v1658, 4
        %v4246 = vpop.permute.xlu0 %4245
        %4247 = vrot.lane.b32.xlu0 %v1661, 4
        %v4248 = vpop.permute.xlu0 %4247
        %4249 = vrot.lane.b32.xlu0 %v1663, 4
        %v4250 = vpop.permute.xlu0 %4249
        %4251 = vrot.lane.b32.xlu0 %v1666, 4
        %v4252 = vpop.permute.xlu0 %4251
        %4253 = vrot.lane.b32.xlu0 %v1668, 4
        %v4254 = vpop.permute.xlu0 %4253
        %4255 = vrot.lane.b32.xlu0 %v1671, 4
        %v4256 = vpop.permute.xlu0 %4255
        %4257 = vrot.lane.b32.xlu0 %v1673, 4
        %v4258 = vpop.permute.xlu0 %4257
        %4259 = vrot.lane.b32.xlu0 %v1676, 4
        %v4260 = vpop.permute.xlu0 %4259
        %4261 = vrot.lane.b32.xlu0 %v1678, 4
        %v4262 = vpop.permute.xlu0 %4261
        %4263 = vrot.lane.b32.xlu0 %v1681, 4
        %v4264 = vpop.permute.xlu0 %4263
        %4265 = vrot.lane.b32.xlu0 %v1683, 4
        %v4266 = vpop.permute.xlu0 %4265
        %4267 = vrot.lane.b32.xlu0 %v1686, 4
        %v4268 = vpop.permute.xlu0 %4267
        %4269 = vrot.lane.b32.xlu0 %v1688, 4
        %v4270 = vpop.permute.xlu0 %4269
        %4271 = vrot.lane.b32.xlu0 %v1691, 4
        %v4272 = vpop.permute.xlu0 %4271
        %4273 = vrot.lane.b32.xlu0 %v1693, 4
        %v4274 = vpop.permute.xlu0 %4273
        %4275 = vrot.lane.b32.xlu0 %v1696, 4
        %v4276 = vpop.permute.xlu0 %4275
        %4277 = vrot.lane.b32.xlu0 %v1698, 4
        %v4278 = vpop.permute.xlu0 %4277
        %4279 = vrot.lane.b32.xlu0 %v1701, 4
        %v4280 = vpop.permute.xlu0 %4279
        %4281 = vrot.lane.b32.xlu0 %v1703, 4
        %v4282 = vpop.permute.xlu0 %4281
        %4283 = vrot.lane.b32.xlu0 %v1706, 4
        %v4284 = vpop.permute.xlu0 %4283
        %4285 = vrot.lane.b32.xlu0 %v1708, 4
        %v4286 = vpop.permute.xlu0 %4285
        %4319 = vrot.lane.b32.xlu0 %v1711, 8
        %v4320 = vpop.permute.xlu0 %4319
        %4321 = vrot.lane.b32.xlu0 %v1713, 8
        %v4322 = vpop.permute.xlu0 %4321
        %4323 = vrot.lane.b32.xlu0 %v1716, 8
        %v4324 = vpop.permute.xlu0 %4323
        %4325 = vrot.lane.b32.xlu0 %v1718, 8
        %v4326 = vpop.permute.xlu0 %4325
        %4327 = vrot.lane.b32.xlu0 %v1721, 8
        %v4328 = vpop.permute.xlu0 %4327
        %4329 = vrot.lane.b32.xlu0 %v1723, 8
        %v4330 = vpop.permute.xlu0 %4329
        %4331 = vrot.lane.b32.xlu0 %v1726, 8
        %v4332 = vpop.permute.xlu0 %4331
        %4333 = vrot.lane.b32.xlu0 %v1728, 8
        %v4334 = vpop.permute.xlu0 %4333
        %4335 = vrot.lane.b32.xlu0 %v1731, 8
        %v4336 = vpop.permute.xlu0 %4335
        %4337 = vrot.lane.b32.xlu0 %v1733, 8
        %v4338 = vpop.permute.xlu0 %4337
        %4339 = vrot.lane.b32.xlu0 %v1736, 8
        %v4340 = vpop.permute.xlu0 %4339
        %4341 = vrot.lane.b32.xlu0 %v1738, 8
        %v4342 = vpop.permute.xlu0 %4341
        %4343 = vrot.lane.b32.xlu0 %v1741, 8
        %v4344 = vpop.permute.xlu0 %4343
        %4345 = vrot.lane.b32.xlu0 %v1743, 8
        %v4346 = vpop.permute.xlu0 %4345
        %4347 = vrot.lane.b32.xlu0 %v1746, 8
        %v4348 = vpop.permute.xlu0 %4347
        %4349 = vrot.lane.b32.xlu0 %v1748, 8
        %v4350 = vpop.permute.xlu0 %4349
        %4351 = vrot.lane.b32.xlu0 %v1751, 8
        %v4352 = vpop.permute.xlu0 %4351
        %4353 = vrot.lane.b32.xlu0 %v1753, 8
        %v4354 = vpop.permute.xlu0 %4353
        %4355 = vrot.lane.b32.xlu0 %v1756, 8
        %v4356 = vpop.permute.xlu0 %4355
        %4357 = vrot.lane.b32.xlu0 %v1758, 8
        %v4358 = vpop.permute.xlu0 %4357
        %4359 = vrot.lane.b32.xlu0 %v1761, 8
        %v4360 = vpop.permute.xlu0 %4359
        %4361 = vrot.lane.b32.xlu0 %v1763, 8
        %v4362 = vpop.permute.xlu0 %4361
        %4363 = vrot.lane.b32.xlu0 %v1766, 8
        %v4364 = vpop.permute.xlu0 %4363
        %4365 = vrot.lane.b32.xlu0 %v1768, 8
        %v4366 = vpop.permute.xlu0 %4365
        %4367 = vrot.lane.b32.xlu0 %v1771, 8
        %v4368 = vpop.permute.xlu0 %4367
        %4369 = vrot.lane.b32.xlu0 %v1773, 8
        %v4370 = vpop.permute.xlu0 %4369
        %4371 = vrot.lane.b32.xlu0 %v1776, 8
        %v4372 = vpop.permute.xlu0 %4371
        %4373 = vrot.lane.b32.xlu0 %v1778, 8
        %v4374 = vpop.permute.xlu0 %4373
        %4375 = vrot.lane.b32.xlu0 %v1781, 8
        %v4376 = vpop.permute.xlu0 %4375
        %4377 = vrot.lane.b32.xlu0 %v1783, 8
        %v4378 = vpop.permute.xlu0 %4377
        %4379 = vrot.lane.b32.xlu0 %v1786, 8
        %v4380 = vpop.permute.xlu0 %4379
        %4381 = vrot.lane.b32.xlu0 %v1788, 8
        %v4382 = vpop.permute.xlu0 %4381
        %4415 = vrot.lane.b32.xlu0 %v1791, 12
        %v4416 = vpop.permute.xlu0 %4415
        %4417 = vrot.lane.b32.xlu0 %v1793, 12
        %v4418 = vpop.permute.xlu0 %4417
        %4419 = vrot.lane.b32.xlu0 %v1796, 12
        %v4420 = vpop.permute.xlu0 %4419
        %4421 = vrot.lane.b32.xlu0 %v1798, 12
        %v4422 = vpop.permute.xlu0 %4421
        %4423 = vrot.lane.b32.xlu0 %v1801, 12
        %v4424 = vpop.permute.xlu0 %4423
        %4425 = vrot.lane.b32.xlu0 %v1803, 12
        %v4426 = vpop.permute.xlu0 %4425
        %4427 = vrot.lane.b32.xlu0 %v1806, 12
        %v4428 = vpop.permute.xlu0 %4427
        %4429 = vrot.lane.b32.xlu0 %v1808, 12
        %v4430 = vpop.permute.xlu0 %4429
        %4431 = vrot.lane.b32.xlu0 %v1811, 12
        %v4432 = vpop.permute.xlu0 %4431
        %4433 = vrot.lane.b32.xlu0 %v1813, 12
        %v4434 = vpop.permute.xlu0 %4433
        %4435 = vrot.lane.b32.xlu0 %v1816, 12
        %v4436 = vpop.permute.xlu0 %4435
        %4437 = vrot.lane.b32.xlu0 %v1818, 12
        %v4438 = vpop.permute.xlu0 %4437
        %4439 = vrot.lane.b32.xlu0 %v1821, 12
        %v4440 = vpop.permute.xlu0 %4439
        %4441 = vrot.lane.b32.xlu0 %v1823, 12
        %v4442 = vpop.permute.xlu0 %4441
        %4443 = vrot.lane.b32.xlu0 %v1826, 12
        %v4444 = vpop.permute.xlu0 %4443
        %4445 = vrot.lane.b32.xlu0 %v1828, 12
        %v4446 = vpop.permute.xlu0 %4445
        %4447 = vrot.lane.b32.xlu0 %v1831, 12
        %v4448 = vpop.permute.xlu0 %4447
        %4449 = vrot.lane.b32.xlu0 %v1833, 12
        %v4450 = vpop.permute.xlu0 %4449
        %4451 = vrot.lane.b32.xlu0 %v1836, 12
        %v4452 = vpop.permute.xlu0 %4451
        %4453 = vrot.lane.b32.xlu0 %v1838, 12
        %v4454 = vpop.permute.xlu0 %4453
        %4455 = vrot.lane.b32.xlu0 %v1841, 12
        %v4456 = vpop.permute.xlu0 %4455
        %4457 = vrot.lane.b32.xlu0 %v1843, 12
        %v4458 = vpop.permute.xlu0 %4457
        %4459 = vrot.lane.b32.xlu0 %v1846, 12
        %v4460 = vpop.permute.xlu0 %4459
        %4461 = vrot.lane.b32.xlu0 %v1848, 12
        %v4462 = vpop.permute.xlu0 %4461
        %4463 = vrot.lane.b32.xlu0 %v1851, 12
        %v4464 = vpop.permute.xlu0 %4463
        %4465 = vrot.lane.b32.xlu0 %v1853, 12
        %v4466 = vpop.permute.xlu0 %4465
        %4467 = vrot.lane.b32.xlu0 %v1856, 12
        %v4468 = vpop.permute.xlu0 %4467
        %4469 = vrot.lane.b32.xlu0 %v1858, 12
        %v4470 = vpop.permute.xlu0 %4469
        %4471 = vrot.lane.b32.xlu0 %v1861, 12
        %v4472 = vpop.permute.xlu0 %4471
        %4473 = vrot.lane.b32.xlu0 %v1863, 12
        %v4474 = vpop.permute.xlu0 %4473
        %4475 = vrot.lane.b32.xlu0 %v1866, 12
        %v4476 = vpop.permute.xlu0 %4475
        %4477 = vrot.lane.b32.xlu0 %v1868, 12
        %v4478 = vpop.permute.xlu0 %4477
        %4511 = vrot.lane.b32.xlu0 %v1872, 16
        %v4512 = vpop.permute.xlu0 %4511
        %4513 = vrot.lane.b32.xlu0 %v1873, 16
        %v4514 = vpop.permute.xlu0 %4513
        %4515 = vrot.lane.b32.xlu0 %v1875, 16
        %v4516 = vpop.permute.xlu0 %4515
        %4517 = vrot.lane.b32.xlu0 %v1876, 16
        %v4518 = vpop.permute.xlu0 %4517
        %4519 = vrot.lane.b32.xlu0 %v1878, 16
        %v4520 = vpop.permute.xlu0 %4519
        %4521 = vrot.lane.b32.xlu0 %v1879, 16
        %v4522 = vpop.permute.xlu0 %4521
        %4523 = vrot.lane.b32.xlu0 %v1881, 16
        %v4524 = vpop.permute.xlu0 %4523
        %4525 = vrot.lane.b32.xlu0 %v1882, 16
        %v4526 = vpop.permute.xlu0 %4525
        %4527 = vrot.lane.b32.xlu0 %v1884, 16
        %v4528 = vpop.permute.xlu0 %4527
        %4529 = vrot.lane.b32.xlu0 %v1885, 16
        %v4530 = vpop.permute.xlu0 %4529
        %4531 = vrot.lane.b32.xlu0 %v1887, 16
        %v4532 = vpop.permute.xlu0 %4531
        %4533 = vrot.lane.b32.xlu0 %v1888, 16
        %v4534 = vpop.permute.xlu0 %4533
        %4535 = vrot.lane.b32.xlu0 %v1890, 16
        %v4536 = vpop.permute.xlu0 %4535
        %4537 = vrot.lane.b32.xlu0 %v1891, 16
        %v4538 = vpop.permute.xlu0 %4537
        %4539 = vrot.lane.b32.xlu0 %v1893, 16
        %v4540 = vpop.permute.xlu0 %4539
        %4541 = vrot.lane.b32.xlu0 %v1894, 16
        %v4542 = vpop.permute.xlu0 %4541
        %4543 = vrot.lane.b32.xlu0 %v1896, 16
        %v4544 = vpop.permute.xlu0 %4543
        %4545 = vrot.lane.b32.xlu0 %v1897, 16
        %v4546 = vpop.permute.xlu0 %4545
        %4547 = vrot.lane.b32.xlu0 %v1899, 16
        %v4548 = vpop.permute.xlu0 %4547
        %4549 = vrot.lane.b32.xlu0 %v1900, 16
        %v4550 = vpop.permute.xlu0 %4549
        %4551 = vrot.lane.b32.xlu0 %v1902, 16
        %v4552 = vpop.permute.xlu0 %4551
        %4553 = vrot.lane.b32.xlu0 %v1903, 16
        %v4554 = vpop.permute.xlu0 %4553
        %4555 = vrot.lane.b32.xlu0 %v1905, 16
        %v4556 = vpop.permute.xlu0 %4555
        %4557 = vrot.lane.b32.xlu0 %v1906, 16
        %v4558 = vpop.permute.xlu0 %4557
        %4559 = vrot.lane.b32.xlu0 %v1908, 16
        %v4560 = vpop.permute.xlu0 %4559
        %4561 = vrot.lane.b32.xlu0 %v1909, 16
        %v4562 = vpop.permute.xlu0 %4561
        %4563 = vrot.lane.b32.xlu0 %v1911, 16
        %v4564 = vpop.permute.xlu0 %4563
        %4565 = vrot.lane.b32.xlu0 %v1912, 16
        %v4566 = vpop.permute.xlu0 %4565
        %4567 = vrot.lane.b32.xlu0 %v1914, 16
        %v4568 = vpop.permute.xlu0 %4567
        %4569 = vrot.lane.b32.xlu0 %v1915, 16
        %v4570 = vpop.permute.xlu0 %4569
        %4571 = vrot.lane.b32.xlu0 %v1917, 16
        %v4572 = vpop.permute.xlu0 %4571
        %4573 = vrot.lane.b32.xlu0 %v1918, 16
        %v4574 = vpop.permute.xlu0 %4573
        %4607 = vrot.lane.b32.xlu0 %v1970, 20
        %v4608 = vpop.permute.xlu0 %4607
        %4609 = vrot.lane.b32.xlu0 %v1972, 20
        %v4610 = vpop.permute.xlu0 %4609
        %4611 = vrot.lane.b32.xlu0 %v1975, 20
        %v4612 = vpop.permute.xlu0 %4611
        %4613 = vrot.lane.b32.xlu0 %v1977, 20
        %v4614 = vpop.permute.xlu0 %4613
        %4615 = vrot.lane.b32.xlu0 %v1980, 20
        %v4616 = vpop.permute.xlu0 %4615
        %4617 = vrot.lane.b32.xlu0 %v1982, 20
        %v4618 = vpop.permute.xlu0 %4617
        %4619 = vrot.lane.b32.xlu0 %v1985, 20
        %v4620 = vpop.permute.xlu0 %4619
        %4621 = vrot.lane.b32.xlu0 %v1987, 20
        %v4622 = vpop.permute.xlu0 %4621
        %4623 = vrot.lane.b32.xlu0 %v1990, 20
        %v4624 = vpop.permute.xlu0 %4623
        %4625 = vrot.lane.b32.xlu0 %v1992, 20
        %v4626 = vpop.permute.xlu0 %4625
        %4627 = vrot.lane.b32.xlu0 %v1995, 20
        %v4628 = vpop.permute.xlu0 %4627
        %4629 = vrot.lane.b32.xlu0 %v1997, 20
        %v4630 = vpop.permute.xlu0 %4629
        %4631 = vrot.lane.b32.xlu0 %v2000, 20
        %v4632 = vpop.permute.xlu0 %4631
        %4633 = vrot.lane.b32.xlu0 %v2002, 20
        %v4634 = vpop.permute.xlu0 %4633
        %4635 = vrot.lane.b32.xlu0 %v2005, 20
        %v4636 = vpop.permute.xlu0 %4635
        %4637 = vrot.lane.b32.xlu0 %v2007, 20
        %v4638 = vpop.permute.xlu0 %4637
        %4639 = vrot.lane.b32.xlu0 %v2010, 20
        %v4640 = vpop.permute.xlu0 %4639
        %4641 = vrot.lane.b32.xlu0 %v2012, 20
        %v4642 = vpop.permute.xlu0 %4641
        %4643 = vrot.lane.b32.xlu0 %v2015, 20
        %v4644 = vpop.permute.xlu0 %4643
        %4645 = vrot.lane.b32.xlu0 %v2017, 20
        %v4646 = vpop.permute.xlu0 %4645
        %4647 = vrot.lane.b32.xlu0 %v2020, 20
        %v4648 = vpop.permute.xlu0 %4647
        %4649 = vrot.lane.b32.xlu0 %v2022, 20
        %v4650 = vpop.permute.xlu0 %4649
        %4651 = vrot.lane.b32.xlu0 %v2025, 20
        %v4652 = vpop.permute.xlu0 %4651
        %4653 = vrot.lane.b32.xlu0 %v2027, 20
        %v4654 = vpop.permute.xlu0 %4653
        %4655 = vrot.lane.b32.xlu0 %v2030, 20
        %v4656 = vpop.permute.xlu0 %4655
        %4657 = vrot.lane.b32.xlu0 %v2032, 20
        %v4658 = vpop.permute.xlu0 %4657
        %4659 = vrot.lane.b32.xlu0 %v2035, 20
        %v4660 = vpop.permute.xlu0 %4659
        %4661 = vrot.lane.b32.xlu0 %v2037, 20
        %v4662 = vpop.permute.xlu0 %4661
        %4663 = vrot.lane.b32.xlu0 %v2040, 20
        %v4664 = vpop.permute.xlu0 %4663
        %4665 = vrot.lane.b32.xlu0 %v2042, 20
        %v4666 = vpop.permute.xlu0 %4665
        %4667 = vrot.lane.b32.xlu0 %v2045, 20
        %v4668 = vpop.permute.xlu0 %4667
        %4669 = vrot.lane.b32.xlu0 %v2047, 20
        %v4670 = vpop.permute.xlu0 %4669
        %4703 = vrot.lane.b32.xlu0 %v2050, 24
        %v4704 = vpop.permute.xlu0 %4703
        %4705 = vrot.lane.b32.xlu0 %v2052, 24
        %v4706 = vpop.permute.xlu0 %4705
        %4707 = vrot.lane.b32.xlu0 %v2055, 24
        %v4708 = vpop.permute.xlu0 %4707
        %4709 = vrot.lane.b32.xlu0 %v2057, 24
        %v4710 = vpop.permute.xlu0 %4709
        %4711 = vrot.lane.b32.xlu0 %v2060, 24
        %v4712 = vpop.permute.xlu0 %4711
        %4713 = vrot.lane.b32.xlu0 %v2062, 24
        %v4714 = vpop.permute.xlu0 %4713
        %4715 = vrot.lane.b32.xlu0 %v2065, 24
        %v4716 = vpop.permute.xlu0 %4715
        %4717 = vrot.lane.b32.xlu0 %v2067, 24
        %v4718 = vpop.permute.xlu0 %4717
        %4719 = vrot.lane.b32.xlu0 %v2070, 24
        %v4720 = vpop.permute.xlu0 %4719
        %4721 = vrot.lane.b32.xlu0 %v2072, 24
        %v4722 = vpop.permute.xlu0 %4721
        %4723 = vrot.lane.b32.xlu0 %v2075, 24
        %v4724 = vpop.permute.xlu0 %4723
        %4725 = vrot.lane.b32.xlu0 %v2077, 24
        %v4726 = vpop.permute.xlu0 %4725
        %4727 = vrot.lane.b32.xlu0 %v2080, 24
        %v4728 = vpop.permute.xlu0 %4727
        %4729 = vrot.lane.b32.xlu0 %v2082, 24
        %v4730 = vpop.permute.xlu0 %4729
        %4731 = vrot.lane.b32.xlu0 %v2085, 24
        %v4732 = vpop.permute.xlu0 %4731
        %4733 = vrot.lane.b32.xlu0 %v2087, 24
        %v4734 = vpop.permute.xlu0 %4733
        %4735 = vrot.lane.b32.xlu0 %v2090, 24
        %v4736 = vpop.permute.xlu0 %4735
        %4737 = vrot.lane.b32.xlu0 %v2092, 24
        %v4738 = vpop.permute.xlu0 %4737
        %4739 = vrot.lane.b32.xlu0 %v2095, 24
        %v4740 = vpop.permute.xlu0 %4739
        %4741 = vrot.lane.b32.xlu0 %v2097, 24
        %v4742 = vpop.permute.xlu0 %4741
        %4743 = vrot.lane.b32.xlu0 %v2100, 24
        %v4744 = vpop.permute.xlu0 %4743
        %4745 = vrot.lane.b32.xlu0 %v2102, 24
        %v4746 = vpop.permute.xlu0 %4745
        %4747 = vrot.lane.b32.xlu0 %v2105, 24
        %v4748 = vpop.permute.xlu0 %4747
        %4749 = vrot.lane.b32.xlu0 %v2107, 24
        %v4750 = vpop.permute.xlu0 %4749
        %4751 = vrot.lane.b32.xlu0 %v2110, 24
        %v4752 = vpop.permute.xlu0 %4751
        %4753 = vrot.lane.b32.xlu0 %v2112, 24
        %v4754 = vpop.permute.xlu0 %4753
        %4755 = vrot.lane.b32.xlu0 %v2115, 24
        %v4756 = vpop.permute.xlu0 %4755
        %4757 = vrot.lane.b32.xlu0 %v2117, 24
        %v4758 = vpop.permute.xlu0 %4757
        %4759 = vrot.lane.b32.xlu0 %v2120, 24
        %v4760 = vpop.permute.xlu0 %4759
        %4761 = vrot.lane.b32.xlu0 %v2122, 24
        %v4762 = vpop.permute.xlu0 %4761
        %4763 = vrot.lane.b32.xlu0 %v2125, 24
        %v4764 = vpop.permute.xlu0 %4763
        %4765 = vrot.lane.b32.xlu0 %v2127, 24
        %v4766 = vpop.permute.xlu0 %4765
        %4799 = vrot.lane.b32.xlu0 %v2130, 28
        %v4800 = vpop.permute.xlu0 %4799
        %4801 = vrot.lane.b32.xlu0 %v2132, 28
        %v4802 = vpop.permute.xlu0 %4801
        %4803 = vrot.lane.b32.xlu0 %v2135, 28
        %v4804 = vpop.permute.xlu0 %4803
        %4805 = vrot.lane.b32.xlu0 %v2137, 28
        %v4806 = vpop.permute.xlu0 %4805
        %4807 = vrot.lane.b32.xlu0 %v2140, 28
        %v4808 = vpop.permute.xlu0 %4807
        %4809 = vrot.lane.b32.xlu0 %v2142, 28
        %v4810 = vpop.permute.xlu0 %4809
        %4811 = vrot.lane.b32.xlu0 %v2145, 28
        %v4812 = vpop.permute.xlu0 %4811
        %4813 = vrot.lane.b32.xlu0 %v2147, 28
        %v4814 = vpop.permute.xlu0 %4813
        %4815 = vrot.lane.b32.xlu0 %v2150, 28
        %v4816 = vpop.permute.xlu0 %4815
        %4817 = vrot.lane.b32.xlu0 %v2152, 28
        %v4818 = vpop.permute.xlu0 %4817
        %4819 = vrot.lane.b32.xlu0 %v2155, 28
        %v4820 = vpop.permute.xlu0 %4819
        %4821 = vrot.lane.b32.xlu0 %v2157, 28
        %v4822 = vpop.permute.xlu0 %4821
        %4823 = vrot.lane.b32.xlu0 %v2160, 28
        %v4824 = vpop.permute.xlu0 %4823
        %4825 = vrot.lane.b32.xlu0 %v2162, 28
        %v4826 = vpop.permute.xlu0 %4825
        %4827 = vrot.lane.b32.xlu0 %v2165, 28
        %v4828 = vpop.permute.xlu0 %4827
        %4829 = vrot.lane.b32.xlu0 %v2167, 28
        %v4830 = vpop.permute.xlu0 %4829
        %4831 = vrot.lane.b32.xlu0 %v2170, 28
        %v4832 = vpop.permute.xlu0 %4831
        %4833 = vrot.lane.b32.xlu0 %v2172, 28
        %v4834 = vpop.permute.xlu0 %4833
        %4835 = vrot.lane.b32.xlu0 %v2175, 28
        %v4836 = vpop.permute.xlu0 %4835
        %4837 = vrot.lane.b32.xlu0 %v2177, 28
        %v4838 = vpop.permute.xlu0 %4837
        %4839 = vrot.lane.b32.xlu0 %v2180, 28
        %v4840 = vpop.permute.xlu0 %4839
        %4841 = vrot.lane.b32.xlu0 %v2182, 28
        %v4842 = vpop.permute.xlu0 %4841
        %4843 = vrot.lane.b32.xlu0 %v2185, 28
        %v4844 = vpop.permute.xlu0 %4843
        %4845 = vrot.lane.b32.xlu0 %v2187, 28
        %v4846 = vpop.permute.xlu0 %4845
        %4847 = vrot.lane.b32.xlu0 %v2190, 28
        %v4848 = vpop.permute.xlu0 %4847
        %4849 = vrot.lane.b32.xlu0 %v2192, 28
        %v4850 = vpop.permute.xlu0 %4849
        %4851 = vrot.lane.b32.xlu0 %v2195, 28
        %v4852 = vpop.permute.xlu0 %4851
        %4853 = vrot.lane.b32.xlu0 %v2197, 28
        %v4854 = vpop.permute.xlu0 %4853
        %4855 = vrot.lane.b32.xlu0 %v2200, 28
        %v4856 = vpop.permute.xlu0 %4855
        %4857 = vrot.lane.b32.xlu0 %v2202, 28
        %v4858 = vpop.permute.xlu0 %4857
        %4859 = vrot.lane.b32.xlu0 %v2205, 28
        %v4860 = vpop.permute.xlu0 %4859
        %4861 = vrot.lane.b32.xlu0 %v2207, 28
        %v4862 = vpop.permute.xlu0 %4861
        %4895 = vrot.lane.b32.xlu0 %v2210, 32
        %v4896 = vpop.permute.xlu0 %4895
        %4897 = vrot.lane.b32.xlu0 %v2212, 32
        %v4898 = vpop.permute.xlu0 %4897
        %4899 = vrot.lane.b32.xlu0 %v2215, 32
        %v4900 = vpop.permute.xlu0 %4899
        %4901 = vrot.lane.b32.xlu0 %v2217, 32
        %v4902 = vpop.permute.xlu0 %4901
        %4903 = vrot.lane.b32.xlu0 %v2220, 32
        %v4904 = vpop.permute.xlu0 %4903
        %4905 = vrot.lane.b32.xlu0 %v2222, 32
        %v4906 = vpop.permute.xlu0 %4905
        %4907 = vrot.lane.b32.xlu0 %v2225, 32
        %v4908 = vpop.permute.xlu0 %4907
        %4909 = vrot.lane.b32.xlu0 %v2227, 32
        %v4910 = vpop.permute.xlu0 %4909
        %4911 = vrot.lane.b32.xlu0 %v2230, 32
        %v4912 = vpop.permute.xlu0 %4911
        %4913 = vrot.lane.b32.xlu0 %v2232, 32
        %v4914 = vpop.permute.xlu0 %4913
        %4915 = vrot.lane.b32.xlu0 %v2235, 32
        %v4916 = vpop.permute.xlu0 %4915
        %4917 = vrot.lane.b32.xlu0 %v2237, 32
        %v4918 = vpop.permute.xlu0 %4917
        %4919 = vrot.lane.b32.xlu0 %v2240, 32
        %v4920 = vpop.permute.xlu0 %4919
        %4921 = vrot.lane.b32.xlu0 %v2242, 32
        %v4922 = vpop.permute.xlu0 %4921
        %4923 = vrot.lane.b32.xlu0 %v2245, 32
        %v4924 = vpop.permute.xlu0 %4923
        %4925 = vrot.lane.b32.xlu0 %v2247, 32
        %v4926 = vpop.permute.xlu0 %4925
        %4927 = vrot.lane.b32.xlu0 %v2250, 32
        %v4928 = vpop.permute.xlu0 %4927
        %4929 = vrot.lane.b32.xlu0 %v2252, 32
        %v4930 = vpop.permute.xlu0 %4929
        %4931 = vrot.lane.b32.xlu0 %v2255, 32
        %v4932 = vpop.permute.xlu0 %4931
        %4933 = vrot.lane.b32.xlu0 %v2257, 32
        %v4934 = vpop.permute.xlu0 %4933
        %4935 = vrot.lane.b32.xlu0 %v2260, 32
        %v4936 = vpop.permute.xlu0 %4935
        %4937 = vrot.lane.b32.xlu0 %v2262, 32
        %v4938 = vpop.permute.xlu0 %4937
        %4939 = vrot.lane.b32.xlu0 %v2265, 32
        %v4940 = vpop.permute.xlu0 %4939
        %4941 = vrot.lane.b32.xlu0 %v2267, 32
        %v4942 = vpop.permute.xlu0 %4941
        %4943 = vrot.lane.b32.xlu0 %v2270, 32
        %v4944 = vpop.permute.xlu0 %4943
        %4945 = vrot.lane.b32.xlu0 %v2272, 32
        %v4946 = vpop.permute.xlu0 %4945
        %4947 = vrot.lane.b32.xlu0 %v2275, 32
        %v4948 = vpop.permute.xlu0 %4947
        %4949 = vrot.lane.b32.xlu0 %v2277, 32
        %v4950 = vpop.permute.xlu0 %4949
        %4951 = vrot.lane.b32.xlu0 %v2280, 32
        %v4952 = vpop.permute.xlu0 %4951
        %4953 = vrot.lane.b32.xlu0 %v2282, 32
        %v4954 = vpop.permute.xlu0 %4953
        %4955 = vrot.lane.b32.xlu0 %v2285, 32
        %v4956 = vpop.permute.xlu0 %4955
        %4957 = vrot.lane.b32.xlu0 %v2287, 32
        %v4958 = vpop.permute.xlu0 %4957
        %v4991 = vsel %vm3728, %v1519, %v4224
        %v4992 = vsel %vm3728, %v1521, %v4226
        %v4993 = vsel %vm3728, %v1524, %v4228
        %v4994 = vsel %vm3728, %v1526, %v4230
        %v4995 = vsel %vm3728, %v1529, %v4232
        %v4996 = vsel %vm3728, %v1531, %v4234
        %v4997 = vsel %vm3728, %v1534, %v4236
        %v4998 = vsel %vm3728, %v1536, %v4238
        %v4999 = vsel %vm3728, %v1539, %v4240
        %v5000 = vsel %vm3728, %v1541, %v4242
        %v5001 = vsel %vm3728, %v1544, %v4244
        %v5002 = vsel %vm3728, %v1546, %v4246
        %v5003 = vsel %vm3728, %v1549, %v4248
        %v5004 = vsel %vm3728, %v1551, %v4250
        %v5005 = vsel %vm3728, %v1554, %v4252
        %v5006 = vsel %vm3728, %v1556, %v4254
        %v5007 = vsel %vm3728, %v1559, %v4256
        %v5008 = vsel %vm3728, %v1561, %v4258
        %v5009 = vsel %vm3728, %v1564, %v4260
        %v5010 = vsel %vm3728, %v1566, %v4262
        %v5011 = vsel %vm3728, %v1569, %v4264
        %v5012 = vsel %vm3728, %v1571, %v4266
        %v5013 = vsel %vm3728, %v1574, %v4268
        %v5014 = vsel %vm3728, %v1576, %v4270
        %v5015 = vsel %vm3728, %v1579, %v4272
        %v5016 = vsel %vm3728, %v1581, %v4274
        %v5017 = vsel %vm3728, %v1584, %v4276
        %v5018 = vsel %vm3728, %v1586, %v4278
        %v5019 = vsel %vm3728, %v1589, %v4280
        %v5020 = vsel %vm3728, %v1591, %v4282
        %v5021 = vsel %vm3728, %v1594, %v4284
        %v5022 = vsel %vm3728, %v1596, %v4286
        %v5023 = vsel %vm3761, %v4991, %v4320
        %v5024 = vsel %vm3761, %v4992, %v4322
        %v5025 = vsel %vm3761, %v4993, %v4324
        %v5026 = vsel %vm3761, %v4994, %v4326
        %v5027 = vsel %vm3761, %v4995, %v4328
        %v5028 = vsel %vm3761, %v4996, %v4330
        %v5029 = vsel %vm3761, %v4997, %v4332
        %v5030 = vsel %vm3761, %v4998, %v4334
        %v5031 = vsel %vm3761, %v4999, %v4336
        %v5032 = vsel %vm3761, %v5000, %v4338
        %v5033 = vsel %vm3761, %v5001, %v4340
        %v5034 = vsel %vm3761, %v5002, %v4342
        %v5035 = vsel %vm3761, %v5003, %v4344
        %v5036 = vsel %vm3761, %v5004, %v4346
        %v5037 = vsel %vm3761, %v5005, %v4348
        %v5038 = vsel %vm3761, %v5006, %v4350
        %v5039 = vsel %vm3761, %v5007, %v4352
        %v5040 = vsel %vm3761, %v5008, %v4354
        %v5041 = vsel %vm3761, %v5009, %v4356
        %v5042 = vsel %vm3761, %v5010, %v4358
        %v5043 = vsel %vm3761, %v5011, %v4360
        %v5044 = vsel %vm3761, %v5012, %v4362
        %v5045 = vsel %vm3761, %v5013, %v4364
        %v5046 = vsel %vm3761, %v5014, %v4366
        %v5047 = vsel %vm3761, %v5015, %v4368
        %v5048 = vsel %vm3761, %v5016, %v4370
        %v5049 = vsel %vm3761, %v5017, %v4372
        %v5050 = vsel %vm3761, %v5018, %v4374
        %v5051 = vsel %vm3761, %v5019, %v4376
        %v5052 = vsel %vm3761, %v5020, %v4378
        %v5053 = vsel %vm3761, %v5021, %v4380
        %v5054 = vsel %vm3761, %v5022, %v4382
        %v5055 = vsel %vm3794, %v5023, %v4416
        %v5056 = vsel %vm3794, %v5024, %v4418
        %v5057 = vsel %vm3794, %v5025, %v4420
        %v5058 = vsel %vm3794, %v5026, %v4422
        %v5059 = vsel %vm3794, %v5027, %v4424
        %v5060 = vsel %vm3794, %v5028, %v4426
        %v5061 = vsel %vm3794, %v5029, %v4428
        %v5062 = vsel %vm3794, %v5030, %v4430
        %v5063 = vsel %vm3794, %v5031, %v4432
        %v5064 = vsel %vm3794, %v5032, %v4434
        %v5065 = vsel %vm3794, %v5033, %v4436
        %v5066 = vsel %vm3794, %v5034, %v4438
        %v5067 = vsel %vm3794, %v5035, %v4440
        %v5068 = vsel %vm3794, %v5036, %v4442
        %v5069 = vsel %vm3794, %v5037, %v4444
        %v5070 = vsel %vm3794, %v5038, %v4446
        %v5071 = vsel %vm3794, %v5039, %v4448
        %v5072 = vsel %vm3794, %v5040, %v4450
        %v5073 = vsel %vm3794, %v5041, %v4452
        %v5074 = vsel %vm3794, %v5042, %v4454
        %v5075 = vsel %vm3794, %v5043, %v4456
        %v5076 = vsel %vm3794, %v5044, %v4458
        %v5077 = vsel %vm3794, %v5045, %v4460
        %v5078 = vsel %vm3794, %v5046, %v4462
        %v5079 = vsel %vm3794, %v5047, %v4464
        %v5080 = vsel %vm3794, %v5048, %v4466
        %v5081 = vsel %vm3794, %v5049, %v4468
        %v5082 = vsel %vm3794, %v5050, %v4470
        %v5083 = vsel %vm3794, %v5051, %v4472
        %v5084 = vsel %vm3794, %v5052, %v4474
        %v5085 = vsel %vm3794, %v5053, %v4476
        %v5086 = vsel %vm3794, %v5054, %v4478
        %v5087 = vsel %vm3827, %v5055, %v4512
        %v5088 = vsel %vm3827, %v5056, %v4514
        %v5089 = vsel %vm3827, %v5057, %v4516
        %v5090 = vsel %vm3827, %v5058, %v4518
        %v5091 = vsel %vm3827, %v5059, %v4520
        %v5092 = vsel %vm3827, %v5060, %v4522
        %v5093 = vsel %vm3827, %v5061, %v4524
        %v5094 = vsel %vm3827, %v5062, %v4526
        %v5095 = vsel %vm3827, %v5063, %v4528
        %v5096 = vsel %vm3827, %v5064, %v4530
        %v5097 = vsel %vm3827, %v5065, %v4532
        %v5098 = vsel %vm3827, %v5066, %v4534
        %v5099 = vsel %vm3827, %v5067, %v4536
        %v5100 = vsel %vm3827, %v5068, %v4538
        %v5101 = vsel %vm3827, %v5069, %v4540
        %v5102 = vsel %vm3827, %v5070, %v4542
        %v5103 = vsel %vm3827, %v5071, %v4544
        %v5104 = vsel %vm3827, %v5072, %v4546
        %v5105 = vsel %vm3827, %v5073, %v4548
        %v5106 = vsel %vm3827, %v5074, %v4550
        %v5107 = vsel %vm3827, %v5075, %v4552
        %v5108 = vsel %vm3827, %v5076, %v4554
        %v5109 = vsel %vm3827, %v5077, %v4556
        %v5110 = vsel %vm3827, %v5078, %v4558
        %v5111 = vsel %vm3827, %v5079, %v4560
        %v5112 = vsel %vm3827, %v5080, %v4562
        %v5113 = vsel %vm3827, %v5081, %v4564
        %v5114 = vsel %vm3827, %v5082, %v4566
        %v5115 = vsel %vm3827, %v5083, %v4568
        %v5116 = vsel %vm3827, %v5084, %v4570
        %v5117 = vsel %vm3827, %v5085, %v4572
        %v5118 = vsel %vm3827, %v5086, %v4574
        %v5119 = vsel %vm3860, %v5087, %v4608
        %v5120 = vsel %vm3860, %v5088, %v4610
        %v5121 = vsel %vm3860, %v5089, %v4612
        %v5122 = vsel %vm3860, %v5090, %v4614
        %v5123 = vsel %vm3860, %v5091, %v4616
        %v5124 = vsel %vm3860, %v5092, %v4618
        %v5125 = vsel %vm3860, %v5093, %v4620
        %v5126 = vsel %vm3860, %v5094, %v4622
        %v5127 = vsel %vm3860, %v5095, %v4624
        %v5128 = vsel %vm3860, %v5096, %v4626
        %v5129 = vsel %vm3860, %v5097, %v4628
        %v5130 = vsel %vm3860, %v5098, %v4630
        %v5131 = vsel %vm3860, %v5099, %v4632
        %v5132 = vsel %vm3860, %v5100, %v4634
        %v5133 = vsel %vm3860, %v5101, %v4636
        %v5134 = vsel %vm3860, %v5102, %v4638
        %v5135 = vsel %vm3860, %v5103, %v4640
        %v5136 = vsel %vm3860, %v5104, %v4642
        %v5137 = vsel %vm3860, %v5105, %v4644
        %v5138 = vsel %vm3860, %v5106, %v4646
        %v5139 = vsel %vm3860, %v5107, %v4648
        %v5140 = vsel %vm3860, %v5108, %v4650
        %v5141 = vsel %vm3860, %v5109, %v4652
        %v5142 = vsel %vm3860, %v5110, %v4654
        %v5143 = vsel %vm3860, %v5111, %v4656
        %v5144 = vsel %vm3860, %v5112, %v4658
        %v5145 = vsel %vm3860, %v5113, %v4660
        %v5146 = vsel %vm3860, %v5114, %v4662
        %v5147 = vsel %vm3860, %v5115, %v4664
        %v5148 = vsel %vm3860, %v5116, %v4666
        %v5149 = vsel %vm3860, %v5117, %v4668
        %v5150 = vsel %vm3860, %v5118, %v4670
        %v5151 = vsel %vm3893, %v5119, %v4704
        %v5152 = vsel %vm3893, %v5120, %v4706
        %v5153 = vsel %vm3893, %v5121, %v4708
        %v5154 = vsel %vm3893, %v5122, %v4710
        %v5155 = vsel %vm3893, %v5123, %v4712
        %v5156 = vsel %vm3893, %v5124, %v4714
        %v5157 = vsel %vm3893, %v5125, %v4716
        %v5158 = vsel %vm3893, %v5126, %v4718
        %v5159 = vsel %vm3893, %v5127, %v4720
        %v5160 = vsel %vm3893, %v5128, %v4722
        %v5161 = vsel %vm3893, %v5129, %v4724
        %v5162 = vsel %vm3893, %v5130, %v4726
        %v5163 = vsel %vm3893, %v5131, %v4728
        %v5164 = vsel %vm3893, %v5132, %v4730
        %v5165 = vsel %vm3893, %v5133, %v4732
        %v5166 = vsel %vm3893, %v5134, %v4734
        %v5167 = vsel %vm3893, %v5135, %v4736
        %v5168 = vsel %vm3893, %v5136, %v4738
        %v5169 = vsel %vm3893, %v5137, %v4740
        %v5170 = vsel %vm3893, %v5138, %v4742
        %v5171 = vsel %vm3893, %v5139, %v4744
        %v5172 = vsel %vm3893, %v5140, %v4746
        %v5173 = vsel %vm3893, %v5141, %v4748
        %v5174 = vsel %vm3893, %v5142, %v4750
        %v5175 = vsel %vm3893, %v5143, %v4752
        %v5176 = vsel %vm3893, %v5144, %v4754
        %v5177 = vsel %vm3893, %v5145, %v4756
        %v5178 = vsel %vm3893, %v5146, %v4758
        %v5179 = vsel %vm3893, %v5147, %v4760
        %v5180 = vsel %vm3893, %v5148, %v4762
        %v5181 = vsel %vm3893, %v5149, %v4764
        %v5182 = vsel %vm3893, %v5150, %v4766
        %v5183 = vsel %vm3926, %v5151, %v4800
        %v5184 = vsel %vm3926, %v5152, %v4802
        %v5185 = vsel %vm3926, %v5153, %v4804
        %v5186 = vsel %vm3926, %v5154, %v4806
        %v5187 = vsel %vm3926, %v5155, %v4808
        %v5188 = vsel %vm3926, %v5156, %v4810
        %v5189 = vsel %vm3926, %v5157, %v4812
        %v5190 = vsel %vm3926, %v5158, %v4814
        %v5191 = vsel %vm3926, %v5159, %v4816
        %v5192 = vsel %vm3926, %v5160, %v4818
        %v5193 = vsel %vm3926, %v5161, %v4820
        %v5194 = vsel %vm3926, %v5162, %v4822
        %v5195 = vsel %vm3926, %v5163, %v4824
        %v5196 = vsel %vm3926, %v5164, %v4826
        %v5197 = vsel %vm3926, %v5165, %v4828
        %v5198 = vsel %vm3926, %v5166, %v4830
        %v5199 = vsel %vm3926, %v5167, %v4832
        %v5200 = vsel %vm3926, %v5168, %v4834
        %v5201 = vsel %vm3926, %v5169, %v4836
        %v5202 = vsel %vm3926, %v5170, %v4838
        %v5203 = vsel %vm3926, %v5171, %v4840
        %v5204 = vsel %vm3926, %v5172, %v4842
        %v5205 = vsel %vm3926, %v5173, %v4844
        %v5206 = vsel %vm3926, %v5174, %v4846
        %v5207 = vsel %vm3926, %v5175, %v4848
        %v5208 = vsel %vm3926, %v5176, %v4850
        %v5209 = vsel %vm3926, %v5177, %v4852
        %v5210 = vsel %vm3926, %v5178, %v4854
        %v5211 = vsel %vm3926, %v5179, %v4856
        %v5212 = vsel %vm3926, %v5180, %v4858
        %v5213 = vsel %vm3926, %v5181, %v4860
        %v5214 = vsel %vm3926, %v5182, %v4862
        %v5215 = vsel %vm3959, %v5183, %v4896
        %v5216 = vsel %vm3959, %v5184, %v4898
        %v5217 = vsel %vm3959, %v5185, %v4900
        %v5218 = vsel %vm3959, %v5186, %v4902
        %v5219 = vsel %vm3959, %v5187, %v4904
        %v5220 = vsel %vm3959, %v5188, %v4906
        %v5221 = vsel %vm3959, %v5189, %v4908
        %v5222 = vsel %vm3959, %v5190, %v4910
        %v5223 = vsel %vm3959, %v5191, %v4912
        %v5224 = vsel %vm3959, %v5192, %v4914
        %v5225 = vsel %vm3959, %v5193, %v4916
        %v5226 = vsel %vm3959, %v5194, %v4918
        %v5227 = vsel %vm3959, %v5195, %v4920
        %v5228 = vsel %vm3959, %v5196, %v4922
        %v5229 = vsel %vm3959, %v5197, %v4924
        %v5230 = vsel %vm3959, %v5198, %v4926
        %v5231 = vsel %vm3959, %v5199, %v4928
        %v5232 = vsel %vm3959, %v5200, %v4930
        %v5233 = vsel %vm3959, %v5201, %v4932
        %v5234 = vsel %vm3959, %v5202, %v4934
        %v5235 = vsel %vm3959, %v5203, %v4936
        %v5236 = vsel %vm3959, %v5204, %v4938
        %v5237 = vsel %vm3959, %v5205, %v4940
        %v5238 = vsel %vm3959, %v5206, %v4942
        %v5239 = vsel %vm3959, %v5207, %v4944
        %v5240 = vsel %vm3959, %v5208, %v4946
        %v5241 = vsel %vm3959, %v5209, %v4948
        %v5242 = vsel %vm3959, %v5210, %v4950
        %v5243 = vsel %vm3959, %v5211, %v4952
        %v5244 = vsel %vm3959, %v5212, %v4954
        %v5245 = vsel %vm3959, %v5213, %v4956
        %v5246 = vsel %vm3959, %v5214, %v4958
        %5279 = vrot.lane.b32.xlu0 %v5215, 64
        %v5280 = vpop.permute.xlu0 %5279
        %5281 = vrot.lane.b32.xlu0 %v5216, 64
        %v5282 = vpop.permute.xlu0 %5281
        %5283 = vrot.lane.b32.xlu0 %v5217, 64
        %v5284 = vpop.permute.xlu0 %5283
        %5285 = vrot.lane.b32.xlu0 %v5218, 64
        %v5286 = vpop.permute.xlu0 %5285
        %5287 = vrot.lane.b32.xlu0 %v5219, 64
        %v5288 = vpop.permute.xlu0 %5287
        %5289 = vrot.lane.b32.xlu0 %v5220, 64
        %v5290 = vpop.permute.xlu0 %5289
        %5291 = vrot.lane.b32.xlu0 %v5221, 64
        %v5292 = vpop.permute.xlu0 %5291
        %5293 = vrot.lane.b32.xlu0 %v5222, 64
        %v5294 = vpop.permute.xlu0 %5293
        %5295 = vrot.lane.b32.xlu0 %v5223, 64
        %v5296 = vpop.permute.xlu0 %5295
        %5297 = vrot.lane.b32.xlu0 %v5224, 64
        %v5298 = vpop.permute.xlu0 %5297
        %5299 = vrot.lane.b32.xlu0 %v5225, 64
        %v5300 = vpop.permute.xlu0 %5299
        %5301 = vrot.lane.b32.xlu0 %v5226, 64
        %v5302 = vpop.permute.xlu0 %5301
        %5303 = vrot.lane.b32.xlu0 %v5227, 64
        %v5304 = vpop.permute.xlu0 %5303
        %5305 = vrot.lane.b32.xlu0 %v5228, 64
        %v5306 = vpop.permute.xlu0 %5305
        %5307 = vrot.lane.b32.xlu0 %v5229, 64
        %v5308 = vpop.permute.xlu0 %5307
        %5309 = vrot.lane.b32.xlu0 %v5230, 64
        %v5310 = vpop.permute.xlu0 %5309
        %5311 = vrot.lane.b32.xlu0 %v5231, 64
        %v5312 = vpop.permute.xlu0 %5311
        %5313 = vrot.lane.b32.xlu0 %v5232, 64
        %v5314 = vpop.permute.xlu0 %5313
        %5315 = vrot.lane.b32.xlu0 %v5233, 64
        %v5316 = vpop.permute.xlu0 %5315
        %5317 = vrot.lane.b32.xlu0 %v5234, 64
        %v5318 = vpop.permute.xlu0 %5317
        %5319 = vrot.lane.b32.xlu0 %v5235, 64
        %v5320 = vpop.permute.xlu0 %5319
        %5321 = vrot.lane.b32.xlu0 %v5236, 64
        %v5322 = vpop.permute.xlu0 %5321
        %5323 = vrot.lane.b32.xlu0 %v5237, 64
        %v5324 = vpop.permute.xlu0 %5323
        %5325 = vrot.lane.b32.xlu0 %v5238, 64
        %v5326 = vpop.permute.xlu0 %5325
        %5327 = vrot.lane.b32.xlu0 %v5239, 64
        %v5328 = vpop.permute.xlu0 %5327
        %5329 = vrot.lane.b32.xlu0 %v5240, 64
        %v5330 = vpop.permute.xlu0 %5329
        %5331 = vrot.lane.b32.xlu0 %v5241, 64
        %v5332 = vpop.permute.xlu0 %5331
        %5333 = vrot.lane.b32.xlu0 %v5242, 64
        %v5334 = vpop.permute.xlu0 %5333
        %5335 = vrot.lane.b32.xlu0 %v5243, 64
        %v5336 = vpop.permute.xlu0 %5335
        %5337 = vrot.lane.b32.xlu0 %v5244, 64
        %v5338 = vpop.permute.xlu0 %5337
        %5339 = vrot.lane.b32.xlu0 %v5245, 64
        %v5340 = vpop.permute.xlu0 %5339
        %5341 = vrot.lane.b32.xlu0 %v5246, 64
        %v5342 = vpop.permute.xlu0 %5341
        %vm5375 = vcmask 523264
        %v5376 = vsel %vm5375, %v4191, %v5280
        %v5377 = vsel %vm5375, %v4192, %v5282
        %v5378 = vsel %vm5375, %v4193, %v5284
        %v5379 = vsel %vm5375, %v4194, %v5286
        %v5380 = vsel %vm5375, %v4195, %v5288
        %v5381 = vsel %vm5375, %v4196, %v5290
        %v5382 = vsel %vm5375, %v4197, %v5292
        %v5383 = vsel %vm5375, %v4198, %v5294
        %v5384 = vsel %vm5375, %v4199, %v5296
        %v5385 = vsel %vm5375, %v4200, %v5298
        %v5386 = vsel %vm5375, %v4201, %v5300
        %v5387 = vsel %vm5375, %v4202, %v5302
        %v5388 = vsel %vm5375, %v4203, %v5304
        %v5389 = vsel %vm5375, %v4204, %v5306
        %v5390 = vsel %vm5375, %v4205, %v5308
        %v5391 = vsel %vm5375, %v4206, %v5310
        %v5392 = vsel %vm5375, %v4207, %v5312
        %v5393 = vsel %vm5375, %v4208, %v5314
        %v5394 = vsel %vm5375, %v4209, %v5316
        %v5395 = vsel %vm5375, %v4210, %v5318
        %v5396 = vsel %vm5375, %v4211, %v5320
        %v5397 = vsel %vm5375, %v4212, %v5322
        %v5398 = vsel %vm5375, %v4213, %v5324
        %v5399 = vsel %vm5375, %v4214, %v5326
        %v5400 = vsel %vm5375, %v4215, %v5328
        %v5401 = vsel %vm5375, %v4216, %v5330
        %v5402 = vsel %vm5375, %v4217, %v5332
        %v5403 = vsel %vm5375, %v4218, %v5334
        %v5404 = vsel %vm5375, %v4219, %v5336
        %v5405 = vsel %vm5375, %v4220, %v5338
        %v5406 = vsel %vm5375, %v4221, %v5340
        %v5407 = vsel %vm5375, %v4222, %v5342
        %v5408 = vld [vmem:[%s1] sm:$0xff]
        %vm5409 = vcmask 818176
        %v5411 = vsel %vm5409, %v5408, 0
        %v5414 = vsel %vm5409, %v5376, 0
        %v5417 = vsel %vm5409, %v5377, 0
        %v5420 = vsel %vm5409, %v5378, 0
        %v5423 = vsel %vm5409, %v5379, 0
        %v5426 = vsel %vm5409, %v5380, 0
        %v5429 = vsel %vm5409, %v5381, 0
        %v5432 = vsel %vm5409, %v5382, 0
        %v5435 = vsel %vm5409, %v5383, 0
        %v5438 = vsel %vm5409, %v5384, 0
        %v5441 = vsel %vm5409, %v5385, 0
        %v5444 = vsel %vm5409, %v5386, 0
        %v5447 = vsel %vm5409, %v5387, 0
        %v5450 = vsel %vm5409, %v5388, 0
        %v5453 = vsel %vm5409, %v5389, 0
        %v5456 = vsel %vm5409, %v5390, 0
        %v5459 = vsel %vm5409, %v5391, 0
        %v5462 = vsel %vm5409, %v5392, 0
        %v5465 = vsel %vm5409, %v5393, 0
        %v5468 = vsel %vm5409, %v5394, 0
        %v5471 = vsel %vm5409, %v5395, 0
        %v5474 = vsel %vm5409, %v5396, 0
        %v5477 = vsel %vm5409, %v5397, 0
        %v5480 = vsel %vm5409, %v5398, 0
        %v5483 = vsel %vm5409, %v5399, 0
        %v5486 = vsel %vm5409, %v5400, 0
        %v5489 = vsel %vm5409, %v5401, 0
        %v5492 = vsel %vm5409, %v5402, 0
        %v5495 = vsel %vm5409, %v5403, 0
        %v5498 = vsel %vm5409, %v5404, 0
        %v5501 = vsel %vm5409, %v5405, 0
        %v5504 = vsel %vm5409, %v5406, 0
        %v5507 = vsel %vm5409, %v5407, 0
        %5509 = vmatprep.subr.mxu0 0.0
        %5510 = vmatpush1.xpose.msra.mxu0 %v5414
        %5511 = vmatprep.subr.mxu0 0.0
        %5512 = vmatpush1.xpose.msra.mxu0 %v5417
        %5513 = vmatprep.subr.mxu0 0.0
        %5514 = vmatpush1.xpose.msra.mxu0 %v5420
        %5515 = vmatprep.subr.mxu0 0.0
        %5516 = vmatpush1.xpose.msra.mxu0 %v5423
        %5517 = vmatprep.subr.mxu0 0.0
        %5518 = vmatpush1.xpose.msra.mxu0 %v5426
        %5519 = vmatprep.subr.mxu0 0.0
        %5520 = vmatpush1.xpose.msra.mxu0 %v5429
        %5521 = vmatprep.subr.mxu0 0.0
        %5522 = vmatpush1.xpose.msra.mxu0 %v5432
        %5523 = vmatprep.subr.mxu0 0.0
        %5524 = vmatpush1.xpose.msra.mxu0 %v5435
        %5525 = vmatprep.subr.mxu0 0.0
        %5526 = vmatpush1.xpose.msra.mxu0 %v5438
        %5527 = vmatprep.subr.mxu0 0.0
        %5528 = vmatpush1.xpose.msra.mxu0 %v5441
        %5529 = vmatprep.subr.mxu0 0.0
        %5530 = vmatpush1.xpose.msra.mxu0 %v5444
        %5531 = vmatprep.subr.mxu0 0.0
        %5532 = vmatpush1.xpose.msra.mxu0 %v5447
        %5533 = vmatprep.subr.mxu0 0.0
        %5534 = vmatpush1.xpose.msra.mxu0 %v5450
        %5535 = vmatprep.subr.mxu0 0.0
        %5536 = vmatpush1.xpose.msra.mxu0 %v5453
        %5537 = vmatprep.subr.mxu0 0.0
        %5538 = vmatpush1.xpose.msra.mxu0 %v5456
        %5539 = vmatprep.subr.mxu0 0.0
        %5540 = vmatpush1.xpose.msra.mxu0 %v5459
        %5541 = vmatprep.subr.mxu0 0.0
        %5542 = vmatpush1.xpose.msra.mxu0 %v5462
        %5543 = vmatprep.subr.mxu0 0.0
        %5544 = vmatpush1.xpose.msra.mxu0 %v5465
        %5545 = vmatprep.subr.mxu0 0.0
        %5546 = vmatpush1.xpose.msra.mxu0 %v5468
        %5547 = vmatprep.subr.mxu0 0.0
        %5548 = vmatpush1.xpose.msra.mxu0 %v5471
        %5549 = vmatprep.subr.mxu0 0.0
        %5550 = vmatpush1.xpose.msra.mxu0 %v5474
        %5551 = vmatprep.subr.mxu0 0.0
        %5552 = vmatpush1.xpose.msra.mxu0 %v5477
        %5553 = vmatprep.subr.mxu0 0.0
        %5554 = vmatpush1.xpose.msra.mxu0 %v5480
        %5555 = vmatprep.subr.mxu0 0.0
        %5556 = vmatpush1.xpose.msra.mxu0 %v5483
        %5557 = vmatprep.subr.mxu0 0.0
        %5558 = vmatpush1.xpose.msra.mxu0 %v5486
        %5559 = vmatprep.subr.mxu0 0.0
        %5560 = vmatpush1.xpose.msra.mxu0 %v5489
        %5561 = vmatprep.subr.mxu0 0.0
        %5562 = vmatpush1.xpose.msra.mxu0 %v5492
        %5563 = vmatprep.subr.mxu0 0.0
        %5564 = vmatpush1.xpose.msra.mxu0 %v5495
        %5565 = vmatprep.subr.mxu0 0.0
        %5566 = vmatpush1.xpose.msra.mxu0 %v5498
        %5567 = vmatprep.subr.mxu0 0.0
        %5568 = vmatpush1.xpose.msra.mxu0 %v5501
        %5569 = vmatprep.subr.mxu0 0.0
        %5570 = vmatpush1.xpose.msra.mxu0 %v5504
        %5571 = vmatprep.subr.mxu0 0.0
        %5572 = vmatpush1.xpose.msra.mxu0 %v5507
        %5573 = vmatprep.mubr.f32.mxu0 0.0
        %5574 = vmatmul.mubr.f32.gmra.mrb[0].mxu0 %v5411
        %v5575 = vpop.f32.mrb[0].mxu0
        %v5576 = vadd.f32 0.0, %v5575
        %v5577 = vpop.f32.mrb[0].mxu0
        %v5578 = vadd.f32 0.0, %v5577
        %5579 = vdwg.mxu0
        %5580 = vst [vmem:[%s150] sm:$0xff] %v5576
        %5581 = vst [vmem:[%s150 + $0x8] sm:$0xff] %v5578
        %s5582 = sand.u32 %s85, 1
        %s5583 = scalar_lea.sflag [#allocation3], %s5582
        %s5584 = sand.u32 %s85, 1
        %s5585 = smul.addr %s5584, 16
        %s5586 = scalar_lea.vmem [#allocation2], %s5585
        // Predicated region
        $region29: #{tpu_custom_call.1} parent=27 // pred_check
          %p5587 = pneg %p95
        $region30: #{tpu_custom_call.1} parent=27 // pred_check_branch
          %5589 = sbr.rel (%p5587) target = $region32
        $region31: #{tpu_custom_call.1} parent=27 // pred_region
          %s5590 = smul.u32 2, %s21
          %s5592 = ssub.s32 256, 256
          %5593 = vsyncadd %s5583, %s5592
          %s5594 = smul.addr %s20, 2
          %s5595 = sadd.s32 %s5590, %s5594
          %s5596 = smul.addr %s5595, 128
          %s5597 = scalar_lea.hbm %s2, %s5596
          %s5599 = sshll.u32 %s5586, 4
          %s5600 = int_to_ptr.vmem [resolvable:$true] %s5599
          %5602 = dma.vmem_to_hbm [thread:$0]  %s5600, 256, %s5597, %s5583
        $region32: #{tpu_custom_call.1} parent=27 // pred_fallthru
          _
      $region28: #{tpu_custom_call.1} parent=5 // pred_fallthru
        _
      %p5603 = scmp.le.s32.totalorder 2, %s11
      // Predicated region
      $region33: #{tpu_custom_call.1} parent=5 // pred_check
        %p5604 = pneg %p5603
      $region34: #{tpu_custom_call.1} parent=5 // pred_check_branch
        %5606 = sbr.rel (%p5604) target = $region36
      $region35: #{tpu_custom_call.1} parent=5 // pred_region
        %s5607 = ssub.s32 %s11, 2
        // Predicated region
        $region37: #{tpu_custom_call.1} parent=35 // pred_check
          %p5608 = pneg %p101
        $region38: #{tpu_custom_call.1} parent=35 // pred_check_branch
          %5610 = sbr.rel (%p5608) target = $region40
        $region39: #{tpu_custom_call.1} parent=35 // pred_region
          %s5611 = sand.u32 %s86, 1
          %s5612 = scalar_lea.sflag [#allocation3], %s5611
          %s5613 = sand.u32 %s86, 1
          %s5614 = smul.addr %s5613, 16
          %s5615 = scalar_lea.vmem [#allocation2], %s5614
          %5616 = dma.done %s5612, 256
        $region40: #{tpu_custom_call.1} parent=35 // pred_fallthru
          _
      $region36: #{tpu_custom_call.1} parent=5 // pred_fallthru
        _
    $region6: #{tpu_custom_call.1} parent=1 // loop_footer
      %s15 = sadd.s32 1, %s11
    $region7: #{tpu_custom_call.1} parent=1 // loop_footer_branch
      %10 = sbr.rel target = $region3
    $region8: #{tpu_custom_call.1} parent=1 // loop_exit
      _
    %5617 = vsyncpa [#allocation3], 1
    %s5618 = scalar_lea.sflag [#allocation3], 1
    %5619 = vsyncpa %s5618, 1

</llo_original>
